<compile_context>
chip_gen: v7x
topology: tpu7x:2x2x1
jax: 0.10.0
libtpu: 0.0.40
codegen_flags: <defaults>
</compile_context>

<pallas_src>
import functools

import jax
import jax.numpy as jnp
from jax import lax
from jax.experimental import pallas as pl
from jax.experimental.pallas import tpu as pltpu

F32 = jnp.float32
BF16 = jnp.bfloat16
# v7x has only 64 MiB physical VMEM per TensorCore; keep the scoped request
# <= ~48 MiB so the same kernels compile on v5e / v6e / v7x.
VMEM_LIMIT = 48 * 1024 * 1024
MAX_ROW_TILE = 2048        # row tile for the mem-bound editor-head kernels
NNCONV_CHUNK_K = 512       # target K (= chunk * edge_hidden) per NNConv matmul


def _round_up(x, m):
    return (x + m - 1) // m * m


def _full_spec(shape):
    nd = len(shape)
    return pl.BlockSpec(tuple(shape), lambda *_: (0,) * nd)


def _row_tiling(rows):
    """Pick (padded_rows, row_tile): tile of <= MAX_ROW_TILE rows, mult of 8."""
    if rows <= MAX_ROW_TILE:
        rp = _round_up(rows, 8)
        return rp, rp
    rp = _round_up(rows, MAX_ROW_TILE)
    return rp, MAX_ROW_TILE


def _mm(a, b):
    """MXU matmul: bf16 inputs, f32 accumulation."""
    return jnp.dot(a.astype(BF16), b.astype(BF16), preferred_element_type=F32)


def _pad2(w, rows, cols):
    return jnp.pad(w, ((0, rows - w.shape[0]), (0, cols - w.shape[1])))


def _pad_row(v, cols):
    v = v.reshape(1, -1)
    return jnp.pad(v, ((0, 0), (0, cols - v.shape[1])))


def _pad_gru_w(w, D, Dp):
    """(D, 3*D) gate-concat weight -> (Dp, 3*Dp), each gate at a 128 boundary."""
    out = jnp.zeros((Dp, 3 * Dp), F32)
    for g in range(3):
        out = out.at[:D, g * Dp:g * Dp + D].set(w[:, g * D:(g + 1) * D])
    return out


# ---------------------------------------------------------------------------
# Kernel 1: fused MPNNGNN + pair_atom_feats + linearB
#   h   = ReLU(node_feats @ Wp + bp)                       (channels padded Dp)
#   ewh = ReLU(edge_feats @ We1 + be1)
#   repeat num_steps (lax.fori_loop):
#     h_src = gsrc @ h              (bf16 0/1 gather, f32 accumulate)
#     msgs  = sum_chunks (h_src[:,c] (x) ewh) @ W2'[c] + h_src @ B2'
#     mp    = ReLU(sdst @ msgs + b_conv)
#     h     = GRU(mp, h)            (two fused gate matmuls, 128-lane slices)
#   node_out = h
#   bond1    = h[src] @ Wb_src + h[dst] @ Wb_dst + bb       (fused linearB)
# ---------------------------------------------------------------------------
def _mpnn_kernel(nf_ref, ef_ref, gsrc_ref, gdst_ref, sdst_ref,
                 pw_ref, pb_ref, e1w_ref, e1b_ref,
                 w2p_ref, b2m_ref, cb_ref,
                 wih_ref, whh_ref, br_ref, bz_ref, bin_ref, bhn_ref,
                 wbs_ref, wbd_ref, bb_ref,
                 node_o_ref, bond_o_ref,
                 *, num_steps, d_real, d_pad, chunk):
    # hoisted loads / casts (no per-step reload or re-cast)
    gsrc = gsrc_ref[...]                      # (Ep, Np) bf16 0/1 gather (src)
    gdst = gdst_ref[...]                      # (Ep, Np) bf16 0/1 gather (dst)
    sdst = sdst_ref[...]                      # (Np, Ep) bf16 scatter-sum (dst)
    w2p = w2p_ref[...].astype(BF16)           # (D*H, Dp) factored edge-net weight
    b2m = b2m_ref[...].astype(BF16)           # (Dp, Dp)  factored edge-net bias
    cb = cb_ref[...]                          # (1, Dp)
    wih = wih_ref[...].astype(BF16)           # (Dp, 3*Dp) fused GRU input gates
    whh = whh_ref[...].astype(BF16)           # (Dp, 3*Dp) fused GRU hidden gates
    br, bz = br_ref[...], bz_ref[...]
    bin_, bhn = bin_ref[...], bhn_ref[...]
    wbs = wbs_ref[...].astype(BF16)           # (Dp, Dp) linearB (src half)
    wbd = wbd_ref[...].astype(BF16)           # (Dp, Dp) linearB (dst half)
    bb = bb_ref[...]                          # (1, Dp)
    Dg = d_pad

    h = jnp.maximum(_mm(nf_ref[...], pw_ref[...]) + pb_ref[...], 0.0)      # (Np, Dp)
    ewh = jnp.maximum(_mm(ef_ref[...], e1w_ref[...]) + e1b_ref[...], 0.0)  # (Ep, H)
    Ep, H = ewh.shape

    def step(_, h):
        h_bf = h.astype(BF16)
        # bf16 0/1 gather with f32 accumulation (exact selection of bf16 h).
        h_src = jnp.dot(gsrc, h_bf, preferred_element_type=F32)            # (Ep, Dp)
        hsrc_bf = h_src.astype(BF16)
        # Factored NNConv message, chunked over node channels so the live
        # outer-product intermediate is only (Ep, chunk*H).
        msgs = jnp.dot(hsrc_bf, b2m, preferred_element_type=F32)           # (Ep, Dp)
        for i0 in range(0, d_real, chunk):
            c = min(chunk, d_real - i0)
            pc = (h_src[:, i0:i0 + c, None] * ewh[:, None, :]).reshape(Ep, c * H)
            msgs = msgs + jnp.dot(pc.astype(BF16),
                                  w2p[i0 * H:(i0 + c) * H, :],
                                  preferred_element_type=F32)
        agg = jnp.dot(sdst, msgs.astype(BF16), preferred_element_type=F32)  # (Np, Dp)
        mp = jnp.maximum(agg + cb, 0.0)                                     # F.relu
        # GRU step (gate order r, z, n); two fused matmuls, 128-aligned slices.
        mp_bf = mp.astype(BF16)
        gi = jnp.dot(mp_bf, wih, preferred_element_type=F32)               # (Np, 3*Dp)
        gh = jnp.dot(h_bf, whh, preferred_element_type=F32)
        r = jax.nn.sigmoid(gi[:, 0:Dg] + gh[:, 0:Dg] + br)
        z = jax.nn.sigmoid(gi[:, Dg:2 * Dg] + gh[:, Dg:2 * Dg] + bz)
        n = jnp.tanh(gi[:, 2 * Dg:3 * Dg] + bin_ +
                     r * (gh[:, 2 * Dg:3 * Dg] + bhn))
        return (1.0 - z) * n + z * h

    h = lax.fori_loop(0, num_steps, step, h)
    node_o_ref[...] = h
    # Fused pair_atom_feats + linearB (reuses resident h and one-hot matrices).
    h_bf = h.astype(BF16)
    hs = jnp.dot(gsrc, h_bf, preferred_element_type=F32)
    hd = jnp.dot(gdst, h_bf, preferred_element_type=F32)
    bond_o_ref[...] = (jnp.dot(hs.astype(BF16), wbs, preferred_element_type=F32) +
                       jnp.dot(hd.astype(BF16), wbd, preferred_element_type=F32) + bb)


def mpnn_forward(nf, ef, gsrc, gdst, sdst, p, cfg):
    # TODO(synk): for production-size graphs, tile the edge axis with a grid
    # ("arbitrary") and a node-side accumulator (or pltpu.emit_pipeline), and
    # replace the dense one-hot gather/scatter matrices; the fully fused,
    # grid-less form below is only feasible at small N/E.
    Np = nf.shape[0]
    Ep = ef.shape[0]
    D = cfg['node_out_feats']
    H = cfg['edge_hidden_feats']
    Dp = _round_up(D, 128)                       # lane-dense node channels
    chunk = max(1, min(D, NNCONV_CHUNK_K // max(H, 1)))

    # Factored second edge-net linear: W2'[(i,k), o] = e2_w[k, i*D + o]
    w2p = p['e2_w'].reshape(H, D, D).transpose(1, 0, 2).reshape(D * H, D)
    w2p = _pad2(w2p, D * H, Dp)
    b2m = _pad2(p['e2_b'].reshape(D, D), Dp, Dp)

    wih, whh, bih, bhh = p['gru_wih'], p['gru_whh'], p['gru_bih'], p['gru_bhh']
    args = (
        nf, ef, gsrc, gdst, sdst,
        _pad2(p['proj_w'], p['proj_w'].shape[0], Dp), _pad_row(p['proj_b'], Dp),
        p['e1_w'], p['e1_b'].reshape(1, H),
        w2p, b2m, _pad_row(p['nnconv_b'], Dp),
        _pad_gru_w(wih, D, Dp), _pad_gru_w(whh, D, Dp),
        _pad_row(bih[:D] + bhh[:D], Dp),
        _pad_row(bih[D:2 * D] + bhh[D:2 * D], Dp),
        _pad_row(bih[2 * D:], Dp),
        _pad_row(bhh[2 * D:], Dp),
        _pad2(p['linB_w'][:D], Dp, Dp), _pad2(p['linB_w'][D:], Dp, Dp),
        _pad_row(p['linB_b'], Dp),
    )
    kern = functools.partial(
        _mpnn_kernel, num_steps=cfg['num_step_message_passing'],
        d_real=D, d_pad=Dp, chunk=chunk)
    return pl.pallas_call(
        kern,
        out_shape=(jax.ShapeDtypeStruct((Np, Dp), F32),
                   jax.ShapeDtypeStruct((Ep, Dp), F32)),
        in_specs=[_full_spec(a.shape) for a in args],
        out_specs=(_full_spec((Np, Dp)), _full_spec((Ep, Dp))),
        compiler_params=pltpu.CompilerParams(vmem_limit_bytes=VMEM_LIMIT),
    )(*args)


# ---------------------------------------------------------------------------
# Kernel 2: fused 2-layer editor head (linear -> ReLU -> linear), output width
#           padded to 128 lanes (sliced back in the wrapper), row-tiled.
# ---------------------------------------------------------------------------
def _mlp2_kernel(x_ref, w1_ref, b1_ref, w2_ref, b2_ref, o_ref):
    h = jnp.maximum(_mm(x_ref[...], w1_ref[...]) + b1_ref[...], 0.0)
    o_ref[...] = _mm(h, w2_ref[...]) + b2_ref[...]


def mlp2(x, w1, b1, w2, b2, out_dim):
    rows, fin = x.shape
    hid = w1.shape[1]
    fout_p = _round_up(out_dim, 128)            # lane-dense store
    w2p = jnp.pad(w2, ((0, 0), (0, fout_p - out_dim)))
    b2p = jnp.pad(b2, (0, fout_p - out_dim))
    rp, tr = _row_tiling(rows)
    xp = jnp.pad(x, ((0, rp - rows), (0, 0)))
    out = pl.pallas_call(
        _mlp2_kernel,
        out_shape=jax.ShapeDtypeStruct((rp, fout_p), F32),
        grid=(rp // tr,),
        in_specs=[pl.BlockSpec((tr, fin), lambda i: (i, 0)),
                  pl.BlockSpec((fin, hid), lambda i: (0, 0)),
                  pl.BlockSpec((1, hid), lambda i: (0, 0)),
                  pl.BlockSpec((hid, fout_p), lambda i: (0, 0)),
                  pl.BlockSpec((1, fout_p), lambda i: (0, 0))],
        out_specs=pl.BlockSpec((tr, fout_p), lambda i: (i, 0)),
        compiler_params=pltpu.CompilerParams(
            dimension_semantics=("parallel",),
            vmem_limit_bytes=VMEM_LIMIT),
    )(xp, w1, b1.reshape(1, hid), w2p, b2p.reshape(1, fout_p))
    return out[:rows, :out_dim]


# ---------------------------------------------------------------------------
# Kernel 3: one Global-Reactivity-Attention layer, grid over batch ("parallel")
#   m = MHA(LN(x)) + LN(x)      (LocalRetro MHA: no W_O, residual adds LN(x))
#   y = FF(LN(x + m)) + (x + m) (dropout = identity, eval mode)
# Returns (y, per-head softmax attention scores in bf16, lane-dense Lp x Lp).
# ---------------------------------------------------------------------------
def _att_layer_kernel(x_ref, mask_ref, g1_ref, b1_ref, wqkv_ref,
                      g2_ref, b2_ref, w1_ref, fb1_ref, w2_ref, fb2_ref,
                      y_ref, s_ref, *, heads):
    _, L, D = x_ref.shape
    dk = D // heads
    scale = 1.0 / float(dk) ** 0.5

    def layer_norm(v, g, bb):
        mu = jnp.mean(v, axis=-1, keepdims=True)
        var = jnp.mean((v - mu) ** 2, axis=-1, keepdims=True)
        return (v - mu) * lax.rsqrt(var + 1e-6) * g + bb

    x = x_ref[0]                                              # (L, D)
    key_bias = jnp.where(mask_ref[0] > 0.5, 0.0, -9e9)        # (1, L) additive

    xn = layer_norm(x, g1_ref[...], b1_ref[...])
    qkv = _mm(xn, wqkv_ref[...])                              # one fused QKV matmul
    q = qkv[:, 0:D]
    k = qkv[:, D:2 * D]
    v = qkv[:, 2 * D:3 * D]
    # TODO(synk): head transposes kept (leading-batch dims for Mosaic dot_general).
    qh = q.reshape(L, heads, dk).transpose(1, 0, 2)           # (h, L, dk)
    kh = k.reshape(L, heads, dk).transpose(1, 0, 2)
    vh = v.reshape(L, heads, dk).transpose(1, 0, 2)

    sc = jnp.einsum('hqd,hkd->hqk', qh.astype(BF16), kh.astype(BF16),
                    preferred_element_type=F32) * scale        # (h, L, L)
    sc = jax.nn.softmax(sc + key_bias[None, :, :], axis=-1)    # f32 softmax
    sc_bf = sc.astype(BF16)
    s_ref[0] = sc_bf                                           # lane-dense bf16 store

    out = jnp.einsum('hqk,hkd->hqd', sc_bf, vh.astype(BF16),
                     preferred_element_type=F32)               # (h, L, dk)
    att = out.transpose(1, 0, 2).reshape(L, D) + xn            # MHA residual = + LN(x)
    y1 = x + att                                               # outer residual
    z = layer_norm(y1, g2_ref[...], b2_ref[...])
    hidden = jnp.maximum(_mm(z, w1_ref[...]) + fb1_ref[...], 0.0)
    y_ref[0] = _mm(hidden, w2_ref[...]) + fb2_ref[...] + y1


def att_layer(x, mask3, lp, heads):
    B, Lp, D = x.shape
    wqkv = jnp.concatenate([lp['wq'], lp['wk'], lp['wv']], axis=1)   # (D, 3D)
    kern = functools.partial(_att_layer_kernel, heads=heads)
    out_shape = (jax.ShapeDtypeStruct((B, Lp, D), F32),
                 jax.ShapeDtypeStruct((B, heads, Lp, Lp), BF16))
    return pl.pallas_call(
        kern,
        out_shape=out_shape,
        grid=(B,),
        in_specs=[
            pl.BlockSpec((1, Lp, D), lambda b: (b, 0, 0)),
            pl.BlockSpec((1, 1, Lp), lambda b: (b, 0, 0)),
            pl.BlockSpec((1, D), lambda b: (0, 0)),
            pl.BlockSpec((1, D), lambda b: (0, 0)),
            pl.BlockSpec((D, 3 * D), lambda b: (0, 0)),
            pl.BlockSpec((1, D), lambda b: (0, 0)),
            pl.BlockSpec((1, D), lambda b: (0, 0)),
            pl.BlockSpec((D, 2 * D), lambda b: (0, 0)),
            pl.BlockSpec((1, 2 * D), lambda b: (0, 0)),
            pl.BlockSpec((2 * D, D), lambda b: (0, 0)),
            pl.BlockSpec((1, D), lambda b: (0, 0)),
        ],
        out_specs=(pl.BlockSpec((1, Lp, D), lambda b: (b, 0, 0)),
                   pl.BlockSpec((1, heads, Lp, Lp), lambda b: (b, 0, 0, 0))),
        compiler_params=pltpu.CompilerParams(
            dimension_semantics=("parallel",),
            vmem_limit_bytes=VMEM_LIMIT),
    )(x, mask3,
      lp['ln1_g'].reshape(1, D), lp['ln1_b'].reshape(1, D),
      wqkv,
      lp['ln2_g'].reshape(1, D), lp['ln2_b'].reshape(1, D),
      lp['w1'], lp['b1'].reshape(1, 2 * D),
      lp['w2'], lp['b2'].reshape(1, D))


# ---------------------------------------------------------------------------
# Graph bookkeeping glue (DGL batch/unbatch equivalents, static shapes)
# TODO(synk): ragged per-graph unbatching stays in host-side JAX; changing
#             n_nodes/n_edges retraces the pipeline.
# ---------------------------------------------------------------------------
def unbatch_mask(n_nodes, n_edges, atom_feats, bond_feats):
    seq_lens = [a + b for a, b in zip(n_nodes, n_edges)]
    L = max(seq_lens)
    Lp = _round_up(L, 128)          # lane-dense score stores in the attention
    seqs, masks = [], []
    no = eo = 0
    for a, b in zip(n_nodes, n_edges):
        s = jnp.concatenate([atom_feats[no:no + a], bond_feats[eo:eo + b]], axis=0)
        pad = Lp - (a + b)
        seqs.append(jnp.pad(s, ((0, pad), (0, 0))))
        masks.append(jnp.pad(jnp.ones((a + b,), F32), (0, pad)))
        no += a
        eo += b
    B = len(n_nodes)
    return jnp.stack(seqs, 0), jnp.stack(masks, 0).reshape(B, 1, Lp), L


def unbatch_feats(n_nodes, n_edges, edit_feats):
    atoms, bonds = [], []
    for i, (a, b) in enumerate(zip(n_nodes, n_edges)):
        atoms.append(edit_feats[i, :a])
        bonds.append(edit_feats[i, a:a + b])
    return jnp.concatenate(atoms, axis=0), jnp.concatenate(bonds, axis=0)


# ---------------------------------------------------------------------------
# Deterministic parameter initialisation (synthetic, no checkpoint)
# ---------------------------------------------------------------------------
def init_params(key, cfg):
    D = cfg['node_out_feats']
    keys = iter(jax.random.split(key, 64))

    def nrm(shape, scale=0.1):
        return scale * jax.random.normal(next(keys), shape, dtype=F32)

    p = {}
    # MPNNGNN
    p['proj_w'] = nrm((cfg['node_in_feats'], D)); p['proj_b'] = nrm((D,))
    p['e1_w'] = nrm((cfg['edge_in_feats'], cfg['edge_hidden_feats']))
    p['e1_b'] = nrm((cfg['edge_hidden_feats'],))
    p['e2_w'] = nrm((cfg['edge_hidden_feats'], D * D), 0.02)
    p['e2_b'] = nrm((D * D,), 0.02)
    p['nnconv_b'] = nrm((D,))
    p['gru_wih'] = nrm((D, 3 * D)); p['gru_whh'] = nrm((D, 3 * D))
    p['gru_bih'] = nrm((3 * D,));   p['gru_bhh'] = nrm((3 * D,))
    # linearB
    p['linB_w'] = nrm((2 * D, D)); p['linB_b'] = nrm((D,))
    # attention (MSA / Global Reactivity Attention)
    p['att_layers'] = []
    for _ in range(cfg['attention_layers']):
        p['att_layers'].append(dict(
            ln1_g=jnp.ones((D,), F32), ln1_b=jnp.zeros((D,), F32),
            wq=nrm((D, D)), wk=nrm((D, D)), wv=nrm((D, D)),
            ln2_g=jnp.ones((D,), F32), ln2_b=jnp.zeros((D,), F32),
            w1=nrm((D, 2 * D)), b1=nrm((2 * D,)),
            w2=nrm((2 * D, D)), b2=nrm((D,)),
        ))
    # editors
    p['atom_ed1_w'] = nrm((D, D)); p['atom_ed1_b'] = nrm((D,))
    p['atom_ed2_w'] = nrm((D, cfg['AtomTemplate_n'] + 1))
    p['atom_ed2_b'] = nrm((cfg['AtomTemplate_n'] + 1,))
    p['bond_ed1_w'] = nrm((D, D)); p['bond_ed1_b'] = nrm((D,))
    p['bond_ed2_w'] = nrm((D, cfg['BondTemplate_n'] + 1))
    p['bond_ed2_b'] = nrm((cfg['BondTemplate_n'] + 1,))
    return p


# ---------------------------------------------------------------------------
# LocalRetro forward
# ---------------------------------------------------------------------------
def local_retro_forward(params, graph, node_feats, edge_feats, cfg):
    src, dst, n_nodes, n_edges = graph
    N = node_feats.shape[0]
    E = src.shape[0]
    D = cfg['node_out_feats']
    Np = _round_up(N, 8)
    Ep = _round_up(E, 8)

    # Row padding + one-hot gather/scatter matrices (padded edges -> zero rows)
    nf = jnp.pad(node_feats, ((0, Np - N), (0, 0)))
    ef = jnp.pad(edge_feats, ((0, Ep - E), (0, 0)))
    src_p = jnp.pad(src, (0, Ep - E), constant_values=Np)
    dst_p = jnp.pad(dst, (0, Ep - E), constant_values=Np)
    gsrc = jax.nn.one_hot(src_p, Np, dtype=BF16)       # (Ep, Np): h[src] = gsrc @ h
    gdst = jax.nn.one_hot(dst_p, Np, dtype=BF16)       # (Ep, Np): h[dst] = gdst @ h
    sdst = gdst.T                                      # (Np, Ep): scatter-sum to dst

    # ---- MPNNGNN + fused pair_atom_feats/linearB (h resident in VMEM) ----
    node_out_p, bond1_p = mpnn_forward(nf, ef, gsrc, gdst, sdst, params, cfg)
    node_out = node_out_p[:N, :D]          # atom_feats1
    bond_feats1 = bond1_p[:E, :D]          # linearB(pair_atom_feats(g, h))

    # ---- unbatch_mask ----
    edit_feats, mask3, L = unbatch_mask(n_nodes, n_edges, node_out, bond_feats1)

    # ---- MSA / Global Reactivity Attention ----
    attention_score = None
    if cfg['GRA']:
        x = edit_feats
        scores = []
        for lp in params['att_layers']:
            x, sc = att_layer(x, mask3, lp, cfg['attention_heads'])
            scores.append(sc[:, :, :L, :L].astype(F32))
        edit_feats = x
        attention_score = tuple(scores)

    # ---- unbatch_feats + fused editor heads (Dropout = identity, eval) ----
    atom_feats2, bond_feats2 = unbatch_feats(n_nodes, n_edges, edit_feats)
    atom_out = mlp2(atom_feats2, params['atom_ed1_w'], params['atom_ed1_b'],
                    params['atom_ed2_w'], params['atom_ed2_b'],
                    cfg['AtomTemplate_n'] + 1)
    bond_out = mlp2(bond_feats2, params['bond_ed1_w'], params['bond_ed1_b'],
                    params['bond_ed2_w'], params['bond_ed2_b'],
                    cfg['BondTemplate_n'] + 1)
    return atom_out, bond_out, attention_score


# ---------------------------------------------------------------------------
if __name__ == "__main__":
    cfg = dict(
        node_in_feats=16, edge_in_feats=8, node_out_feats=32,
        edge_hidden_feats=32, num_step_message_passing=3,
        attention_heads=4, attention_layers=2,
        AtomTemplate_n=10, BondTemplate_n=12, GRA=True,
    )

    # Synthetic batched graph: graph 1 (5 nodes, 8 directed edges),
    #                          graph 2 (4 nodes, 6 directed edges).
    src = jnp.array([0, 1, 1, 2, 2, 3, 3, 4, 5, 6, 6, 7, 7, 8], dtype=jnp.int32)
    dst = jnp.array([1, 0, 2, 1, 3, 2, 4, 3, 6, 5, 7, 6, 8, 7], dtype=jnp.int32)
    n_nodes = [5, 4]
    n_edges = [8, 6]
    graph = (src, dst, n_nodes, n_edges)
    N_total = sum(n_nodes)
    E_total = int(src.shape[0])

    key = jax.random.PRNGKey(0)
    k_node, k_edge, k_par = jax.random.split(key, 3)
    node_feats = jax.random.normal(k_node, (N_total, cfg['node_in_feats']), dtype=F32)
    edge_feats = jax.random.normal(k_edge, (E_total, cfg['edge_in_feats']), dtype=F32)
    params = init_params(k_par, cfg)

    atom_out, bond_out, attention_score = local_retro_forward(
        params, graph, node_feats, edge_feats, cfg)
    jax.block_until_ready((atom_out, bond_out, attention_score))

    assert atom_out.shape == (N_total, cfg['AtomTemplate_n'] + 1)
    assert bond_out.shape == (E_total, cfg['BondTemplate_n'] + 1)
    assert len(attention_score) == cfg['attention_layers']
    print("KERNEL_OK")
</pallas_src>

<mosaic_0001>
module attributes {stable_mosaic.version = 11 : i64} {
  func.func @_mpnn_kernel(%arg0: memref<16x16xf32, #tpu.memory_space<vmem>>, %arg1: memref<16x8xf32, #tpu.memory_space<vmem>>, %arg2: memref<16x16xbf16, #tpu.memory_space<vmem>>, %arg3: memref<16x16xbf16, #tpu.memory_space<vmem>>, %arg4: memref<16x16xbf16, #tpu.memory_space<vmem>>, %arg5: memref<16x128xf32, #tpu.memory_space<vmem>>, %arg6: memref<1x128xf32, #tpu.memory_space<vmem>>, %arg7: memref<8x32xf32, #tpu.memory_space<vmem>>, %arg8: memref<1x32xf32, #tpu.memory_space<vmem>>, %arg9: memref<1024x128xf32, #tpu.memory_space<vmem>>, %arg10: memref<128x128xf32, #tpu.memory_space<vmem>>, %arg11: memref<1x128xf32, #tpu.memory_space<vmem>>, %arg12: memref<128x384xf32, #tpu.memory_space<vmem>>, %arg13: memref<128x384xf32, #tpu.memory_space<vmem>>, %arg14: memref<1x128xf32, #tpu.memory_space<vmem>>, %arg15: memref<1x128xf32, #tpu.memory_space<vmem>>, %arg16: memref<1x128xf32, #tpu.memory_space<vmem>>, %arg17: memref<1x128xf32, #tpu.memory_space<vmem>>, %arg18: memref<128x128xf32, #tpu.memory_space<vmem>>, %arg19: memref<128x128xf32, #tpu.memory_space<vmem>>, %arg20: memref<1x128xf32, #tpu.memory_space<vmem>>, %arg21: memref<16x128xf32, #tpu.memory_space<vmem>>, %arg22: memref<16x128xf32, #tpu.memory_space<vmem>>) attributes {dimension_semantics = [], scalar_prefetch = 0 : i64, scratch_operands = 0 : i64, tpu.core_type = #tpu.core_type<tc>} {
    %c0 = arith.constant 0 : index
    %c0_0 = arith.constant 0 : index
    %0 = vector.load %arg2[%c0, %c0_0] : memref<16x16xbf16, #tpu.memory_space<vmem>>, vector<16x16xbf16>
    %c0_1 = arith.constant 0 : index
    %c0_2 = arith.constant 0 : index
    %1 = vector.load %arg3[%c0_1, %c0_2] : memref<16x16xbf16, #tpu.memory_space<vmem>>, vector<16x16xbf16>
    %c0_3 = arith.constant 0 : index
    %c0_4 = arith.constant 0 : index
    %2 = vector.load %arg4[%c0_3, %c0_4] : memref<16x16xbf16, #tpu.memory_space<vmem>>, vector<16x16xbf16>
    %c0_5 = arith.constant 0 : index
    %c0_6 = arith.constant 0 : index
    %3 = vector.load %arg9[%c0_5, %c0_6] : memref<1024x128xf32, #tpu.memory_space<vmem>>, vector<1024x128xf32>
    %4 = arith.truncf %3 : vector<1024x128xf32> to vector<1024x128xbf16>
    %c0_7 = arith.constant 0 : index
    %c0_8 = arith.constant 0 : index
    %5 = vector.load %arg10[%c0_7, %c0_8] : memref<128x128xf32, #tpu.memory_space<vmem>>, vector<128x128xf32>
    %6 = arith.truncf %5 : vector<128x128xf32> to vector<128x128xbf16>
    %c0_9 = arith.constant 0 : index
    %c0_10 = arith.constant 0 : index
    %7 = vector.load %arg11[%c0_9, %c0_10] : memref<1x128xf32, #tpu.memory_space<vmem>>, vector<1x128xf32>
    %c0_11 = arith.constant 0 : index
    %c0_12 = arith.constant 0 : index
    %8 = vector.load %arg12[%c0_11, %c0_12] : memref<128x384xf32, #tpu.memory_space<vmem>>, vector<128x384xf32>
    %9 = arith.truncf %8 : vector<128x384xf32> to vector<128x384xbf16>
    %c0_13 = arith.constant 0 : index
    %c0_14 = arith.constant 0 : index
    %10 = vector.load %arg13[%c0_13, %c0_14] : memref<128x384xf32, #tpu.memory_space<vmem>>, vector<128x384xf32>
    %11 = arith.truncf %10 : vector<128x384xf32> to vector<128x384xbf16>
    %c0_15 = arith.constant 0 : index
    %c0_16 = arith.constant 0 : index
    %12 = vector.load %arg14[%c0_15, %c0_16] : memref<1x128xf32, #tpu.memory_space<vmem>>, vector<1x128xf32>
    %c0_17 = arith.constant 0 : index
    %c0_18 = arith.constant 0 : index
    %13 = vector.load %arg15[%c0_17, %c0_18] : memref<1x128xf32, #tpu.memory_space<vmem>>, vector<1x128xf32>
    %c0_19 = arith.constant 0 : index
    %c0_20 = arith.constant 0 : index
    %14 = vector.load %arg16[%c0_19, %c0_20] : memref<1x128xf32, #tpu.memory_space<vmem>>, vector<1x128xf32>
    %c0_21 = arith.constant 0 : index
    %c0_22 = arith.constant 0 : index
    %15 = vector.load %arg17[%c0_21, %c0_22] : memref<1x128xf32, #tpu.memory_space<vmem>>, vector<1x128xf32>
    %c0_23 = arith.constant 0 : index
    %c0_24 = arith.constant 0 : index
    %16 = vector.load %arg18[%c0_23, %c0_24] : memref<128x128xf32, #tpu.memory_space<vmem>>, vector<128x128xf32>
    %17 = arith.truncf %16 : vector<128x128xf32> to vector<128x128xbf16>
    %c0_25 = arith.constant 0 : index
    %c0_26 = arith.constant 0 : index
    %18 = vector.load %arg19[%c0_25, %c0_26] : memref<128x128xf32, #tpu.memory_space<vmem>>, vector<128x128xf32>
    %19 = arith.truncf %18 : vector<128x128xf32> to vector<128x128xbf16>
    %c0_27 = arith.constant 0 : index
    %c0_28 = arith.constant 0 : index
    %20 = vector.load %arg20[%c0_27, %c0_28] : memref<1x128xf32, #tpu.memory_space<vmem>>, vector<1x128xf32>
    %c0_29 = arith.constant 0 : index
    %c0_30 = arith.constant 0 : index
    %21 = vector.load %arg0[%c0_29, %c0_30] : memref<16x16xf32, #tpu.memory_space<vmem>>, vector<16x16xf32>
    %c0_31 = arith.constant 0 : index
    %c0_32 = arith.constant 0 : index
    %22 = vector.load %arg5[%c0_31, %c0_32] : memref<16x128xf32, #tpu.memory_space<vmem>>, vector<16x128xf32>
    %23 = arith.truncf %21 : vector<16x16xf32> to vector<16x16xbf16>
    %24 = arith.truncf %22 : vector<16x128xf32> to vector<16x128xbf16>
    %cst = arith.constant dense<0.000000e+00> : vector<16x128xf32>
    %25 = tpu.matmul %23, %24, %cst {dimension_numbers = #tpu.dot_dimension_numbers<[1], [0], [0], [1], [0, 0, 1, 1], [], []>} : vector<16x16xbf16>, vector<16x128xbf16>, vector<16x128xf32> -> vector<16x128xf32>
    %c0_33 = arith.constant 0 : index
    %c0_34 = arith.constant 0 : index
    %26 = vector.load %arg6[%c0_33, %c0_34] : memref<1x128xf32, #tpu.memory_space<vmem>>, vector<1x128xf32>
    %27 = vector.broadcast %26 : vector<1x128xf32> to vector<16x128xf32>
    %28 = arith.addf %25, %27 : vector<16x128xf32>
    %cst_35 = arith.constant 0.000000e+00 : f32
    %29 = vector.broadcast %cst_35 : f32 to vector<16x128xf32>
    %30 = arith.maximumf %28, %29 : vector<16x128xf32>
    %c0_36 = arith.constant 0 : index
    %c0_37 = arith.constant 0 : index
    %31 = vector.load %arg1[%c0_36, %c0_37] : memref<16x8xf32, #tpu.memory_space<vmem>>, vector<16x8xf32>
    %c0_38 = arith.constant 0 : index
    %c0_39 = arith.constant 0 : index
    %32 = vector.load %arg7[%c0_38, %c0_39] : memref<8x32xf32, #tpu.memory_space<vmem>>, vector<8x32xf32>
    %33 = arith.truncf %31 : vector<16x8xf32> to vector<16x8xbf16>
    %34 = arith.truncf %32 : vector<8x32xf32> to vector<8x32xbf16>
    %cst_40 = arith.constant dense<0.000000e+00> : vector<16x32xf32>
    %35 = tpu.matmul %33, %34, %cst_40 {dimension_numbers = #tpu.dot_dimension_numbers<[1], [0], [0], [1], [0, 0, 1, 1], [], []>} : vector<16x8xbf16>, vector<8x32xbf16>, vector<16x32xf32> -> vector<16x32xf32>
    %c0_41 = arith.constant 0 : index
    %c0_42 = arith.constant 0 : index
    %36 = vector.load %arg8[%c0_41, %c0_42] : memref<1x32xf32, #tpu.memory_space<vmem>>, vector<1x32xf32>
    %37 = vector.broadcast %36 : vector<1x32xf32> to vector<16x32xf32>
    %38 = arith.addf %35, %37 : vector<16x32xf32>
    %cst_43 = arith.constant 0.000000e+00 : f32
    %39 = vector.broadcast %cst_43 : f32 to vector<16x32xf32>
    %40 = arith.maximumf %38, %39 : vector<16x32xf32>
    %c0_i32 = arith.constant 0 : i32
    %c3_i32 = arith.constant 3 : i32
    %41 = arith.addi %c0_i32, %c3_i32 : i32
    %c1_i32 = arith.constant 1 : i32
    %42 = scf.for %arg23 = %c0_i32 to %41 step %c1_i32 iter_args(%arg24 = %30) -> (vector<16x128xf32>)  : i32 {
      %55 = arith.truncf %arg24 : vector<16x128xf32> to vector<16x128xbf16>
      %cst_52 = arith.constant dense<0.000000e+00> : vector<16x128xf32>
      %56 = tpu.matmul %0, %55, %cst_52 {dimension_numbers = #tpu.dot_dimension_numbers<[1], [0], [0], [1], [0, 0, 1, 1], [], []>} : vector<16x16xbf16>, vector<16x128xbf16>, vector<16x128xf32> -> vector<16x128xf32>
      %57 = arith.truncf %56 : vector<16x128xf32> to vector<16x128xbf16>
      %cst_53 = arith.constant dense<0.000000e+00> : vector<16x128xf32>
      %58 = tpu.matmul %57, %6, %cst_53 {dimension_numbers = #tpu.dot_dimension_numbers<[1], [0], [0], [1], [0, 0, 1, 1], [], []>} : vector<16x128xbf16>, vector<128x128xbf16>, vector<16x128xf32> -> vector<16x128xf32>
      %59 = vector.extract_strided_slice %56 {offsets = [0, 0], sizes = [16, 16], strides = [1, 1]} : vector<16x128xf32> to vector<16x16xf32>
      %60 = vector.shape_cast %59 : vector<16x16xf32> to vector<16x16x1xf32>
      %61 = vector.shape_cast %40 : vector<16x32xf32> to vector<16x1x32xf32>
      %62 = vector.broadcast %60 : vector<16x16x1xf32> to vector<16x16x32xf32>
      %63 = vector.broadcast %61 : vector<16x1x32xf32> to vector<16x16x32xf32>
      %64 = arith.mulf %62, %63 : vector<16x16x32xf32>
      %65 = vector.shape_cast %64 : vector<16x16x32xf32> to vector<16x512xf32>
      %66 = arith.truncf %65 : vector<16x512xf32> to vector<16x512xbf16>
      %67 = vector.extract_strided_slice %4 {offsets = [0, 0], sizes = [512, 128], strides = [1, 1]} : vector<1024x128xbf16> to vector<512x128xbf16>
      %cst_54 = arith.constant dense<0.000000e+00> : vector<16x128xf32>
      %68 = tpu.matmul %66, %67, %cst_54 {dimension_numbers = #tpu.dot_dimension_numbers<[1], [0], [0], [1], [0, 0, 1, 1], [], []>} : vector<16x512xbf16>, vector<512x128xbf16>, vector<16x128xf32> -> vector<16x128xf32>
      %69 = arith.addf %58, %68 : vector<16x128xf32>
      %70 = vector.extract_strided_slice %56 {offsets = [0, 16], sizes = [16, 16], strides = [1, 1]} : vector<16x128xf32> to vector<16x16xf32>
      %71 = vector.shape_cast %70 : vector<16x16xf32> to vector<16x16x1xf32>
      %72 = vector.shape_cast %40 : vector<16x32xf32> to vector<16x1x32xf32>
      %73 = vector.broadcast %71 : vector<16x16x1xf32> to vector<16x16x32xf32>
      %74 = vector.broadcast %72 : vector<16x1x32xf32> to vector<16x16x32xf32>
      %75 = arith.mulf %73, %74 : vector<16x16x32xf32>
      %76 = vector.shape_cast %75 : vector<16x16x32xf32> to vector<16x512xf32>
      %77 = arith.truncf %76 : vector<16x512xf32> to vector<16x512xbf16>
      %78 = vector.extract_strided_slice %4 {offsets = [512, 0], sizes = [512, 128], strides = [1, 1]} : vector<1024x128xbf16> to vector<512x128xbf16>
      %cst_55 = arith.constant dense<0.000000e+00> : vector<16x128xf32>
      %79 = tpu.matmul %77, %78, %cst_55 {dimension_numbers = #tpu.dot_dimension_numbers<[1], [0], [0], [1], [0, 0, 1, 1], [], []>} : vector<16x512xbf16>, vector<512x128xbf16>, vector<16x128xf32> -> vector<16x128xf32>
      %80 = arith.addf %69, %79 : vector<16x128xf32>
      %81 = arith.truncf %80 : vector<16x128xf32> to vector<16x128xbf16>
      %cst_56 = arith.constant dense<0.000000e+00> : vector<16x128xf32>
      %82 = tpu.matmul %2, %81, %cst_56 {dimension_numbers = #tpu.dot_dimension_numbers<[1], [0], [0], [1], [0, 0, 1, 1], [], []>} : vector<16x16xbf16>, vector<16x128xbf16>, vector<16x128xf32> -> vector<16x128xf32>
      %83 = vector.broadcast %7 : vector<1x128xf32> to vector<16x128xf32>
      %84 = arith.addf %82, %83 : vector<16x128xf32>
      %cst_57 = arith.constant 0.000000e+00 : f32
      %85 = vector.broadcast %cst_57 : f32 to vector<16x128xf32>
      %86 = arith.maximumf %84, %85 : vector<16x128xf32>
      %87 = arith.truncf %86 : vector<16x128xf32> to vector<16x128xbf16>
      %cst_58 = arith.constant dense<0.000000e+00> : vector<16x384xf32>
      %88 = tpu.matmul %87, %9, %cst_58 {dimension_numbers = #tpu.dot_dimension_numbers<[1], [0], [0], [1], [0, 0, 1, 1], [], []>} : vector<16x128xbf16>, vector<128x384xbf16>, vector<16x384xf32> -> vector<16x384xf32>
      %cst_59 = arith.constant dense<0.000000e+00> : vector<16x384xf32>
      %89 = tpu.matmul %55, %11, %cst_59 {dimension_numbers = #tpu.dot_dimension_numbers<[1], [0], [0], [1], [0, 0, 1, 1], [], []>} : vector<16x128xbf16>, vector<128x384xbf16>, vector<16x384xf32> -> vector<16x384xf32>
      %90 = vector.extract_strided_slice %88 {offsets = [0, 0], sizes = [16, 128], strides = [1, 1]} : vector<16x384xf32> to vector<16x128xf32>
      %91 = vector.extract_strided_slice %89 {offsets = [0, 0], sizes = [16, 128], strides = [1, 1]} : vector<16x384xf32> to vector<16x128xf32>
      %92 = arith.addf %90, %91 : vector<16x128xf32>
      %93 = vector.broadcast %12 : vector<1x128xf32> to vector<16x128xf32>
      %94 = arith.addf %92, %93 : vector<16x128xf32>
      %95 = arith.negf %94 : vector<16x128xf32>
      %96 = math.exp %95 : vector<16x128xf32>
      %cst_60 = arith.constant 1.000000e+00 : f32
      %97 = vector.broadcast %cst_60 : f32 to vector<16x128xf32>
      %98 = arith.addf %97, %96 : vector<16x128xf32>
      %99 = arith.divf %97, %98 : vector<16x128xf32>
      %100 = vector.extract_strided_slice %88 {offsets = [0, 128], sizes = [16, 128], strides = [1, 1]} : vector<16x384xf32> to vector<16x128xf32>
      %101 = vector.extract_strided_slice %89 {offsets = [0, 128], sizes = [16, 128], strides = [1, 1]} : vector<16x384xf32> to vector<16x128xf32>
      %102 = arith.addf %100, %101 : vector<16x128xf32>
      %103 = vector.broadcast %13 : vector<1x128xf32> to vector<16x128xf32>
      %104 = arith.addf %102, %103 : vector<16x128xf32>
      %105 = arith.negf %104 : vector<16x128xf32>
      %106 = math.exp %105 : vector<16x128xf32>
      %cst_61 = arith.constant 1.000000e+00 : f32
      %107 = vector.broadcast %cst_61 : f32 to vector<16x128xf32>
      %108 = arith.addf %107, %106 : vector<16x128xf32>
      %109 = arith.divf %107, %108 : vector<16x128xf32>
      %110 = vector.extract_strided_slice %88 {offsets = [0, 256], sizes = [16, 128], strides = [1, 1]} : vector<16x384xf32> to vector<16x128xf32>
      %111 = vector.broadcast %14 : vector<1x128xf32> to vector<16x128xf32>
      %112 = arith.addf %110, %111 : vector<16x128xf32>
      %113 = vector.extract_strided_slice %89 {offsets = [0, 256], sizes = [16, 128], strides = [1, 1]} : vector<16x384xf32> to vector<16x128xf32>
      %114 = vector.broadcast %15 : vector<1x128xf32> to vector<16x128xf32>
      %115 = arith.addf %113, %114 : vector<16x128xf32>
      %116 = arith.mulf %99, %115 : vector<16x128xf32>
      %117 = arith.addf %112, %116 : vector<16x128xf32>
      %118 = math.tanh %117 : vector<16x128xf32>
      %cst_62 = arith.constant 1.000000e+00 : f32
      %119 = vector.broadcast %cst_62 : f32 to vector<16x128xf32>
      %120 = arith.subf %119, %109 : vector<16x128xf32>
      %121 = arith.mulf %120, %118 : vector<16x128xf32>
      %122 = arith.mulf %109, %arg24 : vector<16x128xf32>
      %123 = arith.addf %121, %122 : vector<16x128xf32>
      scf.yield %123 : vector<16x128xf32>
    }
    %c0_44 = arith.constant 0 : index
    %c0_45 = arith.constant 0 : index
    %43 = vector.load %arg21[%c0_44, %c0_45] : memref<16x128xf32, #tpu.memory_space<vmem>>, vector<16x128xf32>
    tpu.vector_store %arg21[%c0_44, %c0_45], %42 {strides = array<i32>} : memref<16x128xf32, #tpu.memory_space<vmem>>, vector<16x128xf32>,
    %44 = arith.truncf %42 : vector<16x128xf32> to vector<16x128xbf16>
    %cst_46 = arith.constant dense<0.000000e+00> : vector<16x128xf32>
    %45 = tpu.matmul %0, %44, %cst_46 {dimension_numbers = #tpu.dot_dimension_numbers<[1], [0], [0], [1], [0, 0, 1, 1], [], []>} : vector<16x16xbf16>, vector<16x128xbf16>, vector<16x128xf32> -> vector<16x128xf32>
    %cst_47 = arith.constant dense<0.000000e+00> : vector<16x128xf32>
    %46 = tpu.matmul %1, %44, %cst_47 {dimension_numbers = #tpu.dot_dimension_numbers<[1], [0], [0], [1], [0, 0, 1, 1], [], []>} : vector<16x16xbf16>, vector<16x128xbf16>, vector<16x128xf32> -> vector<16x128xf32>
    %47 = arith.truncf %45 : vector<16x128xf32> to vector<16x128xbf16>
    %cst_48 = arith.constant dense<0.000000e+00> : vector<16x128xf32>
    %48 = tpu.matmul %47, %17, %cst_48 {dimension_numbers = #tpu.dot_dimension_numbers<[1], [0], [0], [1], [0, 0, 1, 1], [], []>} : vector<16x128xbf16>, vector<128x128xbf16>, vector<16x128xf32> -> vector<16x128xf32>
    %49 = arith.truncf %46 : vector<16x128xf32> to vector<16x128xbf16>
    %cst_49 = arith.constant dense<0.000000e+00> : vector<16x128xf32>
    %50 = tpu.matmul %49, %19, %cst_49 {dimension_numbers = #tpu.dot_dimension_numbers<[1], [0], [0], [1], [0, 0, 1, 1], [], []>} : vector<16x128xbf16>, vector<128x128xbf16>, vector<16x128xf32> -> vector<16x128xf32>
    %51 = arith.addf %48, %50 : vector<16x128xf32>
    %52 = vector.broadcast %20 : vector<1x128xf32> to vector<16x128xf32>
    %53 = arith.addf %51, %52 : vector<16x128xf32>
    %c0_50 = arith.constant 0 : index
    %c0_51 = arith.constant 0 : index
    %54 = vector.load %arg22[%c0_50, %c0_51] : memref<16x128xf32, #tpu.memory_space<vmem>>, vector<16x128xf32>
    tpu.vector_store %arg22[%c0_50, %c0_51], %53 {strides = array<i32>} : memref<16x128xf32, #tpu.memory_space<vmem>>, vector<16x128xf32>,
    return
  }
}

</mosaic_0001>

<llo_original>
// kernel: tpu_custom_call.1
$region0: #{tpu_custom_call.1}
  #allocation0 [shape = 'u32[]', space=smem, size = 0x4, offset = 0x4, fixed_abs, tag = 'smem constant byte address 0x4 - core index']
  #allocation1 [shape = 'u32[144,128]{1,0:T(1,128)}', space=vmem, size = 0x12000, scoped, tag = 'internal scratch']
  %s0 = inlined_call_operand.vmem [shape: f32[16,16], index: 0, kind: input, shape index: {}]
  %s1 = inlined_call_operand.vmem [shape: f32[16,8], index: 1, kind: input, shape index: {}]
  %s2 = inlined_call_operand.hbm [shape: bf16[16,16], index: 2, kind: input, shape index: {}]
  %s3 = inlined_call_operand.hbm [shape: bf16[16,16], index: 3, kind: input, shape index: {}]
  %s4 = inlined_call_operand.hbm [shape: bf16[16,16], index: 4, kind: input, shape index: {}]
  %s5 = inlined_call_operand.vmem [shape: f32[16,128], index: 5, kind: input, shape index: {}]
  %s6 = inlined_call_operand.vmem [shape: f32[1,128], index: 6, kind: input, shape index: {}]
  %s7 = inlined_call_operand.vmem [shape: f32[8,32], index: 7, kind: input, shape index: {}]
  %s8 = inlined_call_operand.vmem [shape: f32[1,32], index: 8, kind: input, shape index: {}]
  %s9 = inlined_call_operand.hbm [shape: f32[1024,128], index: 9, kind: input, shape index: {}]
  %s10 = inlined_call_operand.hbm [shape: f32[128,128], index: 10, kind: input, shape index: {}]
  %s11 = inlined_call_operand.vmem [shape: f32[1,128], index: 11, kind: input, shape index: {}]
  %s12 = inlined_call_operand.hbm [shape: f32[128,384], index: 12, kind: input, shape index: {}]
  %s13 = inlined_call_operand.hbm [shape: f32[128,384], index: 13, kind: input, shape index: {}]
  %s14 = inlined_call_operand.vmem [shape: f32[1,128], index: 14, kind: input, shape index: {}]
  %s15 = inlined_call_operand.vmem [shape: f32[1,128], index: 15, kind: input, shape index: {}]
  %s16 = inlined_call_operand.vmem [shape: f32[1,128], index: 16, kind: input, shape index: {}]
  %s17 = inlined_call_operand.vmem [shape: f32[1,128], index: 17, kind: input, shape index: {}]
  %s18 = inlined_call_operand.hbm [shape: f32[128,128], index: 18, kind: input, shape index: {}]
  %s19 = inlined_call_operand.hbm [shape: f32[128,128], index: 19, kind: input, shape index: {}]
  %s20 = inlined_call_operand.vmem [shape: f32[1,128], index: 20, kind: input, shape index: {}]
  %s21 = inlined_call_operand.hbm [shape: f32[16,128], index: 21, kind: output, shape index: {0}]
  %s22 = inlined_call_operand.hbm [shape: f32[16,128], index: 22, kind: output, shape index: {1}]
  %23 = xla_tuple %s21, %s22
  %s24 = sld [smem:[#allocation0]]
  $region145: #{tpu_custom_call.1} parent=0
    _
  %s26 = ssub.s32 1, %s24
  %s27 = scalar_select 0, %s26, %s24
  $region1: #{tpu_custom_call.1} parent=0
    #allocation2 [shape = 'u8[4096]{0}', space=vmem, size = 0x1000, scoped, tag = 'input window, operand 2, single buffered']
    #allocation3 [shape = 's32[1]{0}', space=sflag, size = 0x4, scoped, tag = 'scoped memory for tpu_custom_call.1']
    #allocation4 [shape = 's32[1]{0}', space=sflag, size = 0x4, scoped, tag = 'scoped memory for tpu_custom_call.1']
    #allocation5 [shape = 'u8[4096]{0}', space=vmem, size = 0x1000, scoped, tag = 'input window, operand 3, single buffered']
    #allocation6 [shape = 's32[1]{0}', space=sflag, size = 0x4, scoped, tag = 'scoped memory for tpu_custom_call.1']
    #allocation7 [shape = 'u8[4096]{0}', space=vmem, size = 0x1000, scoped, tag = 'input window, operand 4, single buffered']
    #allocation8 [shape = 'u8[524288]{0}', space=vmem, size = 0x80000, scoped, tag = 'input window, operand 9, single buffered']
    #allocation9 [shape = 's32[1]{0}', space=sflag, size = 0x4, scoped, tag = 'scoped memory for tpu_custom_call.1']
    #allocation10 [shape = 'u8[65536]{0}', space=vmem, size = 0x10000, scoped, tag = 'input window, operand 10, single buffered']
    #allocation11 [shape = 'u8[196608]{0}', space=vmem, size = 0x30000, scoped, tag = 'input window, operand 12, single buffered']
    #allocation12 [shape = 's32[1]{0}', space=sflag, size = 0x4, scoped, tag = 'scoped memory for tpu_custom_call.1']
    #allocation13 [shape = 'u8[196608]{0}', space=vmem, size = 0x30000, scoped, tag = 'input window, operand 13, single buffered']
    #allocation14 [shape = 'u8[65536]{0}', space=vmem, size = 0x10000, scoped, tag = 'input window, operand 18, single buffered']
    #allocation15 [shape = 's32[1]{0}', space=sflag, size = 0x4, scoped, tag = 'scoped memory for tpu_custom_call.1']
    #allocation16 [shape = 'u8[65536]{0}', space=vmem, size = 0x10000, scoped, tag = 'input window, operand 19, single buffered']
    #allocation17 [shape = 'u8[8192]{0}', space=vmem, size = 0x2000, scoped, tag = 'output window, operand 0, single buffered']
    #allocation18 [shape = 'u8[8192]{0}', space=vmem, size = 0x2000, scoped, tag = 'output window, operand 1, single buffered']
    #allocation19 [shape = 's32[1]{0}', space=sflag, size = 0x4, scoped, tag = 'scoped memory for tpu_custom_call.1']
    %28 = vsyncpa [#allocation3], 0
    %29 = vsyncpa [#allocation6], 0
    %30 = vsyncpa [#allocation9], 0
    %31 = vsyncpa [#allocation12], 0
    %32 = vsyncpa [#allocation15], 0
    %33 = vsyncpa [#allocation4], 0
    %34 = vsyncpa [#allocation19], 0
    // Predicated region
    $region2: #{tpu_custom_call.1} parent=1 // pred_check
      _
    $region3: #{tpu_custom_call.1} parent=1 // pred_check_branch
      %36 = sbr.rel (0) target = $region5
    $region4: #{tpu_custom_call.1} parent=1 // pred_region
      _
    $region5: #{tpu_custom_call.1} parent=1 // pred_fallthru
      _
    // Predicated region
    $region6: #{tpu_custom_call.1} parent=1 // pred_check
      _
    $region7: #{tpu_custom_call.1} parent=1 // pred_check_branch
      %38 = sbr.rel (0) target = $region9
    $region8: #{tpu_custom_call.1} parent=1 // pred_region
      _
    $region9: #{tpu_custom_call.1} parent=1 // pred_fallthru
      _
    // Predicated region
    $region10: #{tpu_custom_call.1} parent=1 // pred_check
      _
    $region11: #{tpu_custom_call.1} parent=1 // pred_check_branch
      %40 = sbr.rel (0) target = $region13
    $region12: #{tpu_custom_call.1} parent=1 // pred_region
      %s42 = ssub.s32 128, 128
      %43 = vsyncadd [#allocation3], %s42
      %s44 = sshll.u32 [#allocation2], 4
      %s45 = int_to_ptr.vmem [resolvable:$true] %s44
      %50 = dma.hbm_to_vmem [thread:$0]  %s2, 128, %s45, [#allocation3], 64, 64, 4
    $region13: #{tpu_custom_call.1} parent=1 // pred_fallthru
      _
    // Predicated region
    $region14: #{tpu_custom_call.1} parent=1 // pred_check
      _
    $region15: #{tpu_custom_call.1} parent=1 // pred_check_branch
      %52 = sbr.rel (0) target = $region17
    $region16: #{tpu_custom_call.1} parent=1 // pred_region
      %s54 = ssub.s32 128, 128
      %55 = vsyncadd [#allocation6], %s54
      %s56 = sshll.u32 [#allocation5], 4
      %s57 = int_to_ptr.vmem [resolvable:$true] %s56
      %62 = dma.hbm_to_vmem [thread:$0]  %s3, 128, %s57, [#allocation6], 64, 64, 4
    $region17: #{tpu_custom_call.1} parent=1 // pred_fallthru
      _
    // Predicated region
    $region18: #{tpu_custom_call.1} parent=1 // pred_check
      _
    $region19: #{tpu_custom_call.1} parent=1 // pred_check_branch
      %64 = sbr.rel (0) target = $region21
    $region20: #{tpu_custom_call.1} parent=1 // pred_region
      %s66 = ssub.s32 128, 128
      %67 = vsyncadd [#allocation6], %s66
      %s68 = sshll.u32 [#allocation7], 4
      %s69 = int_to_ptr.vmem [resolvable:$true] %s68
      %74 = dma.hbm_to_vmem [thread:$0]  %s4, 128, %s69, [#allocation6], 64, 64, 4
    $region21: #{tpu_custom_call.1} parent=1 // pred_fallthru
      _
    // Predicated region
    $region22: #{tpu_custom_call.1} parent=1 // pred_check
      _
    $region23: #{tpu_custom_call.1} parent=1 // pred_check_branch
      %76 = sbr.rel (0) target = $region25
    $region24: #{tpu_custom_call.1} parent=1 // pred_region
      _
    $region25: #{tpu_custom_call.1} parent=1 // pred_fallthru
      _
    // Predicated region
    $region26: #{tpu_custom_call.1} parent=1 // pred_check
      _
    $region27: #{tpu_custom_call.1} parent=1 // pred_check_branch
      %78 = sbr.rel (0) target = $region29
    $region28: #{tpu_custom_call.1} parent=1 // pred_region
      _
    $region29: #{tpu_custom_call.1} parent=1 // pred_fallthru
      _
    // Predicated region
    $region30: #{tpu_custom_call.1} parent=1 // pred_check
      _
    $region31: #{tpu_custom_call.1} parent=1 // pred_check_branch
      %80 = sbr.rel (0) target = $region33
    $region32: #{tpu_custom_call.1} parent=1 // pred_region
      _
    $region33: #{tpu_custom_call.1} parent=1 // pred_fallthru
      _
    // Predicated region
    $region34: #{tpu_custom_call.1} parent=1 // pred_check
      _
    $region35: #{tpu_custom_call.1} parent=1 // pred_check_branch
      %82 = sbr.rel (0) target = $region37
    $region36: #{tpu_custom_call.1} parent=1 // pred_region
      _
    $region37: #{tpu_custom_call.1} parent=1 // pred_fallthru
      _
    // Predicated region
    $region38: #{tpu_custom_call.1} parent=1 // pred_check
      _
    $region39: #{tpu_custom_call.1} parent=1 // pred_check_branch
      %84 = sbr.rel (0) target = $region41
    $region40: #{tpu_custom_call.1} parent=1 // pred_region
      %s86 = ssub.s32 16384, 16384
      %87 = vsyncadd [#allocation9], %s86
      %s88 = sshll.u32 [#allocation8], 4
      %s89 = int_to_ptr.vmem [resolvable:$true] %s88
      %94 = dma.hbm_to_vmem [thread:$0]  %s9, 16384, %s89, [#allocation9], 128, 128, 8
    $region41: #{tpu_custom_call.1} parent=1 // pred_fallthru
      _
    // Predicated region
    $region42: #{tpu_custom_call.1} parent=1 // pred_check
      _
    $region43: #{tpu_custom_call.1} parent=1 // pred_check_branch
      %96 = sbr.rel (0) target = $region45
    $region44: #{tpu_custom_call.1} parent=1 // pred_region
      %s98 = ssub.s32 2048, 2048
      %99 = vsyncadd [#allocation9], %s98
      %s100 = sshll.u32 [#allocation10], 4
      %s101 = int_to_ptr.vmem [resolvable:$true] %s100
      %106 = dma.hbm_to_vmem [thread:$0]  %s10, 2048, %s101, [#allocation9], 128, 128, 8
    $region45: #{tpu_custom_call.1} parent=1 // pred_fallthru
      _
    // Predicated region
    $region46: #{tpu_custom_call.1} parent=1 // pred_check
      _
    $region47: #{tpu_custom_call.1} parent=1 // pred_check_branch
      %108 = sbr.rel (0) target = $region49
    $region48: #{tpu_custom_call.1} parent=1 // pred_region
      _
    $region49: #{tpu_custom_call.1} parent=1 // pred_fallthru
      _
    // Predicated region
    $region50: #{tpu_custom_call.1} parent=1 // pred_check
      _
    $region51: #{tpu_custom_call.1} parent=1 // pred_check_branch
      %110 = sbr.rel (0) target = $region53
    $region52: #{tpu_custom_call.1} parent=1 // pred_region
      %s112 = ssub.s32 6144, 6144
      %113 = vsyncadd [#allocation12], %s112
      %s114 = sshll.u32 [#allocation11], 4
      %s115 = int_to_ptr.vmem [resolvable:$true] %s114
      %120 = dma.hbm_to_vmem [thread:$0]  %s12, 6144, %s115, [#allocation12], 384, 384, 24
    $region53: #{tpu_custom_call.1} parent=1 // pred_fallthru
      _
    // Predicated region
    $region54: #{tpu_custom_call.1} parent=1 // pred_check
      _
    $region55: #{tpu_custom_call.1} parent=1 // pred_check_branch
      %122 = sbr.rel (0) target = $region57
    $region56: #{tpu_custom_call.1} parent=1 // pred_region
      %s124 = ssub.s32 6144, 6144
      %125 = vsyncadd [#allocation12], %s124
      %s126 = sshll.u32 [#allocation13], 4
      %s127 = int_to_ptr.vmem [resolvable:$true] %s126
      %132 = dma.hbm_to_vmem [thread:$0]  %s13, 6144, %s127, [#allocation12], 384, 384, 24
    $region57: #{tpu_custom_call.1} parent=1 // pred_fallthru
      _
    // Predicated region
    $region58: #{tpu_custom_call.1} parent=1 // pred_check
      _
    $region59: #{tpu_custom_call.1} parent=1 // pred_check_branch
      %134 = sbr.rel (0) target = $region61
    $region60: #{tpu_custom_call.1} parent=1 // pred_region
      _
    $region61: #{tpu_custom_call.1} parent=1 // pred_fallthru
      _
    // Predicated region
    $region62: #{tpu_custom_call.1} parent=1 // pred_check
      _
    $region63: #{tpu_custom_call.1} parent=1 // pred_check_branch
      %136 = sbr.rel (0) target = $region65
    $region64: #{tpu_custom_call.1} parent=1 // pred_region
      _
    $region65: #{tpu_custom_call.1} parent=1 // pred_fallthru
      _
    // Predicated region
    $region66: #{tpu_custom_call.1} parent=1 // pred_check
      _
    $region67: #{tpu_custom_call.1} parent=1 // pred_check_branch
      %138 = sbr.rel (0) target = $region69
    $region68: #{tpu_custom_call.1} parent=1 // pred_region
      _
    $region69: #{tpu_custom_call.1} parent=1 // pred_fallthru
      _
    // Predicated region
    $region70: #{tpu_custom_call.1} parent=1 // pred_check
      _
    $region71: #{tpu_custom_call.1} parent=1 // pred_check_branch
      %140 = sbr.rel (0) target = $region73
    $region72: #{tpu_custom_call.1} parent=1 // pred_region
      _
    $region73: #{tpu_custom_call.1} parent=1 // pred_fallthru
      _
    // Predicated region
    $region74: #{tpu_custom_call.1} parent=1 // pred_check
      _
    $region75: #{tpu_custom_call.1} parent=1 // pred_check_branch
      %142 = sbr.rel (0) target = $region77
    $region76: #{tpu_custom_call.1} parent=1 // pred_region
      %s144 = ssub.s32 2048, 2048
      %145 = vsyncadd [#allocation15], %s144
      %s146 = sshll.u32 [#allocation14], 4
      %s147 = int_to_ptr.vmem [resolvable:$true] %s146
      %152 = dma.hbm_to_vmem [thread:$0]  %s18, 2048, %s147, [#allocation15], 128, 128, 8
    $region77: #{tpu_custom_call.1} parent=1 // pred_fallthru
      _
    // Predicated region
    $region78: #{tpu_custom_call.1} parent=1 // pred_check
      _
    $region79: #{tpu_custom_call.1} parent=1 // pred_check_branch
      %154 = sbr.rel (0) target = $region81
    $region80: #{tpu_custom_call.1} parent=1 // pred_region
      %s156 = ssub.s32 2048, 2048
      %157 = vsyncadd [#allocation15], %s156
      %s158 = sshll.u32 [#allocation16], 4
      %s159 = int_to_ptr.vmem [resolvable:$true] %s158
      %164 = dma.hbm_to_vmem [thread:$0]  %s19, 2048, %s159, [#allocation15], 128, 128, 8
    $region81: #{tpu_custom_call.1} parent=1 // pred_fallthru
      _
    // Predicated region
    $region82: #{tpu_custom_call.1} parent=1 // pred_check
      _
    $region83: #{tpu_custom_call.1} parent=1 // pred_check_branch
      %166 = sbr.rel (0) target = $region85
    $region84: #{tpu_custom_call.1} parent=1 // pred_region
      _
    $region85: #{tpu_custom_call.1} parent=1 // pred_fallthru
      _
    // Predicated region
    $region86: #{tpu_custom_call.1} parent=1 // pred_check
      _
    $region87: #{tpu_custom_call.1} parent=1 // pred_check_branch
      %168 = sbr.rel (0) target = $region89
    $region88: #{tpu_custom_call.1} parent=1 // pred_region
      %169 = dma.done [#allocation3], 128
    $region89: #{tpu_custom_call.1} parent=1 // pred_fallthru
      _
    // Predicated region
    $region90: #{tpu_custom_call.1} parent=1 // pred_check
      _
    $region91: #{tpu_custom_call.1} parent=1 // pred_check_branch
      %171 = sbr.rel (0) target = $region93
    $region92: #{tpu_custom_call.1} parent=1 // pred_region
      %172 = dma.done [#allocation6], 128
    $region93: #{tpu_custom_call.1} parent=1 // pred_fallthru
      _
    // Predicated region
    $region94: #{tpu_custom_call.1} parent=1 // pred_check
      _
    $region95: #{tpu_custom_call.1} parent=1 // pred_check_branch
      %174 = sbr.rel (0) target = $region97
    $region96: #{tpu_custom_call.1} parent=1 // pred_region
      %175 = dma.done [#allocation6], 128
    $region97: #{tpu_custom_call.1} parent=1 // pred_fallthru
      _
    // Predicated region
    $region98: #{tpu_custom_call.1} parent=1 // pred_check
      _
    $region99: #{tpu_custom_call.1} parent=1 // pred_check_branch
      %177 = sbr.rel (0) target = $region101
    $region100: #{tpu_custom_call.1} parent=1 // pred_region
      %178 = dma.done [#allocation9], 16384
    $region101: #{tpu_custom_call.1} parent=1 // pred_fallthru
      _
    // Predicated region
    $region102: #{tpu_custom_call.1} parent=1 // pred_check
      _
    $region103: #{tpu_custom_call.1} parent=1 // pred_check_branch
      %180 = sbr.rel (0) target = $region105
    $region104: #{tpu_custom_call.1} parent=1 // pred_region
      %181 = dma.done [#allocation9], 2048
    $region105: #{tpu_custom_call.1} parent=1 // pred_fallthru
      _
    // Predicated region
    $region106: #{tpu_custom_call.1} parent=1 // pred_check
      _
    $region107: #{tpu_custom_call.1} parent=1 // pred_check_branch
      %183 = sbr.rel (0) target = $region109
    $region108: #{tpu_custom_call.1} parent=1 // pred_region
      %184 = dma.done [#allocation12], 6144
    $region109: #{tpu_custom_call.1} parent=1 // pred_fallthru
      _
    // Predicated region
    $region110: #{tpu_custom_call.1} parent=1 // pred_check
      _
    $region111: #{tpu_custom_call.1} parent=1 // pred_check_branch
      %186 = sbr.rel (0) target = $region113
    $region112: #{tpu_custom_call.1} parent=1 // pred_region
      %187 = dma.done [#allocation12], 6144
    $region113: #{tpu_custom_call.1} parent=1 // pred_fallthru
      _
    // Predicated region
    $region114: #{tpu_custom_call.1} parent=1 // pred_check
      _
    $region115: #{tpu_custom_call.1} parent=1 // pred_check_branch
      %189 = sbr.rel (0) target = $region117
    $region116: #{tpu_custom_call.1} parent=1 // pred_region
      %190 = dma.done [#allocation15], 2048
    $region117: #{tpu_custom_call.1} parent=1 // pred_fallthru
      _
    // Predicated region
    $region118: #{tpu_custom_call.1} parent=1 // pred_check
      _
    $region119: #{tpu_custom_call.1} parent=1 // pred_check_branch
      %192 = sbr.rel (0) target = $region121
    $region120: #{tpu_custom_call.1} parent=1 // pred_region
      %193 = dma.done [#allocation15], 2048
    $region121: #{tpu_custom_call.1} parent=1 // pred_fallthru
      _
    %v195 = vld [vmem:[#allocation2] sm:$0xf]
    %v196 = vld [vmem:[#allocation2 + $0x4] sm:$0xf]
    %v197 = vld [vmem:[#allocation5] sm:$0xf]
    %v198 = vld [vmem:[#allocation5 + $0x4] sm:$0xf]
    %v199 = vld [vmem:[#allocation7] sm:$0xf]
    %v200 = vld [vmem:[#allocation7 + $0x4] sm:$0xf]
    %v201 = vld [vmem:[#allocation8] sm:$0xff]
    %v202 = vld [vmem:[#allocation8 + $0x8] sm:$0xff]
    %v203 = vld [vmem:[#allocation8 + $0x10] sm:$0xff]
    %v204 = vld [vmem:[#allocation8 + $0x18] sm:$0xff]
    %v205 = vld [vmem:[#allocation8 + $0x20] sm:$0xff]
    %v206 = vld [vmem:[#allocation8 + $0x28] sm:$0xff]
    %v207 = vld [vmem:[#allocation8 + $0x30] sm:$0xff]
    %v208 = vld [vmem:[#allocation8 + $0x38] sm:$0xff]
    %v209 = vld [vmem:[#allocation8 + $0x40] sm:$0xff]
    %v210 = vld [vmem:[#allocation8 + $0x48] sm:$0xff]
    %v211 = vld [vmem:[#allocation8 + $0x50] sm:$0xff]
    %v212 = vld [vmem:[#allocation8 + $0x58] sm:$0xff]
    %v213 = vld [vmem:[#allocation8 + $0x60] sm:$0xff]
    %v214 = vld [vmem:[#allocation8 + $0x68] sm:$0xff]
    %v215 = vld [vmem:[#allocation8 + $0x70] sm:$0xff]
    %v216 = vld [vmem:[#allocation8 + $0x78] sm:$0xff]
    %v217 = vld [vmem:[#allocation8 + $0x80] sm:$0xff]
    %v218 = vld [vmem:[#allocation8 + $0x88] sm:$0xff]
    %v219 = vld [vmem:[#allocation8 + $0x90] sm:$0xff]
    %v220 = vld [vmem:[#allocation8 + $0x98] sm:$0xff]
    %v221 = vld [vmem:[#allocation8 + $0xa0] sm:$0xff]
    %v222 = vld [vmem:[#allocation8 + $0xa8] sm:$0xff]
    %v223 = vld [vmem:[#allocation8 + $0xb0] sm:$0xff]
    %v224 = vld [vmem:[#allocation8 + $0xb8] sm:$0xff]
    %v225 = vld [vmem:[#allocation8 + $0xc0] sm:$0xff]
    %v226 = vld [vmem:[#allocation8 + $0xc8] sm:$0xff]
    %v227 = vld [vmem:[#allocation8 + $0xd0] sm:$0xff]
    %v228 = vld [vmem:[#allocation8 + $0xd8] sm:$0xff]
    %v229 = vld [vmem:[#allocation8 + $0xe0] sm:$0xff]
    %v230 = vld [vmem:[#allocation8 + $0xe8] sm:$0xff]
    %v231 = vld [vmem:[#allocation8 + $0xf0] sm:$0xff]
    %v232 = vld [vmem:[#allocation8 + $0xf8] sm:$0xff]
    %v233 = vld [vmem:[#allocation8 + $0x100] sm:$0xff]
    %v234 = vld [vmem:[#allocation8 + $0x108] sm:$0xff]
    %v235 = vld [vmem:[#allocation8 + $0x110] sm:$0xff]
    %v236 = vld [vmem:[#allocation8 + $0x118] sm:$0xff]
    %v237 = vld [vmem:[#allocation8 + $0x120] sm:$0xff]
    %v238 = vld [vmem:[#allocation8 + $0x128] sm:$0xff]
    %v239 = vld [vmem:[#allocation8 + $0x130] sm:$0xff]
    %v240 = vld [vmem:[#allocation8 + $0x138] sm:$0xff]
    %v241 = vld [vmem:[#allocation8 + $0x140] sm:$0xff]
    %v242 = vld [vmem:[#allocation8 + $0x148] sm:$0xff]
    %v243 = vld [vmem:[#allocation8 + $0x150] sm:$0xff]
    %v244 = vld [vmem:[#allocation8 + $0x158] sm:$0xff]
    %v245 = vld [vmem:[#allocation8 + $0x160] sm:$0xff]
    %v246 = vld [vmem:[#allocation8 + $0x168] sm:$0xff]
    %v247 = vld [vmem:[#allocation8 + $0x170] sm:$0xff]
    %v248 = vld [vmem:[#allocation8 + $0x178] sm:$0xff]
    %v249 = vld [vmem:[#allocation8 + $0x180] sm:$0xff]
    %v250 = vld [vmem:[#allocation8 + $0x188] sm:$0xff]
    %v251 = vld [vmem:[#allocation8 + $0x190] sm:$0xff]
    %v252 = vld [vmem:[#allocation8 + $0x198] sm:$0xff]
    %v253 = vld [vmem:[#allocation8 + $0x1a0] sm:$0xff]
    %v254 = vld [vmem:[#allocation8 + $0x1a8] sm:$0xff]
    %v255 = vld [vmem:[#allocation8 + $0x1b0] sm:$0xff]
    %v256 = vld [vmem:[#allocation8 + $0x1b8] sm:$0xff]
    %v257 = vld [vmem:[#allocation8 + $0x1c0] sm:$0xff]
    %v258 = vld [vmem:[#allocation8 + $0x1c8] sm:$0xff]
    %v259 = vld [vmem:[#allocation8 + $0x1d0] sm:$0xff]
    %v260 = vld [vmem:[#allocation8 + $0x1d8] sm:$0xff]
    %v261 = vld [vmem:[#allocation8 + $0x1e0] sm:$0xff]
    %v262 = vld [vmem:[#allocation8 + $0x1e8] sm:$0xff]
    %v263 = vld [vmem:[#allocation8 + $0x1f0] sm:$0xff]
    %v264 = vld [vmem:[#allocation8 + $0x1f8] sm:$0xff]
    %v265 = vld [vmem:[#allocation8 + $0x200] sm:$0xff]
    %v266 = vld [vmem:[#allocation8 + $0x208] sm:$0xff]
    %v267 = vld [vmem:[#allocation8 + $0x210] sm:$0xff]
    %v268 = vld [vmem:[#allocation8 + $0x218] sm:$0xff]
    %v269 = vld [vmem:[#allocation8 + $0x220] sm:$0xff]
    %v270 = vld [vmem:[#allocation8 + $0x228] sm:$0xff]
    %v271 = vld [vmem:[#allocation8 + $0x230] sm:$0xff]
    %v272 = vld [vmem:[#allocation8 + $0x238] sm:$0xff]
    %v273 = vld [vmem:[#allocation8 + $0x240] sm:$0xff]
    %v274 = vld [vmem:[#allocation8 + $0x248] sm:$0xff]
    %v275 = vld [vmem:[#allocation8 + $0x250] sm:$0xff]
    %v276 = vld [vmem:[#allocation8 + $0x258] sm:$0xff]
    %v277 = vld [vmem:[#allocation8 + $0x260] sm:$0xff]
    %v278 = vld [vmem:[#allocation8 + $0x268] sm:$0xff]
    %v279 = vld [vmem:[#allocation8 + $0x270] sm:$0xff]
    %v280 = vld [vmem:[#allocation8 + $0x278] sm:$0xff]
    %v281 = vld [vmem:[#allocation8 + $0x280] sm:$0xff]
    %v282 = vld [vmem:[#allocation8 + $0x288] sm:$0xff]
    %v283 = vld [vmem:[#allocation8 + $0x290] sm:$0xff]
    %v284 = vld [vmem:[#allocation8 + $0x298] sm:$0xff]
    %v285 = vld [vmem:[#allocation8 + $0x2a0] sm:$0xff]
    %v286 = vld [vmem:[#allocation8 + $0x2a8] sm:$0xff]
    %v287 = vld [vmem:[#allocation8 + $0x2b0] sm:$0xff]
    %v288 = vld [vmem:[#allocation8 + $0x2b8] sm:$0xff]
    %v289 = vld [vmem:[#allocation8 + $0x2c0] sm:$0xff]
    %v290 = vld [vmem:[#allocation8 + $0x2c8] sm:$0xff]
    %v291 = vld [vmem:[#allocation8 + $0x2d0] sm:$0xff]
    %v292 = vld [vmem:[#allocation8 + $0x2d8] sm:$0xff]
    %v293 = vld [vmem:[#allocation8 + $0x2e0] sm:$0xff]
    %v294 = vld [vmem:[#allocation8 + $0x2e8] sm:$0xff]
    %v295 = vld [vmem:[#allocation8 + $0x2f0] sm:$0xff]
    %v296 = vld [vmem:[#allocation8 + $0x2f8] sm:$0xff]
    %v297 = vld [vmem:[#allocation8 + $0x300] sm:$0xff]
    %v298 = vld [vmem:[#allocation8 + $0x308] sm:$0xff]
    %v299 = vld [vmem:[#allocation8 + $0x310] sm:$0xff]
    %v300 = vld [vmem:[#allocation8 + $0x318] sm:$0xff]
    %v301 = vld [vmem:[#allocation8 + $0x320] sm:$0xff]
    %v302 = vld [vmem:[#allocation8 + $0x328] sm:$0xff]
    %v303 = vld [vmem:[#allocation8 + $0x330] sm:$0xff]
    %v304 = vld [vmem:[#allocation8 + $0x338] sm:$0xff]
    %v305 = vld [vmem:[#allocation8 + $0x340] sm:$0xff]
    %v306 = vld [vmem:[#allocation8 + $0x348] sm:$0xff]
    %v307 = vld [vmem:[#allocation8 + $0x350] sm:$0xff]
    %v308 = vld [vmem:[#allocation8 + $0x358] sm:$0xff]
    %v309 = vld [vmem:[#allocation8 + $0x360] sm:$0xff]
    %v310 = vld [vmem:[#allocation8 + $0x368] sm:$0xff]
    %v311 = vld [vmem:[#allocation8 + $0x370] sm:$0xff]
    %v312 = vld [vmem:[#allocation8 + $0x378] sm:$0xff]
    %v313 = vld [vmem:[#allocation8 + $0x380] sm:$0xff]
    %v314 = vld [vmem:[#allocation8 + $0x388] sm:$0xff]
    %v315 = vld [vmem:[#allocation8 + $0x390] sm:$0xff]
    %v316 = vld [vmem:[#allocation8 + $0x398] sm:$0xff]
    %v317 = vld [vmem:[#allocation8 + $0x3a0] sm:$0xff]
    %v318 = vld [vmem:[#allocation8 + $0x3a8] sm:$0xff]
    %v319 = vld [vmem:[#allocation8 + $0x3b0] sm:$0xff]
    %v320 = vld [vmem:[#allocation8 + $0x3b8] sm:$0xff]
    %v321 = vld [vmem:[#allocation8 + $0x3c0] sm:$0xff]
    %v322 = vld [vmem:[#allocation8 + $0x3c8] sm:$0xff]
    %v323 = vld [vmem:[#allocation8 + $0x3d0] sm:$0xff]
    %v324 = vld [vmem:[#allocation8 + $0x3d8] sm:$0xff]
    %v325 = vld [vmem:[#allocation8 + $0x3e0] sm:$0xff]
    %v326 = vld [vmem:[#allocation8 + $0x3e8] sm:$0xff]
    %v327 = vld [vmem:[#allocation8 + $0x3f0] sm:$0xff]
    %v328 = vld [vmem:[#allocation8 + $0x3f8] sm:$0xff]
    %v329 = vpack.c.bf16 %v202, %v201
    %v330 = vpack.c.bf16 %v204, %v203
    %v331 = vpack.c.bf16 %v206, %v205
    %v332 = vpack.c.bf16 %v208, %v207
    %v333 = vpack.c.bf16 %v210, %v209
    %v334 = vpack.c.bf16 %v212, %v211
    %v335 = vpack.c.bf16 %v214, %v213
    %v336 = vpack.c.bf16 %v216, %v215
    %v337 = vpack.c.bf16 %v218, %v217
    %v338 = vpack.c.bf16 %v220, %v219
    %v339 = vpack.c.bf16 %v222, %v221
    %v340 = vpack.c.bf16 %v224, %v223
    %v341 = vpack.c.bf16 %v226, %v225
    %v342 = vpack.c.bf16 %v228, %v227
    %v343 = vpack.c.bf16 %v230, %v229
    %v344 = vpack.c.bf16 %v232, %v231
    %v345 = vpack.c.bf16 %v234, %v233
    %v346 = vpack.c.bf16 %v236, %v235
    %v347 = vpack.c.bf16 %v238, %v237
    %v348 = vpack.c.bf16 %v240, %v239
    %v349 = vpack.c.bf16 %v242, %v241
    %v350 = vpack.c.bf16 %v244, %v243
    %v351 = vpack.c.bf16 %v246, %v245
    %v352 = vpack.c.bf16 %v248, %v247
    %v353 = vpack.c.bf16 %v250, %v249
    %v354 = vpack.c.bf16 %v252, %v251
    %v355 = vpack.c.bf16 %v254, %v253
    %v356 = vpack.c.bf16 %v256, %v255
    %v357 = vpack.c.bf16 %v258, %v257
    %v358 = vpack.c.bf16 %v260, %v259
    %v359 = vpack.c.bf16 %v262, %v261
    %v360 = vpack.c.bf16 %v264, %v263
    %v361 = vpack.c.bf16 %v266, %v265
    %v362 = vpack.c.bf16 %v268, %v267
    %v363 = vpack.c.bf16 %v270, %v269
    %v364 = vpack.c.bf16 %v272, %v271
    %v365 = vpack.c.bf16 %v274, %v273
    %v366 = vpack.c.bf16 %v276, %v275
    %v367 = vpack.c.bf16 %v278, %v277
    %v368 = vpack.c.bf16 %v280, %v279
    %v369 = vpack.c.bf16 %v282, %v281
    %v370 = vpack.c.bf16 %v284, %v283
    %v371 = vpack.c.bf16 %v286, %v285
    %v372 = vpack.c.bf16 %v288, %v287
    %v373 = vpack.c.bf16 %v290, %v289
    %v374 = vpack.c.bf16 %v292, %v291
    %v375 = vpack.c.bf16 %v294, %v293
    %v376 = vpack.c.bf16 %v296, %v295
    %v377 = vpack.c.bf16 %v298, %v297
    %v378 = vpack.c.bf16 %v300, %v299
    %v379 = vpack.c.bf16 %v302, %v301
    %v380 = vpack.c.bf16 %v304, %v303
    %v381 = vpack.c.bf16 %v306, %v305
    %v382 = vpack.c.bf16 %v308, %v307
    %v383 = vpack.c.bf16 %v310, %v309
    %v384 = vpack.c.bf16 %v312, %v311
    %v385 = vpack.c.bf16 %v314, %v313
    %v386 = vpack.c.bf16 %v316, %v315
    %v387 = vpack.c.bf16 %v318, %v317
    %v388 = vpack.c.bf16 %v320, %v319
    %v389 = vpack.c.bf16 %v322, %v321
    %v390 = vpack.c.bf16 %v324, %v323
    %v391 = vpack.c.bf16 %v326, %v325
    %v392 = vpack.c.bf16 %v328, %v327
    %v393 = vld [vmem:[#allocation10] sm:$0xff]
    %v394 = vld [vmem:[#allocation10 + $0x8] sm:$0xff]
    %v395 = vld [vmem:[#allocation10 + $0x10] sm:$0xff]
    %v396 = vld [vmem:[#allocation10 + $0x18] sm:$0xff]
    %v397 = vld [vmem:[#allocation10 + $0x20] sm:$0xff]
    %v398 = vld [vmem:[#allocation10 + $0x28] sm:$0xff]
    %v399 = vld [vmem:[#allocation10 + $0x30] sm:$0xff]
    %v400 = vld [vmem:[#allocation10 + $0x38] sm:$0xff]
    %v401 = vld [vmem:[#allocation10 + $0x40] sm:$0xff]
    %v402 = vld [vmem:[#allocation10 + $0x48] sm:$0xff]
    %v403 = vld [vmem:[#allocation10 + $0x50] sm:$0xff]
    %v404 = vld [vmem:[#allocation10 + $0x58] sm:$0xff]
    %v405 = vld [vmem:[#allocation10 + $0x60] sm:$0xff]
    %v406 = vld [vmem:[#allocation10 + $0x68] sm:$0xff]
    %v407 = vld [vmem:[#allocation10 + $0x70] sm:$0xff]
    %v408 = vld [vmem:[#allocation10 + $0x78] sm:$0xff]
    %v409 = vpack.c.bf16 %v394, %v393
    %v410 = vpack.c.bf16 %v396, %v395
    %v411 = vpack.c.bf16 %v398, %v397
    %v412 = vpack.c.bf16 %v400, %v399
    %v413 = vpack.c.bf16 %v402, %v401
    %v414 = vpack.c.bf16 %v404, %v403
    %v415 = vpack.c.bf16 %v406, %v405
    %v416 = vpack.c.bf16 %v408, %v407
    %v417 = vld [vmem:[%s11] sm:$0x1]
    %v418 = vld [vmem:[#allocation11] sm:$0xff]
    %v419 = vld [vmem:[#allocation11 + $0x8] sm:$0xff]
    %v420 = vld [vmem:[#allocation11 + $0x10] sm:$0xff]
    %v421 = vld [vmem:[#allocation11 + $0x18] sm:$0xff]
    %v422 = vld [vmem:[#allocation11 + $0x20] sm:$0xff]
    %v423 = vld [vmem:[#allocation11 + $0x28] sm:$0xff]
    %v424 = vld [vmem:[#allocation11 + $0x30] sm:$0xff]
    %v425 = vld [vmem:[#allocation11 + $0x38] sm:$0xff]
    %v426 = vld [vmem:[#allocation11 + $0x40] sm:$0xff]
    %v427 = vld [vmem:[#allocation11 + $0x48] sm:$0xff]
    %v428 = vld [vmem:[#allocation11 + $0x50] sm:$0xff]
    %v429 = vld [vmem:[#allocation11 + $0x58] sm:$0xff]
    %v430 = vld [vmem:[#allocation11 + $0x60] sm:$0xff]
    %v431 = vld [vmem:[#allocation11 + $0x68] sm:$0xff]
    %v432 = vld [vmem:[#allocation11 + $0x70] sm:$0xff]
    %v433 = vld [vmem:[#allocation11 + $0x78] sm:$0xff]
    %v434 = vld [vmem:[#allocation11 + $0x80] sm:$0xff]
    %v435 = vld [vmem:[#allocation11 + $0x88] sm:$0xff]
    %v436 = vld [vmem:[#allocation11 + $0x90] sm:$0xff]
    %v437 = vld [vmem:[#allocation11 + $0x98] sm:$0xff]
    %v438 = vld [vmem:[#allocation11 + $0xa0] sm:$0xff]
    %v439 = vld [vmem:[#allocation11 + $0xa8] sm:$0xff]
    %v440 = vld [vmem:[#allocation11 + $0xb0] sm:$0xff]
    %v441 = vld [vmem:[#allocation11 + $0xb8] sm:$0xff]
    %v442 = vld [vmem:[#allocation11 + $0xc0] sm:$0xff]
    %v443 = vld [vmem:[#allocation11 + $0xc8] sm:$0xff]
    %v444 = vld [vmem:[#allocation11 + $0xd0] sm:$0xff]
    %v445 = vld [vmem:[#allocation11 + $0xd8] sm:$0xff]
    %v446 = vld [vmem:[#allocation11 + $0xe0] sm:$0xff]
    %v447 = vld [vmem:[#allocation11 + $0xe8] sm:$0xff]
    %v448 = vld [vmem:[#allocation11 + $0xf0] sm:$0xff]
    %v449 = vld [vmem:[#allocation11 + $0xf8] sm:$0xff]
    %v450 = vld [vmem:[#allocation11 + $0x100] sm:$0xff]
    %v451 = vld [vmem:[#allocation11 + $0x108] sm:$0xff]
    %v452 = vld [vmem:[#allocation11 + $0x110] sm:$0xff]
    %v453 = vld [vmem:[#allocation11 + $0x118] sm:$0xff]
    %v454 = vld [vmem:[#allocation11 + $0x120] sm:$0xff]
    %v455 = vld [vmem:[#allocation11 + $0x128] sm:$0xff]
    %v456 = vld [vmem:[#allocation11 + $0x130] sm:$0xff]
    %v457 = vld [vmem:[#allocation11 + $0x138] sm:$0xff]
    %v458 = vld [vmem:[#allocation11 + $0x140] sm:$0xff]
    %v459 = vld [vmem:[#allocation11 + $0x148] sm:$0xff]
    %v460 = vld [vmem:[#allocation11 + $0x150] sm:$0xff]
    %v461 = vld [vmem:[#allocation11 + $0x158] sm:$0xff]
    %v462 = vld [vmem:[#allocation11 + $0x160] sm:$0xff]
    %v463 = vld [vmem:[#allocation11 + $0x168] sm:$0xff]
    %v464 = vld [vmem:[#allocation11 + $0x170] sm:$0xff]
    %v465 = vld [vmem:[#allocation11 + $0x178] sm:$0xff]
    %v466 = vpack.c.bf16 %v421, %v418
    %v467 = vpack.c.bf16 %v422, %v419
    %v468 = vpack.c.bf16 %v423, %v420
    %v469 = vpack.c.bf16 %v427, %v424
    %v470 = vpack.c.bf16 %v428, %v425
    %v471 = vpack.c.bf16 %v429, %v426
    %v472 = vpack.c.bf16 %v433, %v430
    %v473 = vpack.c.bf16 %v434, %v431
    %v474 = vpack.c.bf16 %v435, %v432
    %v475 = vpack.c.bf16 %v439, %v436
    %v476 = vpack.c.bf16 %v440, %v437
    %v477 = vpack.c.bf16 %v441, %v438
    %v478 = vpack.c.bf16 %v445, %v442
    %v479 = vpack.c.bf16 %v446, %v443
    %v480 = vpack.c.bf16 %v447, %v444
    %v481 = vpack.c.bf16 %v451, %v448
    %v482 = vpack.c.bf16 %v452, %v449
    %v483 = vpack.c.bf16 %v453, %v450
    %v484 = vpack.c.bf16 %v457, %v454
    %v485 = vpack.c.bf16 %v458, %v455
    %v486 = vpack.c.bf16 %v459, %v456
    %v487 = vpack.c.bf16 %v463, %v460
    %v488 = vpack.c.bf16 %v464, %v461
    %v489 = vpack.c.bf16 %v465, %v462
    %v490 = vld [vmem:[#allocation13] sm:$0xff]
    %v491 = vld [vmem:[#allocation13 + $0x8] sm:$0xff]
    %v492 = vld [vmem:[#allocation13 + $0x10] sm:$0xff]
    %v493 = vld [vmem:[#allocation13 + $0x18] sm:$0xff]
    %v494 = vld [vmem:[#allocation13 + $0x20] sm:$0xff]
    %v495 = vld [vmem:[#allocation13 + $0x28] sm:$0xff]
    %v496 = vld [vmem:[#allocation13 + $0x30] sm:$0xff]
    %v497 = vld [vmem:[#allocation13 + $0x38] sm:$0xff]
    %v498 = vld [vmem:[#allocation13 + $0x40] sm:$0xff]
    %v499 = vld [vmem:[#allocation13 + $0x48] sm:$0xff]
    %v500 = vld [vmem:[#allocation13 + $0x50] sm:$0xff]
    %v501 = vld [vmem:[#allocation13 + $0x58] sm:$0xff]
    %v502 = vld [vmem:[#allocation13 + $0x60] sm:$0xff]
    %v503 = vld [vmem:[#allocation13 + $0x68] sm:$0xff]
    %v504 = vld [vmem:[#allocation13 + $0x70] sm:$0xff]
    %v505 = vld [vmem:[#allocation13 + $0x78] sm:$0xff]
    %v506 = vld [vmem:[#allocation13 + $0x80] sm:$0xff]
    %v507 = vld [vmem:[#allocation13 + $0x88] sm:$0xff]
    %v508 = vld [vmem:[#allocation13 + $0x90] sm:$0xff]
    %v509 = vld [vmem:[#allocation13 + $0x98] sm:$0xff]
    %v510 = vld [vmem:[#allocation13 + $0xa0] sm:$0xff]
    %v511 = vld [vmem:[#allocation13 + $0xa8] sm:$0xff]
    %v512 = vld [vmem:[#allocation13 + $0xb0] sm:$0xff]
    %v513 = vld [vmem:[#allocation13 + $0xb8] sm:$0xff]
    %v514 = vld [vmem:[#allocation13 + $0xc0] sm:$0xff]
    %v515 = vld [vmem:[#allocation13 + $0xc8] sm:$0xff]
    %v516 = vld [vmem:[#allocation13 + $0xd0] sm:$0xff]
    %v517 = vld [vmem:[#allocation13 + $0xd8] sm:$0xff]
    %v518 = vld [vmem:[#allocation13 + $0xe0] sm:$0xff]
    %v519 = vld [vmem:[#allocation13 + $0xe8] sm:$0xff]
    %v520 = vld [vmem:[#allocation13 + $0xf0] sm:$0xff]
    %v521 = vld [vmem:[#allocation13 + $0xf8] sm:$0xff]
    %v522 = vld [vmem:[#allocation13 + $0x100] sm:$0xff]
    %v523 = vld [vmem:[#allocation13 + $0x108] sm:$0xff]
    %v524 = vld [vmem:[#allocation13 + $0x110] sm:$0xff]
    %v525 = vld [vmem:[#allocation13 + $0x118] sm:$0xff]
    %v526 = vld [vmem:[#allocation13 + $0x120] sm:$0xff]
    %v527 = vld [vmem:[#allocation13 + $0x128] sm:$0xff]
    %v528 = vld [vmem:[#allocation13 + $0x130] sm:$0xff]
    %v529 = vld [vmem:[#allocation13 + $0x138] sm:$0xff]
    %v530 = vld [vmem:[#allocation13 + $0x140] sm:$0xff]
    %v531 = vld [vmem:[#allocation13 + $0x148] sm:$0xff]
    %v532 = vld [vmem:[#allocation13 + $0x150] sm:$0xff]
    %v533 = vld [vmem:[#allocation13 + $0x158] sm:$0xff]
    %v534 = vld [vmem:[#allocation13 + $0x160] sm:$0xff]
    %v535 = vld [vmem:[#allocation13 + $0x168] sm:$0xff]
    %v536 = vld [vmem:[#allocation13 + $0x170] sm:$0xff]
    %v537 = vld [vmem:[#allocation13 + $0x178] sm:$0xff]
    %v538 = vpack.c.bf16 %v493, %v490
    %v539 = vpack.c.bf16 %v494, %v491
    %v540 = vpack.c.bf16 %v495, %v492
    %v541 = vpack.c.bf16 %v499, %v496
    %v542 = vpack.c.bf16 %v500, %v497
    %v543 = vpack.c.bf16 %v501, %v498
    %v544 = vpack.c.bf16 %v505, %v502
    %v545 = vpack.c.bf16 %v506, %v503
    %v546 = vpack.c.bf16 %v507, %v504
    %v547 = vpack.c.bf16 %v511, %v508
    %v548 = vpack.c.bf16 %v512, %v509
    %v549 = vpack.c.bf16 %v513, %v510
    %v550 = vpack.c.bf16 %v517, %v514
    %v551 = vpack.c.bf16 %v518, %v515
    %v552 = vpack.c.bf16 %v519, %v516
    %v553 = vpack.c.bf16 %v523, %v520
    %v554 = vpack.c.bf16 %v524, %v521
    %v555 = vpack.c.bf16 %v525, %v522
    %v556 = vpack.c.bf16 %v529, %v526
    %v557 = vpack.c.bf16 %v530, %v527
    %v558 = vpack.c.bf16 %v531, %v528
    %v559 = vpack.c.bf16 %v535, %v532
    %v560 = vpack.c.bf16 %v536, %v533
    %v561 = vpack.c.bf16 %v537, %v534
    %v562 = vld [vmem:[%s14] sm:$0x1]
    %v563 = vld [vmem:[%s15] sm:$0x1]
    %v564 = vld [vmem:[%s16] sm:$0x1]
    %v565 = vld [vmem:[%s17] sm:$0x1]
    %v566 = vld [vmem:[#allocation14] sm:$0xff]
    %v567 = vld [vmem:[#allocation14 + $0x8] sm:$0xff]
    %v568 = vld [vmem:[#allocation14 + $0x10] sm:$0xff]
    %v569 = vld [vmem:[#allocation14 + $0x18] sm:$0xff]
    %v570 = vld [vmem:[#allocation14 + $0x20] sm:$0xff]
    %v571 = vld [vmem:[#allocation14 + $0x28] sm:$0xff]
    %v572 = vld [vmem:[#allocation14 + $0x30] sm:$0xff]
    %v573 = vld [vmem:[#allocation14 + $0x38] sm:$0xff]
    %v574 = vld [vmem:[#allocation14 + $0x40] sm:$0xff]
    %v575 = vld [vmem:[#allocation14 + $0x48] sm:$0xff]
    %v576 = vld [vmem:[#allocation14 + $0x50] sm:$0xff]
    %v577 = vld [vmem:[#allocation14 + $0x58] sm:$0xff]
    %v578 = vld [vmem:[#allocation14 + $0x60] sm:$0xff]
    %v579 = vld [vmem:[#allocation14 + $0x68] sm:$0xff]
    %v580 = vld [vmem:[#allocation14 + $0x70] sm:$0xff]
    %v581 = vld [vmem:[#allocation14 + $0x78] sm:$0xff]
    %v582 = vpack.c.bf16 %v567, %v566
    %v583 = vpack.c.bf16 %v569, %v568
    %v584 = vpack.c.bf16 %v571, %v570
    %v585 = vpack.c.bf16 %v573, %v572
    %v586 = vpack.c.bf16 %v575, %v574
    %v587 = vpack.c.bf16 %v577, %v576
    %v588 = vpack.c.bf16 %v579, %v578
    %v589 = vpack.c.bf16 %v581, %v580
    %v590 = vld [vmem:[#allocation16] sm:$0xff]
    %v591 = vld [vmem:[#allocation16 + $0x8] sm:$0xff]
    %v592 = vld [vmem:[#allocation16 + $0x10] sm:$0xff]
    %v593 = vld [vmem:[#allocation16 + $0x18] sm:$0xff]
    %v594 = vld [vmem:[#allocation16 + $0x20] sm:$0xff]
    %v595 = vld [vmem:[#allocation16 + $0x28] sm:$0xff]
    %v596 = vld [vmem:[#allocation16 + $0x30] sm:$0xff]
    %v597 = vld [vmem:[#allocation16 + $0x38] sm:$0xff]
    %v598 = vld [vmem:[#allocation16 + $0x40] sm:$0xff]
    %v599 = vld [vmem:[#allocation16 + $0x48] sm:$0xff]
    %v600 = vld [vmem:[#allocation16 + $0x50] sm:$0xff]
    %v601 = vld [vmem:[#allocation16 + $0x58] sm:$0xff]
    %v602 = vld [vmem:[#allocation16 + $0x60] sm:$0xff]
    %v603 = vld [vmem:[#allocation16 + $0x68] sm:$0xff]
    %v604 = vld [vmem:[#allocation16 + $0x70] sm:$0xff]
    %v605 = vld [vmem:[#allocation16 + $0x78] sm:$0xff]
    %v606 = vpack.c.bf16 %v591, %v590
    %v607 = vpack.c.bf16 %v593, %v592
    %v608 = vpack.c.bf16 %v595, %v594
    %v609 = vpack.c.bf16 %v597, %v596
    %v610 = vpack.c.bf16 %v599, %v598
    %v611 = vpack.c.bf16 %v601, %v600
    %v612 = vpack.c.bf16 %v603, %v602
    %v613 = vpack.c.bf16 %v605, %v604
    %v614 = vld [vmem:[%s20] sm:$0x1]
    %v615 = vld [vmem:[%s0] sm:$0xff]
    %v616 = vld [vmem:[%s0 + $0x8] sm:$0xff]
    %v617 = vld [vmem:[%s5] sm:$0xff]
    %v618 = vld [vmem:[%s5 + $0x8] sm:$0xff]
    %v619 = vpack.c.bf16 %v616, %v615
    %v620 = vpack.c.bf16 %v618, %v617
    %v621 = vld [vmem:[%s6] sm:$0x1]
    %v623 = vlaneseq
    %v624 = vshrl.u32 %v623, 7
    %v625 = vsub.s32 0, %v624
    %v626 = vrot.slane %v621, %v625
    %vm628 = vcmask 130048
    %v630 = vsel %vm628, %v619, 0
    %632 = vmatprep.subr.bf16.mxu0 0
    %633 = vmatpush1.bf16.msra.mxu0 %v620
    %634 = vmatprep.subr.bf16.mxu0 0
    %635 = vmatpush1.bf16.msra.mxu0 0
    %636 = vmatprep.subr.bf16.mxu0 0
    %637 = vmatpush1.bf16.msra.mxu0 0
    %638 = vmatprep.subr.bf16.mxu0 0
    %639 = vmatpush1.bf16.msra.mxu0 0
    %640 = vmatprep.subr.bf16.mxu0 0
    %641 = vmatpush1.bf16.msra.mxu0 0
    %642 = vmatprep.subr.bf16.mxu0 0
    %643 = vmatpush1.bf16.msra.mxu0 0
    %644 = vmatprep.subr.bf16.mxu0 0
    %645 = vmatpush1.bf16.msra.mxu0 0
    %646 = vmatprep.subr.bf16.mxu0 0
    %647 = vmatpush1.bf16.msra.mxu0 0
    %648 = vmatprep.subr.bf16.mxu0 0
    %649 = vmatpush1.bf16.msra.mxu0 0
    %650 = vmatprep.subr.bf16.mxu0 0
    %651 = vmatpush1.bf16.msra.mxu0 0
    %652 = vmatprep.subr.bf16.mxu0 0
    %653 = vmatpush1.bf16.msra.mxu0 0
    %654 = vmatprep.subr.bf16.mxu0 0
    %655 = vmatpush1.bf16.msra.mxu0 0
    %656 = vmatprep.subr.bf16.mxu0 0
    %657 = vmatpush1.bf16.msra.mxu0 0
    %658 = vmatprep.subr.bf16.mxu0 0
    %659 = vmatpush1.bf16.msra.mxu0 0
    %660 = vmatprep.subr.bf16.mxu0 0
    %661 = vmatpush1.bf16.msra.mxu0 0
    %662 = vmatprep.subr.bf16.mxu0 0
    %663 = vmatpush1.bf16.msra.mxu0 0
    %664 = vmatprep.mubr.bf16.mxu0 0
    %665 = vmatmul.mubr.bf16.gmra.mrb[0].mxu0 %v630
    %v666 = vpop.f32.mrb[0].mxu0
    %v667 = vadd.f32 %v626, %v666
    %v668 = vpop.f32.mrb[0].mxu0
    %v669 = vpop.f32.mrb[0].mxu0
    %v670 = vadd.f32 %v626, %v669
    %v671 = vpop.f32.mrb[0].mxu0
    %672 = vdwg.mxu0
    %v673 = vmax.f32 %v667, 0.0
    %v674 = vmax.f32 %v670, 0.0
    %v675 = vld [vmem:[%s1] sm:$0xff]
    %v676 = vld [vmem:[%s1 + $0x8] sm:$0xff]
    %v677 = vld [vmem:[%s7] sm:$0xff]
    %v678 = vpack.c.bf16 %v676, %v675
    %v679 = vpack.c.bf16 %v677, %v677
    %v680 = vld [vmem:[%s8] sm:$0x1]
    %v682 = vlaneseq
    %v683 = vshrl.u32 %v682, 7
    %v684 = vsub.s32 0, %v683
    %v685 = vrot.slane %v680, %v684
    %vm687 = vcmask 64512
    %v689 = vsel %vm687, %v678, 0
    %vm691 = vcmask 1043456
    %v693 = vsel %vm691, %v679, 0
    %695 = vmatprep.subr.bf16.mxu0 0
    %696 = vmatpush1.bf16.msra.mxu0 %v693
    %697 = vmatprep.subr.bf16.mxu0 0
    %698 = vmatpush1.bf16.msra.mxu0 0
    %699 = vmatprep.subr.bf16.mxu0 0
    %700 = vmatpush1.bf16.msra.mxu0 0
    %701 = vmatprep.subr.bf16.mxu0 0
    %702 = vmatpush1.bf16.msra.mxu0 0
    %703 = vmatprep.subr.bf16.mxu0 0
    %704 = vmatpush1.bf16.msra.mxu0 0
    %705 = vmatprep.subr.bf16.mxu0 0
    %706 = vmatpush1.bf16.msra.mxu0 0
    %707 = vmatprep.subr.bf16.mxu0 0
    %708 = vmatpush1.bf16.msra.mxu0 0
    %709 = vmatprep.subr.bf16.mxu0 0
    %710 = vmatpush1.bf16.msra.mxu0 0
    %711 = vmatprep.subr.bf16.mxu0 0
    %712 = vmatpush1.bf16.msra.mxu0 0
    %713 = vmatprep.subr.bf16.mxu0 0
    %714 = vmatpush1.bf16.msra.mxu0 0
    %715 = vmatprep.subr.bf16.mxu0 0
    %716 = vmatpush1.bf16.msra.mxu0 0
    %717 = vmatprep.subr.bf16.mxu0 0
    %718 = vmatpush1.bf16.msra.mxu0 0
    %719 = vmatprep.subr.bf16.mxu0 0
    %720 = vmatpush1.bf16.msra.mxu0 0
    %721 = vmatprep.subr.bf16.mxu0 0
    %722 = vmatpush1.bf16.msra.mxu0 0
    %723 = vmatprep.subr.bf16.mxu0 0
    %724 = vmatpush1.bf16.msra.mxu0 0
    %725 = vmatprep.subr.bf16.mxu0 0
    %726 = vmatpush1.bf16.msra.mxu0 0
    %727 = vmatprep.mubr.bf16.mxu0 0
    %728 = vmatmul.mubr.bf16.gmra.mrb[0].mxu0 %v689
    %v729 = vpop.f32.mrb[0].mxu0
    %v730 = vadd.f32 %v685, %v729
    %v731 = vpop.f32.mrb[0].mxu0
    %v732 = vpop.f32.mrb[0].mxu0
    %v733 = vadd.f32 %v685, %v732
    %v734 = vpop.f32.mrb[0].mxu0
    %735 = vdwg.mxu0
    %v736 = vmax.f32 %v730, 0.0
    %v737 = vmax.f32 %v733, 0.0
    loop: start=0, step=1, limit=3
    $region122: #{tpu_custom_call.1} parent=1 // loop_pre_header
      _
    $region123: #{tpu_custom_call.1} parent=1 // loop_header
      %s739 = sphi 0, %s743
      %p740 = scmp.ge.s32.totalorder %s739, 3
      %v744 = vphi %v673, %v3190
      %v745 = vphi %v674, %v3191
    $region124: #{tpu_custom_call.1} parent=1 // loop_header_branch
      %742 = sbr.rel (%p740) target = $region128
    $region125: #{tpu_custom_call.1} parent=1 // loop_body
      %v746 = vpack.c.bf16 %v745, %v744
      %v749 = vunpack.c.l.b16 %v195
      %v750 = vunpack.c.l.b16 %v196
      %v751 = vpack.c.b16 %v750, %v749
      %v753 = vsel %vm628, %v751, 0
      %755 = vmatprep.subr.bf16.mxu0 0
      %756 = vmatpush1.bf16.msra.mxu0 %v746
      %757 = vmatprep.subr.bf16.mxu0 0
      %758 = vmatpush1.bf16.msra.mxu0 0
      %759 = vmatprep.subr.bf16.mxu0 0
      %760 = vmatpush1.bf16.msra.mxu0 0
      %761 = vmatprep.subr.bf16.mxu0 0
      %762 = vmatpush1.bf16.msra.mxu0 0
      %763 = vmatprep.subr.bf16.mxu0 0
      %764 = vmatpush1.bf16.msra.mxu0 0
      %765 = vmatprep.subr.bf16.mxu0 0
      %766 = vmatpush1.bf16.msra.mxu0 0
      %767 = vmatprep.subr.bf16.mxu0 0
      %768 = vmatpush1.bf16.msra.mxu0 0
      %769 = vmatprep.subr.bf16.mxu0 0
      %770 = vmatpush1.bf16.msra.mxu0 0
      %771 = vmatprep.subr.bf16.mxu0 0
      %772 = vmatpush1.bf16.msra.mxu0 0
      %773 = vmatprep.subr.bf16.mxu0 0
      %774 = vmatpush1.bf16.msra.mxu0 0
      %775 = vmatprep.subr.bf16.mxu0 0
      %776 = vmatpush1.bf16.msra.mxu0 0
      %777 = vmatprep.subr.bf16.mxu0 0
      %778 = vmatpush1.bf16.msra.mxu0 0
      %779 = vmatprep.subr.bf16.mxu0 0
      %780 = vmatpush1.bf16.msra.mxu0 0
      %781 = vmatprep.subr.bf16.mxu0 0
      %782 = vmatpush1.bf16.msra.mxu0 0
      %783 = vmatprep.subr.bf16.mxu0 0
      %784 = vmatpush1.bf16.msra.mxu0 0
      %785 = vmatprep.subr.bf16.mxu0 0
      %786 = vmatpush1.bf16.msra.mxu0 0
      %787 = vmatprep.mubr.bf16.mxu0 0
      %788 = vmatmul.mubr.bf16.gmra.mrb[0].mxu0 %v753
      %v789 = vpop.f32.mrb[0].mxu0
      %v790 = vadd.f32 0.0, %v789
      %v791 = vpop.f32.mrb[0].mxu0
      %v792 = vpop.f32.mrb[0].mxu0
      %v793 = vadd.f32 0.0, %v792
      %v794 = vpop.f32.mrb[0].mxu0
      %795 = vdwg.mxu0
      %v796 = vpack.c.bf16 %v793, %v790
      %v797 = vlaneseq
      %v798 = vshrl.u32 %v797, 7
      %v799 = vsub.s32 0, %v798
      %v800 = vrot.slane %v790, %v799
      %802 = vbcast.lane.b32.xlu0 %v800, 256
      %v803 = vpop.permute.xlu0 %802
      %s805 = sor.u32 256, 8
      %806 = vbcast.lane.b32.xlu0 %v800, %s805
      %v807 = vpop.permute.xlu0 %806
      %v808 = vlaneseq
      %v809 = vshrl.u32 %v808, 7
      %v810 = vsub.s32 1, %v809
      %v811 = vrot.slane %v790, %v810
      %813 = vbcast.lane.b32.xlu0 %v811, 256
      %v814 = vpop.permute.xlu0 %813
      %s816 = sor.u32 256, 8
      %817 = vbcast.lane.b32.xlu0 %v811, %s816
      %v818 = vpop.permute.xlu0 %817
      %v819 = vlaneseq
      %v820 = vshrl.u32 %v819, 7
      %v821 = vsub.s32 2, %v820
      %v822 = vrot.slane %v790, %v821
      %824 = vbcast.lane.b32.xlu0 %v822, 256
      %v825 = vpop.permute.xlu0 %824
      %s827 = sor.u32 256, 8
      %828 = vbcast.lane.b32.xlu0 %v822, %s827
      %v829 = vpop.permute.xlu0 %828
      %v830 = vlaneseq
      %v831 = vshrl.u32 %v830, 7
      %v832 = vsub.s32 3, %v831
      %v833 = vrot.slane %v790, %v832
      %835 = vbcast.lane.b32.xlu0 %v833, 256
      %v836 = vpop.permute.xlu0 %835
      %s838 = sor.u32 256, 8
      %839 = vbcast.lane.b32.xlu0 %v833, %s838
      %v840 = vpop.permute.xlu0 %839
      %v841 = vlaneseq
      %v842 = vshrl.u32 %v841, 7
      %v843 = vsub.s32 4, %v842
      %v844 = vrot.slane %v790, %v843
      %846 = vbcast.lane.b32.xlu0 %v844, 256
      %v847 = vpop.permute.xlu0 %846
      %s849 = sor.u32 256, 8
      %850 = vbcast.lane.b32.xlu0 %v844, %s849
      %v851 = vpop.permute.xlu0 %850
      %v852 = vlaneseq
      %v853 = vshrl.u32 %v852, 7
      %v854 = vsub.s32 5, %v853
      %v855 = vrot.slane %v790, %v854
      %857 = vbcast.lane.b32.xlu0 %v855, 256
      %v858 = vpop.permute.xlu0 %857
      %s860 = sor.u32 256, 8
      %861 = vbcast.lane.b32.xlu0 %v855, %s860
      %v862 = vpop.permute.xlu0 %861
      %v863 = vlaneseq
      %v864 = vshrl.u32 %v863, 7
      %v865 = vsub.s32 6, %v864
      %v866 = vrot.slane %v790, %v865
      %868 = vbcast.lane.b32.xlu0 %v866, 256
      %v869 = vpop.permute.xlu0 %868
      %s871 = sor.u32 256, 8
      %872 = vbcast.lane.b32.xlu0 %v866, %s871
      %v873 = vpop.permute.xlu0 %872
      %v874 = vlaneseq
      %v875 = vshrl.u32 %v874, 7
      %v876 = vsub.s32 7, %v875
      %v877 = vrot.slane %v790, %v876
      %879 = vbcast.lane.b32.xlu0 %v877, 256
      %v880 = vpop.permute.xlu0 %879
      %s882 = sor.u32 256, 8
      %883 = vbcast.lane.b32.xlu0 %v877, %s882
      %v884 = vpop.permute.xlu0 %883
      %v885 = vlaneseq
      %v886 = vshrl.u32 %v885, 7
      %v887 = vsub.s32 0, %v886
      %v888 = vrot.slane %v793, %v887
      %890 = vbcast.lane.b32.xlu0 %v888, 256
      %v891 = vpop.permute.xlu0 %890
      %s893 = sor.u32 256, 8
      %894 = vbcast.lane.b32.xlu0 %v888, %s893
      %v895 = vpop.permute.xlu0 %894
      %v896 = vlaneseq
      %v897 = vshrl.u32 %v896, 7
      %v898 = vsub.s32 1, %v897
      %v899 = vrot.slane %v793, %v898
      %901 = vbcast.lane.b32.xlu0 %v899, 256
      %v902 = vpop.permute.xlu0 %901
      %s904 = sor.u32 256, 8
      %905 = vbcast.lane.b32.xlu0 %v899, %s904
      %v906 = vpop.permute.xlu0 %905
      %v907 = vlaneseq
      %v908 = vshrl.u32 %v907, 7
      %v909 = vsub.s32 2, %v908
      %v910 = vrot.slane %v793, %v909
      %912 = vbcast.lane.b32.xlu0 %v910, 256
      %v913 = vpop.permute.xlu0 %912
      %s915 = sor.u32 256, 8
      %916 = vbcast.lane.b32.xlu0 %v910, %s915
      %v917 = vpop.permute.xlu0 %916
      %v918 = vlaneseq
      %v919 = vshrl.u32 %v918, 7
      %v920 = vsub.s32 3, %v919
      %v921 = vrot.slane %v793, %v920
      %923 = vbcast.lane.b32.xlu0 %v921, 256
      %v924 = vpop.permute.xlu0 %923
      %s926 = sor.u32 256, 8
      %927 = vbcast.lane.b32.xlu0 %v921, %s926
      %v928 = vpop.permute.xlu0 %927
      %v929 = vlaneseq
      %v930 = vshrl.u32 %v929, 7
      %v931 = vsub.s32 4, %v930
      %v932 = vrot.slane %v793, %v931
      %934 = vbcast.lane.b32.xlu0 %v932, 256
      %v935 = vpop.permute.xlu0 %934
      %s937 = sor.u32 256, 8
      %938 = vbcast.lane.b32.xlu0 %v932, %s937
      %v939 = vpop.permute.xlu0 %938
      %v940 = vlaneseq
      %v941 = vshrl.u32 %v940, 7
      %v942 = vsub.s32 5, %v941
      %v943 = vrot.slane %v793, %v942
      %945 = vbcast.lane.b32.xlu0 %v943, 256
      %v946 = vpop.permute.xlu0 %945
      %s948 = sor.u32 256, 8
      %949 = vbcast.lane.b32.xlu0 %v943, %s948
      %v950 = vpop.permute.xlu0 %949
      %v951 = vlaneseq
      %v952 = vshrl.u32 %v951, 7
      %v953 = vsub.s32 6, %v952
      %v954 = vrot.slane %v793, %v953
      %956 = vbcast.lane.b32.xlu0 %v954, 256
      %v957 = vpop.permute.xlu0 %956
      %s959 = sor.u32 256, 8
      %960 = vbcast.lane.b32.xlu0 %v954, %s959
      %v961 = vpop.permute.xlu0 %960
      %v962 = vlaneseq
      %v963 = vshrl.u32 %v962, 7
      %v964 = vsub.s32 7, %v963
      %v965 = vrot.slane %v793, %v964
      %967 = vbcast.lane.b32.xlu0 %v965, 256
      %v968 = vpop.permute.xlu0 %967
      %s970 = sor.u32 256, 8
      %971 = vbcast.lane.b32.xlu0 %v965, %s970
      %v972 = vpop.permute.xlu0 %971
      %v975 = vcombine.high %v736, %v736
      %v977 = vunpack.c.l.s4 1966171168
      %v978 = vunpack.c.0.s8 %v977
      %v979 = vlaneseq
      %v980 = vshrl.u32 %v979, 7
      %v981 = vsub.s32 %v978, %v980
      %v982 = vrot.slane %v736, %v981
      %v984 = vunpack.c.l.s4 1966171168
      %v985 = vunpack.c.0.s8 %v984
      %v986 = vlaneseq
      %v987 = vshrl.u32 %v986, 7
      %v988 = vsub.s32 %v985, %v987
      %v989 = vrot.slane %v975, %v988
      %v990 = vcombine.high %v982, %v982
      %v991 = vcombine.high %v989, %v989
      %v993 = vunpack.c.l.s4 1966171168
      %v994 = vunpack.c.0.s8 %v993
      %v995 = vlaneseq
      %v996 = vshrl.u32 %v995, 7
      %v997 = vsub.s32 %v994, %v996
      %v998 = vrot.slane %v982, %v997
      %v1000 = vunpack.c.l.s4 1966171168
      %v1001 = vunpack.c.0.s8 %v1000
      %v1002 = vlaneseq
      %v1003 = vshrl.u32 %v1002, 7
      %v1004 = vsub.s32 %v1001, %v1003
      %v1005 = vrot.slane %v989, %v1004
      %v1007 = vunpack.c.l.s4 1966171168
      %v1008 = vunpack.c.0.s8 %v1007
      %v1009 = vlaneseq
      %v1010 = vshrl.u32 %v1009, 7
      %v1011 = vsub.s32 %v1008, %v1010
      %v1012 = vrot.slane %v990, %v1011
      %v1014 = vunpack.c.l.s4 1966171168
      %v1015 = vunpack.c.0.s8 %v1014
      %v1016 = vlaneseq
      %v1017 = vshrl.u32 %v1016, 7
      %v1018 = vsub.s32 %v1015, %v1017
      %v1019 = vrot.slane %v991, %v1018
      %v1020 = vcombine.high %v998, %v998
      %v1021 = vcombine.high %v1005, %v1005
      %v1022 = vcombine.high %v1012, %v1012
      %v1023 = vcombine.high %v1019, %v1019
      %v1024 = vcombine.high %v737, %v737
      %v1026 = vunpack.c.l.s4 1966171168
      %v1027 = vunpack.c.0.s8 %v1026
      %v1028 = vlaneseq
      %v1029 = vshrl.u32 %v1028, 7
      %v1030 = vsub.s32 %v1027, %v1029
      %v1031 = vrot.slane %v737, %v1030
      %v1033 = vunpack.c.l.s4 1966171168
      %v1034 = vunpack.c.0.s8 %v1033
      %v1035 = vlaneseq
      %v1036 = vshrl.u32 %v1035, 7
      %v1037 = vsub.s32 %v1034, %v1036
      %v1038 = vrot.slane %v1024, %v1037
      %v1039 = vcombine.high %v1031, %v1031
      %v1040 = vcombine.high %v1038, %v1038
      %v1042 = vunpack.c.l.s4 1966171168
      %v1043 = vunpack.c.0.s8 %v1042
      %v1044 = vlaneseq
      %v1045 = vshrl.u32 %v1044, 7
      %v1046 = vsub.s32 %v1043, %v1045
      %v1047 = vrot.slane %v1031, %v1046
      %v1049 = vunpack.c.l.s4 1966171168
      %v1050 = vunpack.c.0.s8 %v1049
      %v1051 = vlaneseq
      %v1052 = vshrl.u32 %v1051, 7
      %v1053 = vsub.s32 %v1050, %v1052
      %v1054 = vrot.slane %v1038, %v1053
      %v1056 = vunpack.c.l.s4 1966171168
      %v1057 = vunpack.c.0.s8 %v1056
      %v1058 = vlaneseq
      %v1059 = vshrl.u32 %v1058, 7
      %v1060 = vsub.s32 %v1057, %v1059
      %v1061 = vrot.slane %v1039, %v1060
      %v1063 = vunpack.c.l.s4 1966171168
      %v1064 = vunpack.c.0.s8 %v1063
      %v1065 = vlaneseq
      %v1066 = vshrl.u32 %v1065, 7
      %v1067 = vsub.s32 %v1064, %v1066
      %v1068 = vrot.slane %v1040, %v1067
      %v1069 = vcombine.high %v1047, %v1047
      %v1070 = vcombine.high %v1054, %v1054
      %v1071 = vcombine.high %v1061, %v1061
      %v1072 = vcombine.high %v1068, %v1068
      %v1073 = vlaneseq
      %v1074 = vshrl.u32 %v1073, 7
      %v1075 = vsub.s32 0, %v1074
      %v1076 = vrot.slane %v998, %v1075
      %v1077 = vlaneseq
      %v1078 = vshrl.u32 %v1077, 7
      %v1079 = vsub.s32 0, %v1078
      %v1080 = vrot.slane %v1012, %v1079
      %v1081 = vlaneseq
      %v1082 = vshrl.u32 %v1081, 7
      %v1083 = vsub.s32 0, %v1082
      %v1084 = vrot.slane %v1020, %v1083
      %v1085 = vlaneseq
      %v1086 = vshrl.u32 %v1085, 7
      %v1087 = vsub.s32 0, %v1086
      %v1088 = vrot.slane %v1022, %v1087
      %v1089 = vlaneseq
      %v1090 = vshrl.u32 %v1089, 7
      %v1091 = vsub.s32 0, %v1090
      %v1092 = vrot.slane %v1005, %v1091
      %v1093 = vlaneseq
      %v1094 = vshrl.u32 %v1093, 7
      %v1095 = vsub.s32 0, %v1094
      %v1096 = vrot.slane %v1019, %v1095
      %v1097 = vlaneseq
      %v1098 = vshrl.u32 %v1097, 7
      %v1099 = vsub.s32 0, %v1098
      %v1100 = vrot.slane %v1021, %v1099
      %v1101 = vlaneseq
      %v1102 = vshrl.u32 %v1101, 7
      %v1103 = vsub.s32 0, %v1102
      %v1104 = vrot.slane %v1023, %v1103
      %v1105 = vlaneseq
      %v1106 = vshrl.u32 %v1105, 7
      %v1107 = vsub.s32 0, %v1106
      %v1108 = vrot.slane %v1047, %v1107
      %v1109 = vlaneseq
      %v1110 = vshrl.u32 %v1109, 7
      %v1111 = vsub.s32 0, %v1110
      %v1112 = vrot.slane %v1061, %v1111
      %v1113 = vlaneseq
      %v1114 = vshrl.u32 %v1113, 7
      %v1115 = vsub.s32 0, %v1114
      %v1116 = vrot.slane %v1069, %v1115
      %v1117 = vlaneseq
      %v1118 = vshrl.u32 %v1117, 7
      %v1119 = vsub.s32 0, %v1118
      %v1120 = vrot.slane %v1071, %v1119
      %v1121 = vlaneseq
      %v1122 = vshrl.u32 %v1121, 7
      %v1123 = vsub.s32 0, %v1122
      %v1124 = vrot.slane %v1054, %v1123
      %v1125 = vlaneseq
      %v1126 = vshrl.u32 %v1125, 7
      %v1127 = vsub.s32 0, %v1126
      %v1128 = vrot.slane %v1068, %v1127
      %v1129 = vlaneseq
      %v1130 = vshrl.u32 %v1129, 7
      %v1131 = vsub.s32 0, %v1130
      %v1132 = vrot.slane %v1070, %v1131
      %v1133 = vlaneseq
      %v1134 = vshrl.u32 %v1133, 7
      %v1135 = vsub.s32 0, %v1134
      %v1136 = vrot.slane %v1072, %v1135
      %v1153 = vmul.f32 %v803, %v1076
      %v1154 = vmul.f32 %v807, %v1076
      %v1155 = vmul.f32 %v814, %v1080
      %v1156 = vmul.f32 %v818, %v1080
      %v1157 = vmul.f32 %v825, %v1084
      %v1158 = vmul.f32 %v829, %v1084
      %v1159 = vmul.f32 %v836, %v1088
      %v1160 = vmul.f32 %v840, %v1088
      %v1161 = vmul.f32 %v847, %v1092
      %v1162 = vmul.f32 %v851, %v1092
      %v1163 = vmul.f32 %v858, %v1096
      %v1164 = vmul.f32 %v862, %v1096
      %v1165 = vmul.f32 %v869, %v1100
      %v1166 = vmul.f32 %v873, %v1100
      %v1167 = vmul.f32 %v880, %v1104
      %v1168 = vmul.f32 %v884, %v1104
      %v1169 = vmul.f32 %v891, %v1108
      %v1170 = vmul.f32 %v895, %v1108
      %v1171 = vmul.f32 %v902, %v1112
      %v1172 = vmul.f32 %v906, %v1112
      %v1173 = vmul.f32 %v913, %v1116
      %v1174 = vmul.f32 %v917, %v1116
      %v1175 = vmul.f32 %v924, %v1120
      %v1176 = vmul.f32 %v928, %v1120
      %v1177 = vmul.f32 %v935, %v1124
      %v1178 = vmul.f32 %v939, %v1124
      %v1179 = vmul.f32 %v946, %v1128
      %v1180 = vmul.f32 %v950, %v1128
      %v1181 = vmul.f32 %v957, %v1132
      %v1182 = vmul.f32 %v961, %v1132
      %v1183 = vmul.f32 %v968, %v1136
      %v1184 = vmul.f32 %v972, %v1136
      %v1185 = vcombine.low %v1153, %v1157
      %v1186 = vcombine.high %v1153, %v1157
      %v1188 = vunpack.c.l.s4 1983009808
      %v1189 = vunpack.c.0.s8 %v1188
      %v1190 = vlaneseq
      %v1191 = vshrl.u32 %v1190, 7
      %v1192 = vsub.s32 %v1189, %v1191
      %v1193 = vrot.slane %v1185, %v1192
      %v1195 = vunpack.c.l.s4 1983009808
      %v1196 = vunpack.c.0.s8 %v1195
      %v1197 = vlaneseq
      %v1198 = vshrl.u32 %v1197, 7
      %v1199 = vsub.s32 %v1196, %v1198
      %v1200 = vrot.slane %v1186, %v1199
      %v1201 = vcombine.low %v1155, %v1159
      %v1202 = vcombine.high %v1155, %v1159
      %v1204 = vunpack.c.l.s4 1983009808
      %v1205 = vunpack.c.0.s8 %v1204
      %v1206 = vlaneseq
      %v1207 = vshrl.u32 %v1206, 7
      %v1208 = vsub.s32 %v1205, %v1207
      %v1209 = vrot.slane %v1201, %v1208
      %v1211 = vunpack.c.l.s4 1983009808
      %v1212 = vunpack.c.0.s8 %v1211
      %v1213 = vlaneseq
      %v1214 = vshrl.u32 %v1213, 7
      %v1215 = vsub.s32 %v1212, %v1214
      %v1216 = vrot.slane %v1202, %v1215
      %v1217 = vcombine.low %v1161, %v1165
      %v1218 = vcombine.high %v1161, %v1165
      %v1220 = vunpack.c.l.s4 1983009808
      %v1221 = vunpack.c.0.s8 %v1220
      %v1222 = vlaneseq
      %v1223 = vshrl.u32 %v1222, 7
      %v1224 = vsub.s32 %v1221, %v1223
      %v1225 = vrot.slane %v1217, %v1224
      %v1227 = vunpack.c.l.s4 1983009808
      %v1228 = vunpack.c.0.s8 %v1227
      %v1229 = vlaneseq
      %v1230 = vshrl.u32 %v1229, 7
      %v1231 = vsub.s32 %v1228, %v1230
      %v1232 = vrot.slane %v1218, %v1231
      %v1233 = vcombine.low %v1163, %v1167
      %v1234 = vcombine.high %v1163, %v1167
      %v1236 = vunpack.c.l.s4 1983009808
      %v1237 = vunpack.c.0.s8 %v1236
      %v1238 = vlaneseq
      %v1239 = vshrl.u32 %v1238, 7
      %v1240 = vsub.s32 %v1237, %v1239
      %v1241 = vrot.slane %v1233, %v1240
      %v1243 = vunpack.c.l.s4 1983009808
      %v1244 = vunpack.c.0.s8 %v1243
      %v1245 = vlaneseq
      %v1246 = vshrl.u32 %v1245, 7
      %v1247 = vsub.s32 %v1244, %v1246
      %v1248 = vrot.slane %v1234, %v1247
      %v1249 = vcombine.low %v1193, %v1209
      %v1250 = vcombine.high %v1193, %v1209
      %v1252 = vunpack.c.l.s4 1934713408
      %v1253 = vunpack.c.0.s8 %v1252
      %v1254 = vlaneseq
      %v1255 = vshrl.u32 %v1254, 7
      %v1256 = vsub.s32 %v1253, %v1255
      %v1257 = vrot.slane %v1249, %v1256
      %v1259 = vunpack.c.l.s4 1934713408
      %v1260 = vunpack.c.0.s8 %v1259
      %v1261 = vlaneseq
      %v1262 = vshrl.u32 %v1261, 7
      %v1263 = vsub.s32 %v1260, %v1262
      %v1264 = vrot.slane %v1250, %v1263
      %v1265 = vcombine.low %v1200, %v1216
      %v1266 = vcombine.high %v1200, %v1216
      %v1268 = vunpack.c.l.s4 1934713408
      %v1269 = vunpack.c.0.s8 %v1268
      %v1270 = vlaneseq
      %v1271 = vshrl.u32 %v1270, 7
      %v1272 = vsub.s32 %v1269, %v1271
      %v1273 = vrot.slane %v1265, %v1272
      %v1275 = vunpack.c.l.s4 1934713408
      %v1276 = vunpack.c.0.s8 %v1275
      %v1277 = vlaneseq
      %v1278 = vshrl.u32 %v1277, 7
      %v1279 = vsub.s32 %v1276, %v1278
      %v1280 = vrot.slane %v1266, %v1279
      %v1281 = vcombine.low %v1225, %v1241
      %v1282 = vcombine.high %v1225, %v1241
      %v1284 = vunpack.c.l.s4 1934713408
      %v1285 = vunpack.c.0.s8 %v1284
      %v1286 = vlaneseq
      %v1287 = vshrl.u32 %v1286, 7
      %v1288 = vsub.s32 %v1285, %v1287
      %v1289 = vrot.slane %v1281, %v1288
      %v1291 = vunpack.c.l.s4 1934713408
      %v1292 = vunpack.c.0.s8 %v1291
      %v1293 = vlaneseq
      %v1294 = vshrl.u32 %v1293, 7
      %v1295 = vsub.s32 %v1292, %v1294
      %v1296 = vrot.slane %v1282, %v1295
      %v1297 = vcombine.low %v1232, %v1248
      %v1298 = vcombine.high %v1232, %v1248
      %v1300 = vunpack.c.l.s4 1934713408
      %v1301 = vunpack.c.0.s8 %v1300
      %v1302 = vlaneseq
      %v1303 = vshrl.u32 %v1302, 7
      %v1304 = vsub.s32 %v1301, %v1303
      %v1305 = vrot.slane %v1297, %v1304
      %v1307 = vunpack.c.l.s4 1934713408
      %v1308 = vunpack.c.0.s8 %v1307
      %v1309 = vlaneseq
      %v1310 = vshrl.u32 %v1309, 7
      %v1311 = vsub.s32 %v1308, %v1310
      %v1312 = vrot.slane %v1298, %v1311
      %v1313 = vcombine.low %v1257, %v1289
      %v1314 = vcombine.high %v1257, %v1289
      %v1315 = vcombine.low %v1264, %v1296
      %v1316 = vcombine.high %v1264, %v1296
      %v1317 = vcombine.low %v1273, %v1305
      %v1318 = vcombine.high %v1273, %v1305
      %v1319 = vcombine.low %v1280, %v1312
      %v1320 = vcombine.high %v1280, %v1312
      %v1321 = vcombine.low %v1169, %v1173
      %v1322 = vcombine.high %v1169, %v1173
      %v1324 = vunpack.c.l.s4 1983009808
      %v1325 = vunpack.c.0.s8 %v1324
      %v1326 = vlaneseq
      %v1327 = vshrl.u32 %v1326, 7
      %v1328 = vsub.s32 %v1325, %v1327
      %v1329 = vrot.slane %v1321, %v1328
      %v1331 = vunpack.c.l.s4 1983009808
      %v1332 = vunpack.c.0.s8 %v1331
      %v1333 = vlaneseq
      %v1334 = vshrl.u32 %v1333, 7
      %v1335 = vsub.s32 %v1332, %v1334
      %v1336 = vrot.slane %v1322, %v1335
      %v1337 = vcombine.low %v1171, %v1175
      %v1338 = vcombine.high %v1171, %v1175
      %v1340 = vunpack.c.l.s4 1983009808
      %v1341 = vunpack.c.0.s8 %v1340
      %v1342 = vlaneseq
      %v1343 = vshrl.u32 %v1342, 7
      %v1344 = vsub.s32 %v1341, %v1343
      %v1345 = vrot.slane %v1337, %v1344
      %v1347 = vunpack.c.l.s4 1983009808
      %v1348 = vunpack.c.0.s8 %v1347
      %v1349 = vlaneseq
      %v1350 = vshrl.u32 %v1349, 7
      %v1351 = vsub.s32 %v1348, %v1350
      %v1352 = vrot.slane %v1338, %v1351
      %v1353 = vcombine.low %v1177, %v1181
      %v1354 = vcombine.high %v1177, %v1181
      %v1356 = vunpack.c.l.s4 1983009808
      %v1357 = vunpack.c.0.s8 %v1356
      %v1358 = vlaneseq
      %v1359 = vshrl.u32 %v1358, 7
      %v1360 = vsub.s32 %v1357, %v1359
      %v1361 = vrot.slane %v1353, %v1360
      %v1363 = vunpack.c.l.s4 1983009808
      %v1364 = vunpack.c.0.s8 %v1363
      %v1365 = vlaneseq
      %v1366 = vshrl.u32 %v1365, 7
      %v1367 = vsub.s32 %v1364, %v1366
      %v1368 = vrot.slane %v1354, %v1367
      %v1369 = vcombine.low %v1179, %v1183
      %v1370 = vcombine.high %v1179, %v1183
      %v1372 = vunpack.c.l.s4 1983009808
      %v1373 = vunpack.c.0.s8 %v1372
      %v1374 = vlaneseq
      %v1375 = vshrl.u32 %v1374, 7
      %v1376 = vsub.s32 %v1373, %v1375
      %v1377 = vrot.slane %v1369, %v1376
      %v1379 = vunpack.c.l.s4 1983009808
      %v1380 = vunpack.c.0.s8 %v1379
      %v1381 = vlaneseq
      %v1382 = vshrl.u32 %v1381, 7
      %v1383 = vsub.s32 %v1380, %v1382
      %v1384 = vrot.slane %v1370, %v1383
      %v1385 = vcombine.low %v1329, %v1345
      %v1386 = vcombine.high %v1329, %v1345
      %v1388 = vunpack.c.l.s4 1934713408
      %v1389 = vunpack.c.0.s8 %v1388
      %v1390 = vlaneseq
      %v1391 = vshrl.u32 %v1390, 7
      %v1392 = vsub.s32 %v1389, %v1391
      %v1393 = vrot.slane %v1385, %v1392
      %v1395 = vunpack.c.l.s4 1934713408
      %v1396 = vunpack.c.0.s8 %v1395
      %v1397 = vlaneseq
      %v1398 = vshrl.u32 %v1397, 7
      %v1399 = vsub.s32 %v1396, %v1398
      %v1400 = vrot.slane %v1386, %v1399
      %v1401 = vcombine.low %v1336, %v1352
      %v1402 = vcombine.high %v1336, %v1352
      %v1404 = vunpack.c.l.s4 1934713408
      %v1405 = vunpack.c.0.s8 %v1404
      %v1406 = vlaneseq
      %v1407 = vshrl.u32 %v1406, 7
      %v1408 = vsub.s32 %v1405, %v1407
      %v1409 = vrot.slane %v1401, %v1408
      %v1411 = vunpack.c.l.s4 1934713408
      %v1412 = vunpack.c.0.s8 %v1411
      %v1413 = vlaneseq
      %v1414 = vshrl.u32 %v1413, 7
      %v1415 = vsub.s32 %v1412, %v1414
      %v1416 = vrot.slane %v1402, %v1415
      %v1417 = vcombine.low %v1361, %v1377
      %v1418 = vcombine.high %v1361, %v1377
      %v1420 = vunpack.c.l.s4 1934713408
      %v1421 = vunpack.c.0.s8 %v1420
      %v1422 = vlaneseq
      %v1423 = vshrl.u32 %v1422, 7
      %v1424 = vsub.s32 %v1421, %v1423
      %v1425 = vrot.slane %v1417, %v1424
      %v1427 = vunpack.c.l.s4 1934713408
      %v1428 = vunpack.c.0.s8 %v1427
      %v1429 = vlaneseq
      %v1430 = vshrl.u32 %v1429, 7
      %v1431 = vsub.s32 %v1428, %v1430
      %v1432 = vrot.slane %v1418, %v1431
      %v1433 = vcombine.low %v1368, %v1384
      %v1434 = vcombine.high %v1368, %v1384
      %v1436 = vunpack.c.l.s4 1934713408
      %v1437 = vunpack.c.0.s8 %v1436
      %v1438 = vlaneseq
      %v1439 = vshrl.u32 %v1438, 7
      %v1440 = vsub.s32 %v1437, %v1439
      %v1441 = vrot.slane %v1433, %v1440
      %v1443 = vunpack.c.l.s4 1934713408
      %v1444 = vunpack.c.0.s8 %v1443
      %v1445 = vlaneseq
      %v1446 = vshrl.u32 %v1445, 7
      %v1447 = vsub.s32 %v1444, %v1446
      %v1448 = vrot.slane %v1434, %v1447
      %v1449 = vcombine.low %v1393, %v1425
      %v1450 = vcombine.high %v1393, %v1425
      %v1451 = vcombine.low %v1400, %v1432
      %v1452 = vcombine.high %v1400, %v1432
      %v1453 = vcombine.low %v1409, %v1441
      %v1454 = vcombine.high %v1409, %v1441
      %v1455 = vcombine.low %v1416, %v1448
      %v1456 = vcombine.high %v1416, %v1448
      %v1457 = vcombine.low %v1154, %v1158
      %v1458 = vcombine.high %v1154, %v1158
      %v1460 = vunpack.c.l.s4 1983009808
      %v1461 = vunpack.c.0.s8 %v1460
      %v1462 = vlaneseq
      %v1463 = vshrl.u32 %v1462, 7
      %v1464 = vsub.s32 %v1461, %v1463
      %v1465 = vrot.slane %v1457, %v1464
      %v1467 = vunpack.c.l.s4 1983009808
      %v1468 = vunpack.c.0.s8 %v1467
      %v1469 = vlaneseq
      %v1470 = vshrl.u32 %v1469, 7
      %v1471 = vsub.s32 %v1468, %v1470
      %v1472 = vrot.slane %v1458, %v1471
      %v1473 = vcombine.low %v1156, %v1160
      %v1474 = vcombine.high %v1156, %v1160
      %v1476 = vunpack.c.l.s4 1983009808
      %v1477 = vunpack.c.0.s8 %v1476
      %v1478 = vlaneseq
      %v1479 = vshrl.u32 %v1478, 7
      %v1480 = vsub.s32 %v1477, %v1479
      %v1481 = vrot.slane %v1473, %v1480
      %v1483 = vunpack.c.l.s4 1983009808
      %v1484 = vunpack.c.0.s8 %v1483
      %v1485 = vlaneseq
      %v1486 = vshrl.u32 %v1485, 7
      %v1487 = vsub.s32 %v1484, %v1486
      %v1488 = vrot.slane %v1474, %v1487
      %v1489 = vcombine.low %v1162, %v1166
      %v1490 = vcombine.high %v1162, %v1166
      %v1492 = vunpack.c.l.s4 1983009808
      %v1493 = vunpack.c.0.s8 %v1492
      %v1494 = vlaneseq
      %v1495 = vshrl.u32 %v1494, 7
      %v1496 = vsub.s32 %v1493, %v1495
      %v1497 = vrot.slane %v1489, %v1496
      %v1499 = vunpack.c.l.s4 1983009808
      %v1500 = vunpack.c.0.s8 %v1499
      %v1501 = vlaneseq
      %v1502 = vshrl.u32 %v1501, 7
      %v1503 = vsub.s32 %v1500, %v1502
      %v1504 = vrot.slane %v1490, %v1503
      %v1505 = vcombine.low %v1164, %v1168
      %v1506 = vcombine.high %v1164, %v1168
      %v1508 = vunpack.c.l.s4 1983009808
      %v1509 = vunpack.c.0.s8 %v1508
      %v1510 = vlaneseq
      %v1511 = vshrl.u32 %v1510, 7
      %v1512 = vsub.s32 %v1509, %v1511
      %v1513 = vrot.slane %v1505, %v1512
      %v1515 = vunpack.c.l.s4 1983009808
      %v1516 = vunpack.c.0.s8 %v1515
      %v1517 = vlaneseq
      %v1518 = vshrl.u32 %v1517, 7
      %v1519 = vsub.s32 %v1516, %v1518
      %v1520 = vrot.slane %v1506, %v1519
      %v1521 = vcombine.low %v1465, %v1481
      %v1522 = vcombine.high %v1465, %v1481
      %v1524 = vunpack.c.l.s4 1934713408
      %v1525 = vunpack.c.0.s8 %v1524
      %v1526 = vlaneseq
      %v1527 = vshrl.u32 %v1526, 7
      %v1528 = vsub.s32 %v1525, %v1527
      %v1529 = vrot.slane %v1521, %v1528
      %v1531 = vunpack.c.l.s4 1934713408
      %v1532 = vunpack.c.0.s8 %v1531
      %v1533 = vlaneseq
      %v1534 = vshrl.u32 %v1533, 7
      %v1535 = vsub.s32 %v1532, %v1534
      %v1536 = vrot.slane %v1522, %v1535
      %v1537 = vcombine.low %v1472, %v1488
      %v1538 = vcombine.high %v1472, %v1488
      %v1540 = vunpack.c.l.s4 1934713408
      %v1541 = vunpack.c.0.s8 %v1540
      %v1542 = vlaneseq
      %v1543 = vshrl.u32 %v1542, 7
      %v1544 = vsub.s32 %v1541, %v1543
      %v1545 = vrot.slane %v1537, %v1544
      %v1547 = vunpack.c.l.s4 1934713408
      %v1548 = vunpack.c.0.s8 %v1547
      %v1549 = vlaneseq
      %v1550 = vshrl.u32 %v1549, 7
      %v1551 = vsub.s32 %v1548, %v1550
      %v1552 = vrot.slane %v1538, %v1551
      %v1553 = vcombine.low %v1497, %v1513
      %v1554 = vcombine.high %v1497, %v1513
      %v1556 = vunpack.c.l.s4 1934713408
      %v1557 = vunpack.c.0.s8 %v1556
      %v1558 = vlaneseq
      %v1559 = vshrl.u32 %v1558, 7
      %v1560 = vsub.s32 %v1557, %v1559
      %v1561 = vrot.slane %v1553, %v1560
      %v1563 = vunpack.c.l.s4 1934713408
      %v1564 = vunpack.c.0.s8 %v1563
      %v1565 = vlaneseq
      %v1566 = vshrl.u32 %v1565, 7
      %v1567 = vsub.s32 %v1564, %v1566
      %v1568 = vrot.slane %v1554, %v1567
      %v1569 = vcombine.low %v1504, %v1520
      %v1570 = vcombine.high %v1504, %v1520
      %v1572 = vunpack.c.l.s4 1934713408
      %v1573 = vunpack.c.0.s8 %v1572
      %v1574 = vlaneseq
      %v1575 = vshrl.u32 %v1574, 7
      %v1576 = vsub.s32 %v1573, %v1575
      %v1577 = vrot.slane %v1569, %v1576
      %v1579 = vunpack.c.l.s4 1934713408
      %v1580 = vunpack.c.0.s8 %v1579
      %v1581 = vlaneseq
      %v1582 = vshrl.u32 %v1581, 7
      %v1583 = vsub.s32 %v1580, %v1582
      %v1584 = vrot.slane %v1570, %v1583
      %v1585 = vcombine.low %v1529, %v1561
      %v1586 = vcombine.high %v1529, %v1561
      %v1587 = vcombine.low %v1536, %v1568
      %v1588 = vcombine.high %v1536, %v1568
      %v1589 = vcombine.low %v1545, %v1577
      %v1590 = vcombine.high %v1545, %v1577
      %v1591 = vcombine.low %v1552, %v1584
      %v1592 = vcombine.high %v1552, %v1584
      %v1593 = vcombine.low %v1170, %v1174
      %v1594 = vcombine.high %v1170, %v1174
      %v1596 = vunpack.c.l.s4 1983009808
      %v1597 = vunpack.c.0.s8 %v1596
      %v1598 = vlaneseq
      %v1599 = vshrl.u32 %v1598, 7
      %v1600 = vsub.s32 %v1597, %v1599
      %v1601 = vrot.slane %v1593, %v1600
      %v1603 = vunpack.c.l.s4 1983009808
      %v1604 = vunpack.c.0.s8 %v1603
      %v1605 = vlaneseq
      %v1606 = vshrl.u32 %v1605, 7
      %v1607 = vsub.s32 %v1604, %v1606
      %v1608 = vrot.slane %v1594, %v1607
      %v1609 = vcombine.low %v1172, %v1176
      %v1610 = vcombine.high %v1172, %v1176
      %v1612 = vunpack.c.l.s4 1983009808
      %v1613 = vunpack.c.0.s8 %v1612
      %v1614 = vlaneseq
      %v1615 = vshrl.u32 %v1614, 7
      %v1616 = vsub.s32 %v1613, %v1615
      %v1617 = vrot.slane %v1609, %v1616
      %v1619 = vunpack.c.l.s4 1983009808
      %v1620 = vunpack.c.0.s8 %v1619
      %v1621 = vlaneseq
      %v1622 = vshrl.u32 %v1621, 7
      %v1623 = vsub.s32 %v1620, %v1622
      %v1624 = vrot.slane %v1610, %v1623
      %v1625 = vcombine.low %v1178, %v1182
      %v1626 = vcombine.high %v1178, %v1182
      %v1628 = vunpack.c.l.s4 1983009808
      %v1629 = vunpack.c.0.s8 %v1628
      %v1630 = vlaneseq
      %v1631 = vshrl.u32 %v1630, 7
      %v1632 = vsub.s32 %v1629, %v1631
      %v1633 = vrot.slane %v1625, %v1632
      %v1635 = vunpack.c.l.s4 1983009808
      %v1636 = vunpack.c.0.s8 %v1635
      %v1637 = vlaneseq
      %v1638 = vshrl.u32 %v1637, 7
      %v1639 = vsub.s32 %v1636, %v1638
      %v1640 = vrot.slane %v1626, %v1639
      %v1641 = vcombine.low %v1180, %v1184
      %v1642 = vcombine.high %v1180, %v1184
      %v1644 = vunpack.c.l.s4 1983009808
      %v1645 = vunpack.c.0.s8 %v1644
      %v1646 = vlaneseq
      %v1647 = vshrl.u32 %v1646, 7
      %v1648 = vsub.s32 %v1645, %v1647
      %v1649 = vrot.slane %v1641, %v1648
      %v1651 = vunpack.c.l.s4 1983009808
      %v1652 = vunpack.c.0.s8 %v1651
      %v1653 = vlaneseq
      %v1654 = vshrl.u32 %v1653, 7
      %v1655 = vsub.s32 %v1652, %v1654
      %v1656 = vrot.slane %v1642, %v1655
      %v1657 = vcombine.low %v1601, %v1617
      %v1658 = vcombine.high %v1601, %v1617
      %v1660 = vunpack.c.l.s4 1934713408
      %v1661 = vunpack.c.0.s8 %v1660
      %v1662 = vlaneseq
      %v1663 = vshrl.u32 %v1662, 7
      %v1664 = vsub.s32 %v1661, %v1663
      %v1665 = vrot.slane %v1657, %v1664
      %v1667 = vunpack.c.l.s4 1934713408
      %v1668 = vunpack.c.0.s8 %v1667
      %v1669 = vlaneseq
      %v1670 = vshrl.u32 %v1669, 7
      %v1671 = vsub.s32 %v1668, %v1670
      %v1672 = vrot.slane %v1658, %v1671
      %v1673 = vcombine.low %v1608, %v1624
      %v1674 = vcombine.high %v1608, %v1624
      %v1676 = vunpack.c.l.s4 1934713408
      %v1677 = vunpack.c.0.s8 %v1676
      %v1678 = vlaneseq
      %v1679 = vshrl.u32 %v1678, 7
      %v1680 = vsub.s32 %v1677, %v1679
      %v1681 = vrot.slane %v1673, %v1680
      %v1683 = vunpack.c.l.s4 1934713408
      %v1684 = vunpack.c.0.s8 %v1683
      %v1685 = vlaneseq
      %v1686 = vshrl.u32 %v1685, 7
      %v1687 = vsub.s32 %v1684, %v1686
      %v1688 = vrot.slane %v1674, %v1687
      %v1689 = vcombine.low %v1633, %v1649
      %v1690 = vcombine.high %v1633, %v1649
      %v1692 = vunpack.c.l.s4 1934713408
      %v1693 = vunpack.c.0.s8 %v1692
      %v1694 = vlaneseq
      %v1695 = vshrl.u32 %v1694, 7
      %v1696 = vsub.s32 %v1693, %v1695
      %v1697 = vrot.slane %v1689, %v1696
      %v1699 = vunpack.c.l.s4 1934713408
      %v1700 = vunpack.c.0.s8 %v1699
      %v1701 = vlaneseq
      %v1702 = vshrl.u32 %v1701, 7
      %v1703 = vsub.s32 %v1700, %v1702
      %v1704 = vrot.slane %v1690, %v1703
      %v1705 = vcombine.low %v1640, %v1656
      %v1706 = vcombine.high %v1640, %v1656
      %v1708 = vunpack.c.l.s4 1934713408
      %v1709 = vunpack.c.0.s8 %v1708
      %v1710 = vlaneseq
      %v1711 = vshrl.u32 %v1710, 7
      %v1712 = vsub.s32 %v1709, %v1711
      %v1713 = vrot.slane %v1705, %v1712
      %v1715 = vunpack.c.l.s4 1934713408
      %v1716 = vunpack.c.0.s8 %v1715
      %v1717 = vlaneseq
      %v1718 = vshrl.u32 %v1717, 7
      %v1719 = vsub.s32 %v1716, %v1718
      %v1720 = vrot.slane %v1706, %v1719
      %v1721 = vcombine.low %v1665, %v1697
      %v1722 = vcombine.high %v1665, %v1697
      %v1723 = vcombine.low %v1672, %v1704
      %v1724 = vcombine.high %v1672, %v1704
      %v1725 = vcombine.low %v1681, %v1713
      %v1726 = vcombine.high %v1681, %v1713
      %v1727 = vcombine.low %v1688, %v1720
      %v1728 = vcombine.high %v1688, %v1720
      %1731 = vrot.lane.b32.xlu0 %v1314, 32
      %v1732 = vpop.permute.xlu0 %1731
      %1733 = vrot.lane.b32.xlu0 %v1450, 32
      %v1734 = vpop.permute.xlu0 %1733
      %1739 = vrot.lane.b32.xlu0 %v1315, 64
      %v1740 = vpop.permute.xlu0 %1739
      %1741 = vrot.lane.b32.xlu0 %v1451, 64
      %v1742 = vpop.permute.xlu0 %1741
      %1747 = vrot.lane.b32.xlu0 %v1316, 96
      %v1748 = vpop.permute.xlu0 %1747
      %1749 = vrot.lane.b32.xlu0 %v1452, 96
      %v1750 = vpop.permute.xlu0 %1749
      %1755 = vrot.lane.b32.xlu0 %v1318, 32
      %v1756 = vpop.permute.xlu0 %1755
      %1757 = vrot.lane.b32.xlu0 %v1454, 32
      %v1758 = vpop.permute.xlu0 %1757
      %1763 = vrot.lane.b32.xlu0 %v1319, 64
      %v1764 = vpop.permute.xlu0 %1763
      %1765 = vrot.lane.b32.xlu0 %v1455, 64
      %v1766 = vpop.permute.xlu0 %1765
      %1771 = vrot.lane.b32.xlu0 %v1320, 96
      %v1772 = vpop.permute.xlu0 %1771
      %1773 = vrot.lane.b32.xlu0 %v1456, 96
      %v1774 = vpop.permute.xlu0 %1773
      %1779 = vrot.lane.b32.xlu0 %v1586, 32
      %v1780 = vpop.permute.xlu0 %1779
      %1781 = vrot.lane.b32.xlu0 %v1722, 32
      %v1782 = vpop.permute.xlu0 %1781
      %1787 = vrot.lane.b32.xlu0 %v1587, 64
      %v1788 = vpop.permute.xlu0 %1787
      %1789 = vrot.lane.b32.xlu0 %v1723, 64
      %v1790 = vpop.permute.xlu0 %1789
      %1795 = vrot.lane.b32.xlu0 %v1588, 96
      %v1796 = vpop.permute.xlu0 %1795
      %1797 = vrot.lane.b32.xlu0 %v1724, 96
      %v1798 = vpop.permute.xlu0 %1797
      %1803 = vrot.lane.b32.xlu0 %v1590, 32
      %v1804 = vpop.permute.xlu0 %1803
      %1805 = vrot.lane.b32.xlu0 %v1726, 32
      %v1806 = vpop.permute.xlu0 %1805
      %1811 = vrot.lane.b32.xlu0 %v1591, 64
      %v1812 = vpop.permute.xlu0 %1811
      %1813 = vrot.lane.b32.xlu0 %v1727, 64
      %v1814 = vpop.permute.xlu0 %1813
      %1819 = vrot.lane.b32.xlu0 %v1592, 96
      %v1820 = vpop.permute.xlu0 %1819
      %1821 = vrot.lane.b32.xlu0 %v1728, 96
      %v1822 = vpop.permute.xlu0 %1821
      %vm1825 = vcmask 261120
      %v1826 = vsel %vm1825, %v1313, %v1732
      %v1827 = vsel %vm1825, %v1449, %v1734
      %vm1828 = vcmask 523264
      %v1829 = vsel %vm1828, %v1826, %v1740
      %v1830 = vsel %vm1828, %v1827, %v1742
      %vm1831 = vcmask 785408
      %v1832 = vsel %vm1831, %v1829, %v1748
      %v1833 = vsel %vm1831, %v1830, %v1750
      %v1834 = vsel %vm1825, %v1317, %v1756
      %v1835 = vsel %vm1825, %v1453, %v1758
      %v1836 = vsel %vm1828, %v1834, %v1764
      %v1837 = vsel %vm1828, %v1835, %v1766
      %v1838 = vsel %vm1831, %v1836, %v1772
      %v1839 = vsel %vm1831, %v1837, %v1774
      %v1840 = vsel %vm1825, %v1585, %v1780
      %v1841 = vsel %vm1825, %v1721, %v1782
      %v1842 = vsel %vm1828, %v1840, %v1788
      %v1843 = vsel %vm1828, %v1841, %v1790
      %v1844 = vsel %vm1831, %v1842, %v1796
      %v1845 = vsel %vm1831, %v1843, %v1798
      %v1846 = vsel %vm1825, %v1589, %v1804
      %v1847 = vsel %vm1825, %v1725, %v1806
      %v1848 = vsel %vm1828, %v1846, %v1812
      %v1849 = vsel %vm1828, %v1847, %v1814
      %v1850 = vsel %vm1831, %v1848, %v1820
      %v1851 = vsel %vm1831, %v1849, %v1822
      %v1852 = vpack.c.bf16 %v1833, %v1832
      %v1853 = vpack.c.bf16 %v1839, %v1838
      %v1854 = vpack.c.bf16 %v1845, %v1844
      %v1855 = vpack.c.bf16 %v1851, %v1850
      %1856 = vmatprep.subr.bf16.mxu0 0
      %1857 = vmatpush1.bf16.msra.mxu0 %v329
      %1858 = vmatprep.subr.bf16.mxu0 0
      %1859 = vmatpush1.bf16.msra.mxu0 %v330
      %1860 = vmatprep.subr.bf16.mxu0 0
      %1861 = vmatpush1.bf16.msra.mxu0 %v331
      %1862 = vmatprep.subr.bf16.mxu0 0
      %1863 = vmatpush1.bf16.msra.mxu0 %v332
      %1864 = vmatprep.subr.bf16.mxu0 0
      %1865 = vmatpush1.bf16.msra.mxu0 %v333
      %1866 = vmatprep.subr.bf16.mxu0 0
      %1867 = vmatpush1.bf16.msra.mxu0 %v334
      %1868 = vmatprep.subr.bf16.mxu0 0
      %1869 = vmatpush1.bf16.msra.mxu0 %v335
      %1870 = vmatprep.subr.bf16.mxu0 0
      %1871 = vmatpush1.bf16.msra.mxu0 %v336
      %1872 = vmatprep.subr.bf16.mxu0 0
      %1873 = vmatpush1.bf16.msra.mxu0 %v337
      %1874 = vmatprep.subr.bf16.mxu0 0
      %1875 = vmatpush1.bf16.msra.mxu0 %v338
      %1876 = vmatprep.subr.bf16.mxu0 0
      %1877 = vmatpush1.bf16.msra.mxu0 %v339
      %1878 = vmatprep.subr.bf16.mxu0 0
      %1879 = vmatpush1.bf16.msra.mxu0 %v340
      %1880 = vmatprep.subr.bf16.mxu0 0
      %1881 = vmatpush1.bf16.msra.mxu0 %v341
      %1882 = vmatprep.subr.bf16.mxu0 0
      %1883 = vmatpush1.bf16.msra.mxu0 %v342
      %1884 = vmatprep.subr.bf16.mxu0 0
      %1885 = vmatpush1.bf16.msra.mxu0 %v343
      %1886 = vmatprep.subr.bf16.mxu0 0
      %1887 = vmatpush1.bf16.msra.mxu0 %v344
      %1888 = vmatprep.mubr.bf16.mxu0 %v1853
      %1889 = vmatmul.mubr.bf16.gmra.mrb[0].mxu0 %v1852
      %v1890 = vpop.f32.mrb[0].mxu0
      %v1891 = vadd.f32 0.0, %v1890
      %v1892 = vpop.f32.mrb[0].mxu0
      %v1893 = vpop.f32.mrb[0].mxu0
      %v1894 = vadd.f32 0.0, %v1893
      %v1895 = vpop.f32.mrb[0].mxu0
      %1896 = vdwg.mxu0
      %1897 = vmatprep.subr.bf16.mxu0 0
      %1898 = vmatpush1.bf16.msra.mxu0 %v345
      %1899 = vmatprep.subr.bf16.mxu0 0
      %1900 = vmatpush1.bf16.msra.mxu0 %v346
      %1901 = vmatprep.subr.bf16.mxu0 0
      %1902 = vmatpush1.bf16.msra.mxu0 %v347
      %1903 = vmatprep.subr.bf16.mxu0 0
      %1904 = vmatpush1.bf16.msra.mxu0 %v348
      %1905 = vmatprep.subr.bf16.mxu0 0
      %1906 = vmatpush1.bf16.msra.mxu0 %v349
      %1907 = vmatprep.subr.bf16.mxu0 0
      %1908 = vmatpush1.bf16.msra.mxu0 %v350
      %1909 = vmatprep.subr.bf16.mxu0 0
      %1910 = vmatpush1.bf16.msra.mxu0 %v351
      %1911 = vmatprep.subr.bf16.mxu0 0
      %1912 = vmatpush1.bf16.msra.mxu0 %v352
      %1913 = vmatprep.subr.bf16.mxu0 0
      %1914 = vmatpush1.bf16.msra.mxu0 %v353
      %1915 = vmatprep.subr.bf16.mxu0 0
      %1916 = vmatpush1.bf16.msra.mxu0 %v354
      %1917 = vmatprep.subr.bf16.mxu0 0
      %1918 = vmatpush1.bf16.msra.mxu0 %v355
      %1919 = vmatprep.subr.bf16.mxu0 0
      %1920 = vmatpush1.bf16.msra.mxu0 %v356
      %1921 = vmatprep.subr.bf16.mxu0 0
      %1922 = vmatpush1.bf16.msra.mxu0 %v357
      %1923 = vmatprep.subr.bf16.mxu0 0
      %1924 = vmatpush1.bf16.msra.mxu0 %v358
      %1925 = vmatprep.subr.bf16.mxu0 0
      %1926 = vmatpush1.bf16.msra.mxu0 %v359
      %1927 = vmatprep.subr.bf16.mxu0 0
      %1928 = vmatpush1.bf16.msra.mxu0 %v360
      %1929 = vmatprep.mubr.bf16.mxu0 %v1855
      %1930 = vmatmul.mubr.bf16.gmra.mrb[0].mxu0 %v1854
      %v1931 = vpop.f32.mrb[0].mxu0
      %v1932 = vadd.f32 %v1891, %v1931
      %v1933 = vpop.f32.mrb[0].mxu0
      %v1934 = vpop.f32.mrb[0].mxu0
      %v1935 = vadd.f32 %v1894, %v1934
      %v1936 = vpop.f32.mrb[0].mxu0
      %1937 = vdwg.mxu0
      %1938 = vmatprep.subr.bf16.mxu0 0
      %1939 = vmatpush1.bf16.msra.mxu0 %v409
      %1940 = vmatprep.subr.bf16.mxu0 0
      %1941 = vmatpush1.bf16.msra.mxu0 %v410
      %1942 = vmatprep.subr.bf16.mxu0 0
      %1943 = vmatpush1.bf16.msra.mxu0 %v411
      %1944 = vmatprep.subr.bf16.mxu0 0
      %1945 = vmatpush1.bf16.msra.mxu0 %v412
      %1946 = vmatprep.subr.bf16.mxu0 0
      %1947 = vmatpush1.bf16.msra.mxu0 %v413
      %1948 = vmatprep.subr.bf16.mxu0 0
      %1949 = vmatpush1.bf16.msra.mxu0 %v414
      %1950 = vmatprep.subr.bf16.mxu0 0
      %1951 = vmatpush1.bf16.msra.mxu0 %v415
      %1952 = vmatprep.subr.bf16.mxu0 0
      %1953 = vmatpush1.bf16.msra.mxu0 %v416
      %1954 = vmatprep.subr.bf16.mxu0 0
      %1955 = vmatpush1.bf16.msra.mxu0 0
      %1956 = vmatprep.subr.bf16.mxu0 0
      %1957 = vmatpush1.bf16.msra.mxu0 0
      %1958 = vmatprep.subr.bf16.mxu0 0
      %1959 = vmatpush1.bf16.msra.mxu0 0
      %1960 = vmatprep.subr.bf16.mxu0 0
      %1961 = vmatpush1.bf16.msra.mxu0 0
      %1962 = vmatprep.subr.bf16.mxu0 0
      %1963 = vmatpush1.bf16.msra.mxu0 0
      %1964 = vmatprep.subr.bf16.mxu0 0
      %1965 = vmatpush1.bf16.msra.mxu0 0
      %1966 = vmatprep.subr.bf16.mxu0 0
      %1967 = vmatpush1.bf16.msra.mxu0 0
      %1968 = vmatprep.subr.bf16.mxu0 0
      %1969 = vmatpush1.bf16.msra.mxu0 0
      %1970 = vmatprep.mubr.bf16.mxu0 0
      %1971 = vmatmul.mubr.bf16.gmra.mrb[0].mxu0 %v796
      %v1972 = vpop.f32.mrb[0].mxu0
      %v1973 = vadd.f32 %v1932, %v1972
      %v1974 = vpop.f32.mrb[0].mxu0
      %v1975 = vpop.f32.mrb[0].mxu0
      %v1976 = vadd.f32 %v1935, %v1975
      %v1977 = vpop.f32.mrb[0].mxu0
      %1978 = vdwg.mxu0
      %s1980 = sor.u32 256, 16
      %1981 = vbcast.lane.b32.xlu0 %v800, %s1980
      %v1982 = vpop.permute.xlu0 %1981
      %s1984 = sor.u32 256, 24
      %1985 = vbcast.lane.b32.xlu0 %v800, %s1984
      %v1986 = vpop.permute.xlu0 %1985
      %s1988 = sor.u32 256, 16
      %1989 = vbcast.lane.b32.xlu0 %v811, %s1988
      %v1990 = vpop.permute.xlu0 %1989
      %s1992 = sor.u32 256, 24
      %1993 = vbcast.lane.b32.xlu0 %v811, %s1992
      %v1994 = vpop.permute.xlu0 %1993
      %s1996 = sor.u32 256, 16
      %1997 = vbcast.lane.b32.xlu0 %v822, %s1996
      %v1998 = vpop.permute.xlu0 %1997
      %s2000 = sor.u32 256, 24
      %2001 = vbcast.lane.b32.xlu0 %v822, %s2000
      %v2002 = vpop.permute.xlu0 %2001
      %s2004 = sor.u32 256, 16
      %2005 = vbcast.lane.b32.xlu0 %v833, %s2004
      %v2006 = vpop.permute.xlu0 %2005
      %s2008 = sor.u32 256, 24
      %2009 = vbcast.lane.b32.xlu0 %v833, %s2008
      %v2010 = vpop.permute.xlu0 %2009
      %s2012 = sor.u32 256, 16
      %2013 = vbcast.lane.b32.xlu0 %v844, %s2012
      %v2014 = vpop.permute.xlu0 %2013
      %s2016 = sor.u32 256, 24
      %2017 = vbcast.lane.b32.xlu0 %v844, %s2016
      %v2018 = vpop.permute.xlu0 %2017
      %s2020 = sor.u32 256, 16
      %2021 = vbcast.lane.b32.xlu0 %v855, %s2020
      %v2022 = vpop.permute.xlu0 %2021
      %s2024 = sor.u32 256, 24
      %2025 = vbcast.lane.b32.xlu0 %v855, %s2024
      %v2026 = vpop.permute.xlu0 %2025
      %s2028 = sor.u32 256, 16
      %2029 = vbcast.lane.b32.xlu0 %v866, %s2028
      %v2030 = vpop.permute.xlu0 %2029
      %s2032 = sor.u32 256, 24
      %2033 = vbcast.lane.b32.xlu0 %v866, %s2032
      %v2034 = vpop.permute.xlu0 %2033
      %s2036 = sor.u32 256, 16
      %2037 = vbcast.lane.b32.xlu0 %v877, %s2036
      %v2038 = vpop.permute.xlu0 %2037
      %s2040 = sor.u32 256, 24
      %2041 = vbcast.lane.b32.xlu0 %v877, %s2040
      %v2042 = vpop.permute.xlu0 %2041
      %s2044 = sor.u32 256, 16
      %2045 = vbcast.lane.b32.xlu0 %v888, %s2044
      %v2046 = vpop.permute.xlu0 %2045
      %s2048 = sor.u32 256, 24
      %2049 = vbcast.lane.b32.xlu0 %v888, %s2048
      %v2050 = vpop.permute.xlu0 %2049
      %s2052 = sor.u32 256, 16
      %2053 = vbcast.lane.b32.xlu0 %v899, %s2052
      %v2054 = vpop.permute.xlu0 %2053
      %s2056 = sor.u32 256, 24
      %2057 = vbcast.lane.b32.xlu0 %v899, %s2056
      %v2058 = vpop.permute.xlu0 %2057
      %s2060 = sor.u32 256, 16
      %2061 = vbcast.lane.b32.xlu0 %v910, %s2060
      %v2062 = vpop.permute.xlu0 %2061
      %s2064 = sor.u32 256, 24
      %2065 = vbcast.lane.b32.xlu0 %v910, %s2064
      %v2066 = vpop.permute.xlu0 %2065
      %s2068 = sor.u32 256, 16
      %2069 = vbcast.lane.b32.xlu0 %v921, %s2068
      %v2070 = vpop.permute.xlu0 %2069
      %s2072 = sor.u32 256, 24
      %2073 = vbcast.lane.b32.xlu0 %v921, %s2072
      %v2074 = vpop.permute.xlu0 %2073
      %s2076 = sor.u32 256, 16
      %2077 = vbcast.lane.b32.xlu0 %v932, %s2076
      %v2078 = vpop.permute.xlu0 %2077
      %s2080 = sor.u32 256, 24
      %2081 = vbcast.lane.b32.xlu0 %v932, %s2080
      %v2082 = vpop.permute.xlu0 %2081
      %s2084 = sor.u32 256, 16
      %2085 = vbcast.lane.b32.xlu0 %v943, %s2084
      %v2086 = vpop.permute.xlu0 %2085
      %s2088 = sor.u32 256, 24
      %2089 = vbcast.lane.b32.xlu0 %v943, %s2088
      %v2090 = vpop.permute.xlu0 %2089
      %s2092 = sor.u32 256, 16
      %2093 = vbcast.lane.b32.xlu0 %v954, %s2092
      %v2094 = vpop.permute.xlu0 %2093
      %s2096 = sor.u32 256, 24
      %2097 = vbcast.lane.b32.xlu0 %v954, %s2096
      %v2098 = vpop.permute.xlu0 %2097
      %s2100 = sor.u32 256, 16
      %2101 = vbcast.lane.b32.xlu0 %v965, %s2100
      %v2102 = vpop.permute.xlu0 %2101
      %s2104 = sor.u32 256, 24
      %2105 = vbcast.lane.b32.xlu0 %v965, %s2104
      %v2106 = vpop.permute.xlu0 %2105
      %v2107 = vmul.f32 %v1982, %v1076
      %v2108 = vmul.f32 %v1986, %v1076
      %v2109 = vmul.f32 %v1990, %v1080
      %v2110 = vmul.f32 %v1994, %v1080
      %v2111 = vmul.f32 %v1998, %v1084
      %v2112 = vmul.f32 %v2002, %v1084
      %v2113 = vmul.f32 %v2006, %v1088
      %v2114 = vmul.f32 %v2010, %v1088
      %v2115 = vmul.f32 %v2014, %v1092
      %v2116 = vmul.f32 %v2018, %v1092
      %v2117 = vmul.f32 %v2022, %v1096
      %v2118 = vmul.f32 %v2026, %v1096
      %v2119 = vmul.f32 %v2030, %v1100
      %v2120 = vmul.f32 %v2034, %v1100
      %v2121 = vmul.f32 %v2038, %v1104
      %v2122 = vmul.f32 %v2042, %v1104
      %v2123 = vmul.f32 %v2046, %v1108
      %v2124 = vmul.f32 %v2050, %v1108
      %v2125 = vmul.f32 %v2054, %v1112
      %v2126 = vmul.f32 %v2058, %v1112
      %v2127 = vmul.f32 %v2062, %v1116
      %v2128 = vmul.f32 %v2066, %v1116
      %v2129 = vmul.f32 %v2070, %v1120
      %v2130 = vmul.f32 %v2074, %v1120
      %v2131 = vmul.f32 %v2078, %v1124
      %v2132 = vmul.f32 %v2082, %v1124
      %v2133 = vmul.f32 %v2086, %v1128
      %v2134 = vmul.f32 %v2090, %v1128
      %v2135 = vmul.f32 %v2094, %v1132
      %v2136 = vmul.f32 %v2098, %v1132
      %v2137 = vmul.f32 %v2102, %v1136
      %v2138 = vmul.f32 %v2106, %v1136
      %v2139 = vcombine.low %v2107, %v2111
      %v2140 = vcombine.high %v2107, %v2111
      %v2142 = vunpack.c.l.s4 1983009808
      %v2143 = vunpack.c.0.s8 %v2142
      %v2144 = vlaneseq
      %v2145 = vshrl.u32 %v2144, 7
      %v2146 = vsub.s32 %v2143, %v2145
      %v2147 = vrot.slane %v2139, %v2146
      %v2149 = vunpack.c.l.s4 1983009808
      %v2150 = vunpack.c.0.s8 %v2149
      %v2151 = vlaneseq
      %v2152 = vshrl.u32 %v2151, 7
      %v2153 = vsub.s32 %v2150, %v2152
      %v2154 = vrot.slane %v2140, %v2153
      %v2155 = vcombine.low %v2109, %v2113
      %v2156 = vcombine.high %v2109, %v2113
      %v2158 = vunpack.c.l.s4 1983009808
      %v2159 = vunpack.c.0.s8 %v2158
      %v2160 = vlaneseq
      %v2161 = vshrl.u32 %v2160, 7
      %v2162 = vsub.s32 %v2159, %v2161
      %v2163 = vrot.slane %v2155, %v2162
      %v2165 = vunpack.c.l.s4 1983009808
      %v2166 = vunpack.c.0.s8 %v2165
      %v2167 = vlaneseq
      %v2168 = vshrl.u32 %v2167, 7
      %v2169 = vsub.s32 %v2166, %v2168
      %v2170 = vrot.slane %v2156, %v2169
      %v2171 = vcombine.low %v2115, %v2119
      %v2172 = vcombine.high %v2115, %v2119
      %v2174 = vunpack.c.l.s4 1983009808
      %v2175 = vunpack.c.0.s8 %v2174
      %v2176 = vlaneseq
      %v2177 = vshrl.u32 %v2176, 7
      %v2178 = vsub.s32 %v2175, %v2177
      %v2179 = vrot.slane %v2171, %v2178
      %v2181 = vunpack.c.l.s4 1983009808
      %v2182 = vunpack.c.0.s8 %v2181
      %v2183 = vlaneseq
      %v2184 = vshrl.u32 %v2183, 7
      %v2185 = vsub.s32 %v2182, %v2184
      %v2186 = vrot.slane %v2172, %v2185
      %v2187 = vcombine.low %v2117, %v2121
      %v2188 = vcombine.high %v2117, %v2121
      %v2190 = vunpack.c.l.s4 1983009808
      %v2191 = vunpack.c.0.s8 %v2190
      %v2192 = vlaneseq
      %v2193 = vshrl.u32 %v2192, 7
      %v2194 = vsub.s32 %v2191, %v2193
      %v2195 = vrot.slane %v2187, %v2194
      %v2197 = vunpack.c.l.s4 1983009808
      %v2198 = vunpack.c.0.s8 %v2197
      %v2199 = vlaneseq
      %v2200 = vshrl.u32 %v2199, 7
      %v2201 = vsub.s32 %v2198, %v2200
      %v2202 = vrot.slane %v2188, %v2201
      %v2203 = vcombine.low %v2147, %v2163
      %v2204 = vcombine.high %v2147, %v2163
      %v2206 = vunpack.c.l.s4 1934713408
      %v2207 = vunpack.c.0.s8 %v2206
      %v2208 = vlaneseq
      %v2209 = vshrl.u32 %v2208, 7
      %v2210 = vsub.s32 %v2207, %v2209
      %v2211 = vrot.slane %v2203, %v2210
      %v2213 = vunpack.c.l.s4 1934713408
      %v2214 = vunpack.c.0.s8 %v2213
      %v2215 = vlaneseq
      %v2216 = vshrl.u32 %v2215, 7
      %v2217 = vsub.s32 %v2214, %v2216
      %v2218 = vrot.slane %v2204, %v2217
      %v2219 = vcombine.low %v2154, %v2170
      %v2220 = vcombine.high %v2154, %v2170
      %v2222 = vunpack.c.l.s4 1934713408
      %v2223 = vunpack.c.0.s8 %v2222
      %v2224 = vlaneseq
      %v2225 = vshrl.u32 %v2224, 7
      %v2226 = vsub.s32 %v2223, %v2225
      %v2227 = vrot.slane %v2219, %v2226
      %v2229 = vunpack.c.l.s4 1934713408
      %v2230 = vunpack.c.0.s8 %v2229
      %v2231 = vlaneseq
      %v2232 = vshrl.u32 %v2231, 7
      %v2233 = vsub.s32 %v2230, %v2232
      %v2234 = vrot.slane %v2220, %v2233
      %v2235 = vcombine.low %v2179, %v2195
      %v2236 = vcombine.high %v2179, %v2195
      %v2238 = vunpack.c.l.s4 1934713408
      %v2239 = vunpack.c.0.s8 %v2238
      %v2240 = vlaneseq
      %v2241 = vshrl.u32 %v2240, 7
      %v2242 = vsub.s32 %v2239, %v2241
      %v2243 = vrot.slane %v2235, %v2242
      %v2245 = vunpack.c.l.s4 1934713408
      %v2246 = vunpack.c.0.s8 %v2245
      %v2247 = vlaneseq
      %v2248 = vshrl.u32 %v2247, 7
      %v2249 = vsub.s32 %v2246, %v2248
      %v2250 = vrot.slane %v2236, %v2249
      %v2251 = vcombine.low %v2186, %v2202
      %v2252 = vcombine.high %v2186, %v2202
      %v2254 = vunpack.c.l.s4 1934713408
      %v2255 = vunpack.c.0.s8 %v2254
      %v2256 = vlaneseq
      %v2257 = vshrl.u32 %v2256, 7
      %v2258 = vsub.s32 %v2255, %v2257
      %v2259 = vrot.slane %v2251, %v2258
      %v2261 = vunpack.c.l.s4 1934713408
      %v2262 = vunpack.c.0.s8 %v2261
      %v2263 = vlaneseq
      %v2264 = vshrl.u32 %v2263, 7
      %v2265 = vsub.s32 %v2262, %v2264
      %v2266 = vrot.slane %v2252, %v2265
      %v2267 = vcombine.low %v2211, %v2243
      %v2268 = vcombine.high %v2211, %v2243
      %v2269 = vcombine.low %v2218, %v2250
      %v2270 = vcombine.high %v2218, %v2250
      %v2271 = vcombine.low %v2227, %v2259
      %v2272 = vcombine.high %v2227, %v2259
      %v2273 = vcombine.low %v2234, %v2266
      %v2274 = vcombine.high %v2234, %v2266
      %v2275 = vcombine.low %v2123, %v2127
      %v2276 = vcombine.high %v2123, %v2127
      %v2278 = vunpack.c.l.s4 1983009808
      %v2279 = vunpack.c.0.s8 %v2278
      %v2280 = vlaneseq
      %v2281 = vshrl.u32 %v2280, 7
      %v2282 = vsub.s32 %v2279, %v2281
      %v2283 = vrot.slane %v2275, %v2282
      %v2285 = vunpack.c.l.s4 1983009808
      %v2286 = vunpack.c.0.s8 %v2285
      %v2287 = vlaneseq
      %v2288 = vshrl.u32 %v2287, 7
      %v2289 = vsub.s32 %v2286, %v2288
      %v2290 = vrot.slane %v2276, %v2289
      %v2291 = vcombine.low %v2125, %v2129
      %v2292 = vcombine.high %v2125, %v2129
      %v2294 = vunpack.c.l.s4 1983009808
      %v2295 = vunpack.c.0.s8 %v2294
      %v2296 = vlaneseq
      %v2297 = vshrl.u32 %v2296, 7
      %v2298 = vsub.s32 %v2295, %v2297
      %v2299 = vrot.slane %v2291, %v2298
      %v2301 = vunpack.c.l.s4 1983009808
      %v2302 = vunpack.c.0.s8 %v2301
      %v2303 = vlaneseq
      %v2304 = vshrl.u32 %v2303, 7
      %v2305 = vsub.s32 %v2302, %v2304
      %v2306 = vrot.slane %v2292, %v2305
      %v2307 = vcombine.low %v2131, %v2135
      %v2308 = vcombine.high %v2131, %v2135
      %v2310 = vunpack.c.l.s4 1983009808
      %v2311 = vunpack.c.0.s8 %v2310
      %v2312 = vlaneseq
      %v2313 = vshrl.u32 %v2312, 7
      %v2314 = vsub.s32 %v2311, %v2313
      %v2315 = vrot.slane %v2307, %v2314
      %v2317 = vunpack.c.l.s4 1983009808
      %v2318 = vunpack.c.0.s8 %v2317
      %v2319 = vlaneseq
      %v2320 = vshrl.u32 %v2319, 7
      %v2321 = vsub.s32 %v2318, %v2320
      %v2322 = vrot.slane %v2308, %v2321
      %v2323 = vcombine.low %v2133, %v2137
      %v2324 = vcombine.high %v2133, %v2137
      %v2326 = vunpack.c.l.s4 1983009808
      %v2327 = vunpack.c.0.s8 %v2326
      %v2328 = vlaneseq
      %v2329 = vshrl.u32 %v2328, 7
      %v2330 = vsub.s32 %v2327, %v2329
      %v2331 = vrot.slane %v2323, %v2330
      %v2333 = vunpack.c.l.s4 1983009808
      %v2334 = vunpack.c.0.s8 %v2333
      %v2335 = vlaneseq
      %v2336 = vshrl.u32 %v2335, 7
      %v2337 = vsub.s32 %v2334, %v2336
      %v2338 = vrot.slane %v2324, %v2337
      %v2339 = vcombine.low %v2283, %v2299
      %v2340 = vcombine.high %v2283, %v2299
      %v2342 = vunpack.c.l.s4 1934713408
      %v2343 = vunpack.c.0.s8 %v2342
      %v2344 = vlaneseq
      %v2345 = vshrl.u32 %v2344, 7
      %v2346 = vsub.s32 %v2343, %v2345
      %v2347 = vrot.slane %v2339, %v2346
      %v2349 = vunpack.c.l.s4 1934713408
      %v2350 = vunpack.c.0.s8 %v2349
      %v2351 = vlaneseq
      %v2352 = vshrl.u32 %v2351, 7
      %v2353 = vsub.s32 %v2350, %v2352
      %v2354 = vrot.slane %v2340, %v2353
      %v2355 = vcombine.low %v2290, %v2306
      %v2356 = vcombine.high %v2290, %v2306
      %v2358 = vunpack.c.l.s4 1934713408
      %v2359 = vunpack.c.0.s8 %v2358
      %v2360 = vlaneseq
      %v2361 = vshrl.u32 %v2360, 7
      %v2362 = vsub.s32 %v2359, %v2361
      %v2363 = vrot.slane %v2355, %v2362
      %v2365 = vunpack.c.l.s4 1934713408
      %v2366 = vunpack.c.0.s8 %v2365
      %v2367 = vlaneseq
      %v2368 = vshrl.u32 %v2367, 7
      %v2369 = vsub.s32 %v2366, %v2368
      %v2370 = vrot.slane %v2356, %v2369
      %v2371 = vcombine.low %v2315, %v2331
      %v2372 = vcombine.high %v2315, %v2331
      %v2374 = vunpack.c.l.s4 1934713408
      %v2375 = vunpack.c.0.s8 %v2374
      %v2376 = vlaneseq
      %v2377 = vshrl.u32 %v2376, 7
      %v2378 = vsub.s32 %v2375, %v2377
      %v2379 = vrot.slane %v2371, %v2378
      %v2381 = vunpack.c.l.s4 1934713408
      %v2382 = vunpack.c.0.s8 %v2381
      %v2383 = vlaneseq
      %v2384 = vshrl.u32 %v2383, 7
      %v2385 = vsub.s32 %v2382, %v2384
      %v2386 = vrot.slane %v2372, %v2385
      %v2387 = vcombine.low %v2322, %v2338
      %v2388 = vcombine.high %v2322, %v2338
      %v2390 = vunpack.c.l.s4 1934713408
      %v2391 = vunpack.c.0.s8 %v2390
      %v2392 = vlaneseq
      %v2393 = vshrl.u32 %v2392, 7
      %v2394 = vsub.s32 %v2391, %v2393
      %v2395 = vrot.slane %v2387, %v2394
      %v2397 = vunpack.c.l.s4 1934713408
      %v2398 = vunpack.c.0.s8 %v2397
      %v2399 = vlaneseq
      %v2400 = vshrl.u32 %v2399, 7
      %v2401 = vsub.s32 %v2398, %v2400
      %v2402 = vrot.slane %v2388, %v2401
      %v2403 = vcombine.low %v2347, %v2379
      %v2404 = vcombine.high %v2347, %v2379
      %v2405 = vcombine.low %v2354, %v2386
      %v2406 = vcombine.high %v2354, %v2386
      %v2407 = vcombine.low %v2363, %v2395
      %v2408 = vcombine.high %v2363, %v2395
      %v2409 = vcombine.low %v2370, %v2402
      %v2410 = vcombine.high %v2370, %v2402
      %v2411 = vcombine.low %v2108, %v2112
      %v2412 = vcombine.high %v2108, %v2112
      %v2414 = vunpack.c.l.s4 1983009808
      %v2415 = vunpack.c.0.s8 %v2414
      %v2416 = vlaneseq
      %v2417 = vshrl.u32 %v2416, 7
      %v2418 = vsub.s32 %v2415, %v2417
      %v2419 = vrot.slane %v2411, %v2418
      %v2421 = vunpack.c.l.s4 1983009808
      %v2422 = vunpack.c.0.s8 %v2421
      %v2423 = vlaneseq
      %v2424 = vshrl.u32 %v2423, 7
      %v2425 = vsub.s32 %v2422, %v2424
      %v2426 = vrot.slane %v2412, %v2425
      %v2427 = vcombine.low %v2110, %v2114
      %v2428 = vcombine.high %v2110, %v2114
      %v2430 = vunpack.c.l.s4 1983009808
      %v2431 = vunpack.c.0.s8 %v2430
      %v2432 = vlaneseq
      %v2433 = vshrl.u32 %v2432, 7
      %v2434 = vsub.s32 %v2431, %v2433
      %v2435 = vrot.slane %v2427, %v2434
      %v2437 = vunpack.c.l.s4 1983009808
      %v2438 = vunpack.c.0.s8 %v2437
      %v2439 = vlaneseq
      %v2440 = vshrl.u32 %v2439, 7
      %v2441 = vsub.s32 %v2438, %v2440
      %v2442 = vrot.slane %v2428, %v2441
      %v2443 = vcombine.low %v2116, %v2120
      %v2444 = vcombine.high %v2116, %v2120
      %v2446 = vunpack.c.l.s4 1983009808
      %v2447 = vunpack.c.0.s8 %v2446
      %v2448 = vlaneseq
      %v2449 = vshrl.u32 %v2448, 7
      %v2450 = vsub.s32 %v2447, %v2449
      %v2451 = vrot.slane %v2443, %v2450
      %v2453 = vunpack.c.l.s4 1983009808
      %v2454 = vunpack.c.0.s8 %v2453
      %v2455 = vlaneseq
      %v2456 = vshrl.u32 %v2455, 7
      %v2457 = vsub.s32 %v2454, %v2456
      %v2458 = vrot.slane %v2444, %v2457
      %v2459 = vcombine.low %v2118, %v2122
      %v2460 = vcombine.high %v2118, %v2122
      %v2462 = vunpack.c.l.s4 1983009808
      %v2463 = vunpack.c.0.s8 %v2462
      %v2464 = vlaneseq
      %v2465 = vshrl.u32 %v2464, 7
      %v2466 = vsub.s32 %v2463, %v2465
      %v2467 = vrot.slane %v2459, %v2466
      %v2469 = vunpack.c.l.s4 1983009808
      %v2470 = vunpack.c.0.s8 %v2469
      %v2471 = vlaneseq
      %v2472 = vshrl.u32 %v2471, 7
      %v2473 = vsub.s32 %v2470, %v2472
      %v2474 = vrot.slane %v2460, %v2473
      %v2475 = vcombine.low %v2419, %v2435
      %v2476 = vcombine.high %v2419, %v2435
      %v2478 = vunpack.c.l.s4 1934713408
      %v2479 = vunpack.c.0.s8 %v2478
      %v2480 = vlaneseq
      %v2481 = vshrl.u32 %v2480, 7
      %v2482 = vsub.s32 %v2479, %v2481
      %v2483 = vrot.slane %v2475, %v2482
      %v2485 = vunpack.c.l.s4 1934713408
      %v2486 = vunpack.c.0.s8 %v2485
      %v2487 = vlaneseq
      %v2488 = vshrl.u32 %v2487, 7
      %v2489 = vsub.s32 %v2486, %v2488
      %v2490 = vrot.slane %v2476, %v2489
      %v2491 = vcombine.low %v2426, %v2442
      %v2492 = vcombine.high %v2426, %v2442
      %v2494 = vunpack.c.l.s4 1934713408
      %v2495 = vunpack.c.0.s8 %v2494
      %v2496 = vlaneseq
      %v2497 = vshrl.u32 %v2496, 7
      %v2498 = vsub.s32 %v2495, %v2497
      %v2499 = vrot.slane %v2491, %v2498
      %v2501 = vunpack.c.l.s4 1934713408
      %v2502 = vunpack.c.0.s8 %v2501
      %v2503 = vlaneseq
      %v2504 = vshrl.u32 %v2503, 7
      %v2505 = vsub.s32 %v2502, %v2504
      %v2506 = vrot.slane %v2492, %v2505
      %v2507 = vcombine.low %v2451, %v2467
      %v2508 = vcombine.high %v2451, %v2467
      %v2510 = vunpack.c.l.s4 1934713408
      %v2511 = vunpack.c.0.s8 %v2510
      %v2512 = vlaneseq
      %v2513 = vshrl.u32 %v2512, 7
      %v2514 = vsub.s32 %v2511, %v2513
      %v2515 = vrot.slane %v2507, %v2514
      %v2517 = vunpack.c.l.s4 1934713408
      %v2518 = vunpack.c.0.s8 %v2517
      %v2519 = vlaneseq
      %v2520 = vshrl.u32 %v2519, 7
      %v2521 = vsub.s32 %v2518, %v2520
      %v2522 = vrot.slane %v2508, %v2521
      %v2523 = vcombine.low %v2458, %v2474
      %v2524 = vcombine.high %v2458, %v2474
      %v2526 = vunpack.c.l.s4 1934713408
      %v2527 = vunpack.c.0.s8 %v2526
      %v2528 = vlaneseq
      %v2529 = vshrl.u32 %v2528, 7
      %v2530 = vsub.s32 %v2527, %v2529
      %v2531 = vrot.slane %v2523, %v2530
      %v2533 = vunpack.c.l.s4 1934713408
      %v2534 = vunpack.c.0.s8 %v2533
      %v2535 = vlaneseq
      %v2536 = vshrl.u32 %v2535, 7
      %v2537 = vsub.s32 %v2534, %v2536
      %v2538 = vrot.slane %v2524, %v2537
      %v2539 = vcombine.low %v2483, %v2515
      %v2540 = vcombine.high %v2483, %v2515
      %v2541 = vcombine.low %v2490, %v2522
      %v2542 = vcombine.high %v2490, %v2522
      %v2543 = vcombine.low %v2499, %v2531
      %v2544 = vcombine.high %v2499, %v2531
      %v2545 = vcombine.low %v2506, %v2538
      %v2546 = vcombine.high %v2506, %v2538
      %v2547 = vcombine.low %v2124, %v2128
      %v2548 = vcombine.high %v2124, %v2128
      %v2550 = vunpack.c.l.s4 1983009808
      %v2551 = vunpack.c.0.s8 %v2550
      %v2552 = vlaneseq
      %v2553 = vshrl.u32 %v2552, 7
      %v2554 = vsub.s32 %v2551, %v2553
      %v2555 = vrot.slane %v2547, %v2554
      %v2557 = vunpack.c.l.s4 1983009808
      %v2558 = vunpack.c.0.s8 %v2557
      %v2559 = vlaneseq
      %v2560 = vshrl.u32 %v2559, 7
      %v2561 = vsub.s32 %v2558, %v2560
      %v2562 = vrot.slane %v2548, %v2561
      %v2563 = vcombine.low %v2126, %v2130
      %v2564 = vcombine.high %v2126, %v2130
      %v2566 = vunpack.c.l.s4 1983009808
      %v2567 = vunpack.c.0.s8 %v2566
      %v2568 = vlaneseq
      %v2569 = vshrl.u32 %v2568, 7
      %v2570 = vsub.s32 %v2567, %v2569
      %v2571 = vrot.slane %v2563, %v2570
      %v2573 = vunpack.c.l.s4 1983009808
      %v2574 = vunpack.c.0.s8 %v2573
      %v2575 = vlaneseq
      %v2576 = vshrl.u32 %v2575, 7
      %v2577 = vsub.s32 %v2574, %v2576
      %v2578 = vrot.slane %v2564, %v2577
      %v2579 = vcombine.low %v2132, %v2136
      %v2580 = vcombine.high %v2132, %v2136
      %v2582 = vunpack.c.l.s4 1983009808
      %v2583 = vunpack.c.0.s8 %v2582
      %v2584 = vlaneseq
      %v2585 = vshrl.u32 %v2584, 7
      %v2586 = vsub.s32 %v2583, %v2585
      %v2587 = vrot.slane %v2579, %v2586
      %v2589 = vunpack.c.l.s4 1983009808
      %v2590 = vunpack.c.0.s8 %v2589
      %v2591 = vlaneseq
      %v2592 = vshrl.u32 %v2591, 7
      %v2593 = vsub.s32 %v2590, %v2592
      %v2594 = vrot.slane %v2580, %v2593
      %v2595 = vcombine.low %v2134, %v2138
      %v2596 = vcombine.high %v2134, %v2138
      %v2598 = vunpack.c.l.s4 1983009808
      %v2599 = vunpack.c.0.s8 %v2598
      %v2600 = vlaneseq
      %v2601 = vshrl.u32 %v2600, 7
      %v2602 = vsub.s32 %v2599, %v2601
      %v2603 = vrot.slane %v2595, %v2602
      %v2605 = vunpack.c.l.s4 1983009808
      %v2606 = vunpack.c.0.s8 %v2605
      %v2607 = vlaneseq
      %v2608 = vshrl.u32 %v2607, 7
      %v2609 = vsub.s32 %v2606, %v2608
      %v2610 = vrot.slane %v2596, %v2609
      %v2611 = vcombine.low %v2555, %v2571
      %v2612 = vcombine.high %v2555, %v2571
      %v2614 = vunpack.c.l.s4 1934713408
      %v2615 = vunpack.c.0.s8 %v2614
      %v2616 = vlaneseq
      %v2617 = vshrl.u32 %v2616, 7
      %v2618 = vsub.s32 %v2615, %v2617
      %v2619 = vrot.slane %v2611, %v2618
      %v2621 = vunpack.c.l.s4 1934713408
      %v2622 = vunpack.c.0.s8 %v2621
      %v2623 = vlaneseq
      %v2624 = vshrl.u32 %v2623, 7
      %v2625 = vsub.s32 %v2622, %v2624
      %v2626 = vrot.slane %v2612, %v2625
      %v2627 = vcombine.low %v2562, %v2578
      %v2628 = vcombine.high %v2562, %v2578
      %v2630 = vunpack.c.l.s4 1934713408
      %v2631 = vunpack.c.0.s8 %v2630
      %v2632 = vlaneseq
      %v2633 = vshrl.u32 %v2632, 7
      %v2634 = vsub.s32 %v2631, %v2633
      %v2635 = vrot.slane %v2627, %v2634
      %v2637 = vunpack.c.l.s4 1934713408
      %v2638 = vunpack.c.0.s8 %v2637
      %v2639 = vlaneseq
      %v2640 = vshrl.u32 %v2639, 7
      %v2641 = vsub.s32 %v2638, %v2640
      %v2642 = vrot.slane %v2628, %v2641
      %v2643 = vcombine.low %v2587, %v2603
      %v2644 = vcombine.high %v2587, %v2603
      %v2646 = vunpack.c.l.s4 1934713408
      %v2647 = vunpack.c.0.s8 %v2646
      %v2648 = vlaneseq
      %v2649 = vshrl.u32 %v2648, 7
      %v2650 = vsub.s32 %v2647, %v2649
      %v2651 = vrot.slane %v2643, %v2650
      %v2653 = vunpack.c.l.s4 1934713408
      %v2654 = vunpack.c.0.s8 %v2653
      %v2655 = vlaneseq
      %v2656 = vshrl.u32 %v2655, 7
      %v2657 = vsub.s32 %v2654, %v2656
      %v2658 = vrot.slane %v2644, %v2657
      %v2659 = vcombine.low %v2594, %v2610
      %v2660 = vcombine.high %v2594, %v2610
      %v2662 = vunpack.c.l.s4 1934713408
      %v2663 = vunpack.c.0.s8 %v2662
      %v2664 = vlaneseq
      %v2665 = vshrl.u32 %v2664, 7
      %v2666 = vsub.s32 %v2663, %v2665
      %v2667 = vrot.slane %v2659, %v2666
      %v2669 = vunpack.c.l.s4 1934713408
      %v2670 = vunpack.c.0.s8 %v2669
      %v2671 = vlaneseq
      %v2672 = vshrl.u32 %v2671, 7
      %v2673 = vsub.s32 %v2670, %v2672
      %v2674 = vrot.slane %v2660, %v2673
      %v2675 = vcombine.low %v2619, %v2651
      %v2676 = vcombine.high %v2619, %v2651
      %v2677 = vcombine.low %v2626, %v2658
      %v2678 = vcombine.high %v2626, %v2658
      %v2679 = vcombine.low %v2635, %v2667
      %v2680 = vcombine.high %v2635, %v2667
      %v2681 = vcombine.low %v2642, %v2674
      %v2682 = vcombine.high %v2642, %v2674
      %2685 = vrot.lane.b32.xlu0 %v2268, 32
      %v2686 = vpop.permute.xlu0 %2685
      %2687 = vrot.lane.b32.xlu0 %v2404, 32
      %v2688 = vpop.permute.xlu0 %2687
      %2693 = vrot.lane.b32.xlu0 %v2269, 64
      %v2694 = vpop.permute.xlu0 %2693
      %2695 = vrot.lane.b32.xlu0 %v2405, 64
      %v2696 = vpop.permute.xlu0 %2695
      %2701 = vrot.lane.b32.xlu0 %v2270, 96
      %v2702 = vpop.permute.xlu0 %2701
      %2703 = vrot.lane.b32.xlu0 %v2406, 96
      %v2704 = vpop.permute.xlu0 %2703
      %2709 = vrot.lane.b32.xlu0 %v2272, 32
      %v2710 = vpop.permute.xlu0 %2709
      %2711 = vrot.lane.b32.xlu0 %v2408, 32
      %v2712 = vpop.permute.xlu0 %2711
      %2717 = vrot.lane.b32.xlu0 %v2273, 64
      %v2718 = vpop.permute.xlu0 %2717
      %2719 = vrot.lane.b32.xlu0 %v2409, 64
      %v2720 = vpop.permute.xlu0 %2719
      %2725 = vrot.lane.b32.xlu0 %v2274, 96
      %v2726 = vpop.permute.xlu0 %2725
      %2727 = vrot.lane.b32.xlu0 %v2410, 96
      %v2728 = vpop.permute.xlu0 %2727
      %2733 = vrot.lane.b32.xlu0 %v2540, 32
      %v2734 = vpop.permute.xlu0 %2733
      %2735 = vrot.lane.b32.xlu0 %v2676, 32
      %v2736 = vpop.permute.xlu0 %2735
      %2741 = vrot.lane.b32.xlu0 %v2541, 64
      %v2742 = vpop.permute.xlu0 %2741
      %2743 = vrot.lane.b32.xlu0 %v2677, 64
      %v2744 = vpop.permute.xlu0 %2743
      %2749 = vrot.lane.b32.xlu0 %v2542, 96
      %v2750 = vpop.permute.xlu0 %2749
      %2751 = vrot.lane.b32.xlu0 %v2678, 96
      %v2752 = vpop.permute.xlu0 %2751
      %2757 = vrot.lane.b32.xlu0 %v2544, 32
      %v2758 = vpop.permute.xlu0 %2757
      %2759 = vrot.lane.b32.xlu0 %v2680, 32
      %v2760 = vpop.permute.xlu0 %2759
      %2765 = vrot.lane.b32.xlu0 %v2545, 64
      %v2766 = vpop.permute.xlu0 %2765
      %2767 = vrot.lane.b32.xlu0 %v2681, 64
      %v2768 = vpop.permute.xlu0 %2767
      %2773 = vrot.lane.b32.xlu0 %v2546, 96
      %v2774 = vpop.permute.xlu0 %2773
      %2775 = vrot.lane.b32.xlu0 %v2682, 96
      %v2776 = vpop.permute.xlu0 %2775
      %v2779 = vsel %vm1825, %v2267, %v2686
      %v2780 = vsel %vm1825, %v2403, %v2688
      %v2781 = vsel %vm1828, %v2779, %v2694
      %v2782 = vsel %vm1828, %v2780, %v2696
      %v2783 = vsel %vm1831, %v2781, %v2702
      %v2784 = vsel %vm1831, %v2782, %v2704
      %v2785 = vsel %vm1825, %v2271, %v2710
      %v2786 = vsel %vm1825, %v2407, %v2712
      %v2787 = vsel %vm1828, %v2785, %v2718
      %v2788 = vsel %vm1828, %v2786, %v2720
      %v2789 = vsel %vm1831, %v2787, %v2726
      %v2790 = vsel %vm1831, %v2788, %v2728
      %v2791 = vsel %vm1825, %v2539, %v2734
      %v2792 = vsel %vm1825, %v2675, %v2736
      %v2793 = vsel %vm1828, %v2791, %v2742
      %v2794 = vsel %vm1828, %v2792, %v2744
      %v2795 = vsel %vm1831, %v2793, %v2750
      %v2796 = vsel %vm1831, %v2794, %v2752
      %v2797 = vsel %vm1825, %v2543, %v2758
      %v2798 = vsel %vm1825, %v2679, %v2760
      %v2799 = vsel %vm1828, %v2797, %v2766
      %v2800 = vsel %vm1828, %v2798, %v2768
      %v2801 = vsel %vm1831, %v2799, %v2774
      %v2802 = vsel %vm1831, %v2800, %v2776
      %v2803 = vpack.c.bf16 %v2784, %v2783
      %v2804 = vpack.c.bf16 %v2790, %v2789
      %v2805 = vpack.c.bf16 %v2796, %v2795
      %v2806 = vpack.c.bf16 %v2802, %v2801
      %2807 = vmatprep.subr.bf16.mxu0 0
      %2808 = vmatpush1.bf16.msra.mxu0 %v361
      %2809 = vmatprep.subr.bf16.mxu0 0
      %2810 = vmatpush1.bf16.msra.mxu0 %v362
      %2811 = vmatprep.subr.bf16.mxu0 0
      %2812 = vmatpush1.bf16.msra.mxu0 %v363
      %2813 = vmatprep.subr.bf16.mxu0 0
      %2814 = vmatpush1.bf16.msra.mxu0 %v364
      %2815 = vmatprep.subr.bf16.mxu0 0
      %2816 = vmatpush1.bf16.msra.mxu0 %v365
      %2817 = vmatprep.subr.bf16.mxu0 0
      %2818 = vmatpush1.bf16.msra.mxu0 %v366
      %2819 = vmatprep.subr.bf16.mxu0 0
      %2820 = vmatpush1.bf16.msra.mxu0 %v367
      %2821 = vmatprep.subr.bf16.mxu0 0
      %2822 = vmatpush1.bf16.msra.mxu0 %v368
      %2823 = vmatprep.subr.bf16.mxu0 0
      %2824 = vmatpush1.bf16.msra.mxu0 %v369
      %2825 = vmatprep.subr.bf16.mxu0 0
      %2826 = vmatpush1.bf16.msra.mxu0 %v370
      %2827 = vmatprep.subr.bf16.mxu0 0
      %2828 = vmatpush1.bf16.msra.mxu0 %v371
      %2829 = vmatprep.subr.bf16.mxu0 0
      %2830 = vmatpush1.bf16.msra.mxu0 %v372
      %2831 = vmatprep.subr.bf16.mxu0 0
      %2832 = vmatpush1.bf16.msra.mxu0 %v373
      %2833 = vmatprep.subr.bf16.mxu0 0
      %2834 = vmatpush1.bf16.msra.mxu0 %v374
      %2835 = vmatprep.subr.bf16.mxu0 0
      %2836 = vmatpush1.bf16.msra.mxu0 %v375
      %2837 = vmatprep.subr.bf16.mxu0 0
      %2838 = vmatpush1.bf16.msra.mxu0 %v376
      %2839 = vmatprep.mubr.bf16.mxu0 %v2804
      %2840 = vmatmul.mubr.bf16.gmra.mrb[0].mxu0 %v2803
      %v2841 = vpop.f32.mrb[0].mxu0
      %v2842 = vadd.f32 0.0, %v2841
      %v2843 = vpop.f32.mrb[0].mxu0
      %v2844 = vpop.f32.mrb[0].mxu0
      %v2845 = vadd.f32 0.0, %v2844
      %v2846 = vpop.f32.mrb[0].mxu0
      %2847 = vdwg.mxu0
      %2848 = vmatprep.subr.bf16.mxu0 0
      %2849 = vmatpush1.bf16.msra.mxu0 %v377
      %2850 = vmatprep.subr.bf16.mxu0 0
      %2851 = vmatpush1.bf16.msra.mxu0 %v378
      %2852 = vmatprep.subr.bf16.mxu0 0
      %2853 = vmatpush1.bf16.msra.mxu0 %v379
      %2854 = vmatprep.subr.bf16.mxu0 0
      %2855 = vmatpush1.bf16.msra.mxu0 %v380
      %2856 = vmatprep.subr.bf16.mxu0 0
      %2857 = vmatpush1.bf16.msra.mxu0 %v381
      %2858 = vmatprep.subr.bf16.mxu0 0
      %2859 = vmatpush1.bf16.msra.mxu0 %v382
      %2860 = vmatprep.subr.bf16.mxu0 0
      %2861 = vmatpush1.bf16.msra.mxu0 %v383
      %2862 = vmatprep.subr.bf16.mxu0 0
      %2863 = vmatpush1.bf16.msra.mxu0 %v384
      %2864 = vmatprep.subr.bf16.mxu0 0
      %2865 = vmatpush1.bf16.msra.mxu0 %v385
      %2866 = vmatprep.subr.bf16.mxu0 0
      %2867 = vmatpush1.bf16.msra.mxu0 %v386
      %2868 = vmatprep.subr.bf16.mxu0 0
      %2869 = vmatpush1.bf16.msra.mxu0 %v387
      %2870 = vmatprep.subr.bf16.mxu0 0
      %2871 = vmatpush1.bf16.msra.mxu0 %v388
      %2872 = vmatprep.subr.bf16.mxu0 0
      %2873 = vmatpush1.bf16.msra.mxu0 %v389
      %2874 = vmatprep.subr.bf16.mxu0 0
      %2875 = vmatpush1.bf16.msra.mxu0 %v390
      %2876 = vmatprep.subr.bf16.mxu0 0
      %2877 = vmatpush1.bf16.msra.mxu0 %v391
      %2878 = vmatprep.subr.bf16.mxu0 0
      %2879 = vmatpush1.bf16.msra.mxu0 %v392
      %2880 = vmatprep.mubr.bf16.mxu0 %v2806
      %2881 = vmatmul.mubr.bf16.gmra.mrb[0].mxu0 %v2805
      %v2882 = vpop.f32.mrb[0].mxu0
      %v2883 = vadd.f32 %v2842, %v2882
      %v2884 = vpop.f32.mrb[0].mxu0
      %v2885 = vpop.f32.mrb[0].mxu0
      %v2886 = vadd.f32 %v2845, %v2885
      %v2887 = vpop.f32.mrb[0].mxu0
      %2888 = vdwg.mxu0
      %v2889 = vadd.f32 %v1973, %v2883
      %v2890 = vadd.f32 %v1976, %v2886
      %v2891 = vpack.c.bf16 %v2890, %v2889
      %v2893 = vlaneseq
      %v2894 = vshrl.u32 %v2893, 7
      %v2895 = vsub.s32 0, %v2894
      %v2896 = vrot.slane %v417, %v2895
      %v2900 = vunpack.c.l.b16 %v199
      %v2901 = vunpack.c.l.b16 %v200
      %v2902 = vpack.c.b16 %v2901, %v2900
      %v2904 = vsel %vm628, %v2902, 0
      %2906 = vmatprep.subr.bf16.mxu0 0
      %2907 = vmatpush1.bf16.msra.mxu0 %v2891
      %2908 = vmatprep.subr.bf16.mxu0 0
      %2909 = vmatpush1.bf16.msra.mxu0 0
      %2910 = vmatprep.subr.bf16.mxu0 0
      %2911 = vmatpush1.bf16.msra.mxu0 0
      %2912 = vmatprep.subr.bf16.mxu0 0
      %2913 = vmatpush1.bf16.msra.mxu0 0
      %2914 = vmatprep.subr.bf16.mxu0 0
      %2915 = vmatpush1.bf16.msra.mxu0 0
      %2916 = vmatprep.subr.bf16.mxu0 0
      %2917 = vmatpush1.bf16.msra.mxu0 0
      %2918 = vmatprep.subr.bf16.mxu0 0
      %2919 = vmatpush1.bf16.msra.mxu0 0
      %2920 = vmatprep.subr.bf16.mxu0 0
      %2921 = vmatpush1.bf16.msra.mxu0 0
      %2922 = vmatprep.subr.bf16.mxu0 0
      %2923 = vmatpush1.bf16.msra.mxu0 0
      %2924 = vmatprep.subr.bf16.mxu0 0
      %2925 = vmatpush1.bf16.msra.mxu0 0
      %2926 = vmatprep.subr.bf16.mxu0 0
      %2927 = vmatpush1.bf16.msra.mxu0 0
      %2928 = vmatprep.subr.bf16.mxu0 0
      %2929 = vmatpush1.bf16.msra.mxu0 0
      %2930 = vmatprep.subr.bf16.mxu0 0
      %2931 = vmatpush1.bf16.msra.mxu0 0
      %2932 = vmatprep.subr.bf16.mxu0 0
      %2933 = vmatpush1.bf16.msra.mxu0 0
      %2934 = vmatprep.subr.bf16.mxu0 0
      %2935 = vmatpush1.bf16.msra.mxu0 0
      %2936 = vmatprep.subr.bf16.mxu0 0
      %2937 = vmatpush1.bf16.msra.mxu0 0
      %2938 = vmatprep.mubr.bf16.mxu0 0
      %2939 = vmatmul.mubr.bf16.gmra.mrb[0].mxu0 %v2904
      %v2940 = vpop.f32.mrb[0].mxu0
      %v2941 = vadd.f32 %v2896, %v2940
      %v2942 = vpop.f32.mrb[0].mxu0
      %v2943 = vpop.f32.mrb[0].mxu0
      %v2944 = vadd.f32 %v2896, %v2943
      %v2945 = vpop.f32.mrb[0].mxu0
      %2946 = vdwg.mxu0
      %v2947 = vmax.f32 %v2941, 0.0
      %v2948 = vmax.f32 %v2944, 0.0
      %v2949 = vpack.c.bf16 %v2948, %v2947
      %2950 = vmatprep.subr.bf16.mxu0 %v467
      %2951 = vmatpush1.bf16.msra.mxu0 %v466
      %2952 = vmatprep.subr.bf16.mxu0 %v470
      %2953 = vmatpush1.bf16.msra.mxu0 %v469
      %2954 = vmatprep.subr.bf16.mxu0 %v473
      %2955 = vmatpush1.bf16.msra.mxu0 %v472
      %2956 = vmatprep.subr.bf16.mxu0 %v476
      %2957 = vmatpush1.bf16.msra.mxu0 %v475
      %2958 = vmatprep.subr.bf16.mxu0 %v479
      %2959 = vmatpush1.bf16.msra.mxu0 %v478
      %2960 = vmatprep.subr.bf16.mxu0 %v482
      %2961 = vmatpush1.bf16.msra.mxu0 %v481
      %2962 = vmatprep.subr.bf16.mxu0 %v485
      %2963 = vmatpush1.bf16.msra.mxu0 %v484
      %2964 = vmatprep.subr.bf16.mxu0 %v488
      %2965 = vmatpush1.bf16.msra.mxu0 %v487
      %2966 = vmatprep.subr.bf16.mxu0 0
      %2967 = vmatpush1.bf16.msra.mxu0 0
      %2968 = vmatprep.subr.bf16.mxu0 0
      %2969 = vmatpush1.bf16.msra.mxu0 0
      %2970 = vmatprep.subr.bf16.mxu0 0
      %2971 = vmatpush1.bf16.msra.mxu0 0
      %2972 = vmatprep.subr.bf16.mxu0 0
      %2973 = vmatpush1.bf16.msra.mxu0 0
      %2974 = vmatprep.subr.bf16.mxu0 0
      %2975 = vmatpush1.bf16.msra.mxu0 0
      %2976 = vmatprep.subr.bf16.mxu0 0
      %2977 = vmatpush1.bf16.msra.mxu0 0
      %2978 = vmatprep.subr.bf16.mxu0 0
      %2979 = vmatpush1.bf16.msra.mxu0 0
      %2980 = vmatprep.subr.bf16.mxu0 0
      %2981 = vmatpush1.bf16.msra.mxu0 0
      %2982 = vmatprep.mubr.bf16.mxu0 0
      %2983 = vmatmul.mubr.bf16.gmra.mrb[0].mxu0 %v2949
      %v2984 = vpop.f32.mrb[0].mxu0
      %v2985 = vadd.f32 0.0, %v2984
      %v2986 = vpop.f32.mrb[0].mxu0
      %v2987 = vadd.f32 0.0, %v2986
      %v2988 = vpop.f32.mrb[0].mxu0
      %v2989 = vadd.f32 0.0, %v2988
      %v2990 = vpop.f32.mrb[0].mxu0
      %v2991 = vadd.f32 0.0, %v2990
      %2992 = vdwg.mxu0
      %2993 = vmatprep.subr.bf16.mxu0 0
      %2994 = vmatpush1.bf16.msra.mxu0 %v468
      %2995 = vmatprep.subr.bf16.mxu0 0
      %2996 = vmatpush1.bf16.msra.mxu0 %v471
      %2997 = vmatprep.subr.bf16.mxu0 0
      %2998 = vmatpush1.bf16.msra.mxu0 %v474
      %2999 = vmatprep.subr.bf16.mxu0 0
      %3000 = vmatpush1.bf16.msra.mxu0 %v477
      %3001 = vmatprep.subr.bf16.mxu0 0
      %3002 = vmatpush1.bf16.msra.mxu0 %v480
      %3003 = vmatprep.subr.bf16.mxu0 0
      %3004 = vmatpush1.bf16.msra.mxu0 %v483
      %3005 = vmatprep.subr.bf16.mxu0 0
      %3006 = vmatpush1.bf16.msra.mxu0 %v486
      %3007 = vmatprep.subr.bf16.mxu0 0
      %3008 = vmatpush1.bf16.msra.mxu0 %v489
      %3009 = vmatprep.subr.bf16.mxu0 0
      %3010 = vmatpush1.bf16.msra.mxu0 0
      %3011 = vmatprep.subr.bf16.mxu0 0
      %3012 = vmatpush1.bf16.msra.mxu0 0
      %3013 = vmatprep.subr.bf16.mxu0 0
      %3014 = vmatpush1.bf16.msra.mxu0 0
      %3015 = vmatprep.subr.bf16.mxu0 0
      %3016 = vmatpush1.bf16.msra.mxu0 0
      %3017 = vmatprep.subr.bf16.mxu0 0
      %3018 = vmatpush1.bf16.msra.mxu0 0
      %3019 = vmatprep.subr.bf16.mxu0 0
      %3020 = vmatpush1.bf16.msra.mxu0 0
      %3021 = vmatprep.subr.bf16.mxu0 0
      %3022 = vmatpush1.bf16.msra.mxu0 0
      %3023 = vmatprep.subr.bf16.mxu0 0
      %3024 = vmatpush1.bf16.msra.mxu0 0
      %3025 = vmatprep.mubr.bf16.mxu0 0
      %3026 = vmatmul.mubr.bf16.gmra.mrb[0].mxu0 %v2949
      %v3027 = vpop.f32.mrb[0].mxu0
      %v3028 = vadd.f32 0.0, %v3027
      %v3029 = vpop.f32.mrb[0].mxu0
      %v3030 = vpop.f32.mrb[0].mxu0
      %v3031 = vadd.f32 0.0, %v3030
      %v3032 = vpop.f32.mrb[0].mxu0
      %3033 = vdwg.mxu0
      %3034 = vmatprep.subr.bf16.mxu0 %v539
      %3035 = vmatpush1.bf16.msra.mxu0 %v538
      %3036 = vmatprep.subr.bf16.mxu0 %v542
      %3037 = vmatpush1.bf16.msra.mxu0 %v541
      %3038 = vmatprep.subr.bf16.mxu0 %v545
      %3039 = vmatpush1.bf16.msra.mxu0 %v544
      %3040 = vmatprep.subr.bf16.mxu0 %v548
      %3041 = vmatpush1.bf16.msra.mxu0 %v547
      %3042 = vmatprep.subr.bf16.mxu0 %v551
      %3043 = vmatpush1.bf16.msra.mxu0 %v550
      %3044 = vmatprep.subr.bf16.mxu0 %v554
      %3045 = vmatpush1.bf16.msra.mxu0 %v553
      %3046 = vmatprep.subr.bf16.mxu0 %v557
      %3047 = vmatpush1.bf16.msra.mxu0 %v556
      %3048 = vmatprep.subr.bf16.mxu0 %v560
      %3049 = vmatpush1.bf16.msra.mxu0 %v559
      %3050 = vmatprep.subr.bf16.mxu0 0
      %3051 = vmatpush1.bf16.msra.mxu0 0
      %3052 = vmatprep.subr.bf16.mxu0 0
      %3053 = vmatpush1.bf16.msra.mxu0 0
      %3054 = vmatprep.subr.bf16.mxu0 0
      %3055 = vmatpush1.bf16.msra.mxu0 0
      %3056 = vmatprep.subr.bf16.mxu0 0
      %3057 = vmatpush1.bf16.msra.mxu0 0
      %3058 = vmatprep.subr.bf16.mxu0 0
      %3059 = vmatpush1.bf16.msra.mxu0 0
      %3060 = vmatprep.subr.bf16.mxu0 0
      %3061 = vmatpush1.bf16.msra.mxu0 0
      %3062 = vmatprep.subr.bf16.mxu0 0
      %3063 = vmatpush1.bf16.msra.mxu0 0
      %3064 = vmatprep.subr.bf16.mxu0 0
      %3065 = vmatpush1.bf16.msra.mxu0 0
      %3066 = vmatprep.mubr.bf16.mxu0 0
      %3067 = vmatmul.mubr.bf16.gmra.mrb[0].mxu0 %v746
      %v3068 = vpop.f32.mrb[0].mxu0
      %v3069 = vadd.f32 0.0, %v3068
      %v3070 = vpop.f32.mrb[0].mxu0
      %v3071 = vadd.f32 0.0, %v3070
      %v3072 = vpop.f32.mrb[0].mxu0
      %v3073 = vadd.f32 0.0, %v3072
      %v3074 = vpop.f32.mrb[0].mxu0
      %v3075 = vadd.f32 0.0, %v3074
      %3076 = vdwg.mxu0
      %3077 = vmatprep.subr.bf16.mxu0 0
      %3078 = vmatpush1.bf16.msra.mxu0 %v540
      %3079 = vmatprep.subr.bf16.mxu0 0
      %3080 = vmatpush1.bf16.msra.mxu0 %v543
      %3081 = vmatprep.subr.bf16.mxu0 0
      %3082 = vmatpush1.bf16.msra.mxu0 %v546
      %3083 = vmatprep.subr.bf16.mxu0 0
      %3084 = vmatpush1.bf16.msra.mxu0 %v549
      %3085 = vmatprep.subr.bf16.mxu0 0
      %3086 = vmatpush1.bf16.msra.mxu0 %v552
      %3087 = vmatprep.subr.bf16.mxu0 0
      %3088 = vmatpush1.bf16.msra.mxu0 %v555
      %3089 = vmatprep.subr.bf16.mxu0 0
      %3090 = vmatpush1.bf16.msra.mxu0 %v558
      %3091 = vmatprep.subr.bf16.mxu0 0
      %3092 = vmatpush1.bf16.msra.mxu0 %v561
      %3093 = vmatprep.subr.bf16.mxu0 0
      %3094 = vmatpush1.bf16.msra.mxu0 0
      %3095 = vmatprep.subr.bf16.mxu0 0
      %3096 = vmatpush1.bf16.msra.mxu0 0
      %3097 = vmatprep.subr.bf16.mxu0 0
      %3098 = vmatpush1.bf16.msra.mxu0 0
      %3099 = vmatprep.subr.bf16.mxu0 0
      %3100 = vmatpush1.bf16.msra.mxu0 0
      %3101 = vmatprep.subr.bf16.mxu0 0
      %3102 = vmatpush1.bf16.msra.mxu0 0
      %3103 = vmatprep.subr.bf16.mxu0 0
      %3104 = vmatpush1.bf16.msra.mxu0 0
      %3105 = vmatprep.subr.bf16.mxu0 0
      %3106 = vmatpush1.bf16.msra.mxu0 0
      %3107 = vmatprep.subr.bf16.mxu0 0
      %3108 = vmatpush1.bf16.msra.mxu0 0
      %3109 = vmatprep.mubr.bf16.mxu0 0
      %3110 = vmatmul.mubr.bf16.gmra.mrb[0].mxu0 %v746
      %v3111 = vpop.f32.mrb[0].mxu0
      %v3112 = vadd.f32 0.0, %v3111
      %v3113 = vpop.f32.mrb[0].mxu0
      %v3114 = vpop.f32.mrb[0].mxu0
      %v3115 = vadd.f32 0.0, %v3114
      %v3116 = vpop.f32.mrb[0].mxu0
      %3117 = vdwg.mxu0
      %v3118 = vadd.f32 %v2985, %v3069
      %v3119 = vadd.f32 %v2989, %v3073
      %v3121 = vlaneseq
      %v3122 = vshrl.u32 %v3121, 7
      %v3123 = vsub.s32 0, %v3122
      %v3124 = vrot.slane %v562, %v3123
      %v3126 = vadd.f32 %v3118, %v3124
      %v3127 = vadd.f32 %v3119, %v3124
      %v3128 = vxor.u32 %v3126, 2147483648
      %v3129 = vxor.u32 %v3127, 2147483648
      %v3130 = vmul.f32 %v3128, 1.442695
      %v3131 = vpow.pop %v3130
      %v3132 = vmul.f32 %v3129, 1.442695
      %v3133 = vpow.pop %v3132
      %v3134 = vadd.f32 %v3131, 1.0
      %v3135 = vadd.f32 %v3133, 1.0
      %v3136 = vrcp.pop %v3134
      %v3137 = vmul.f32 1.0, %v3136
      %v3138 = vrcp.pop %v3135
      %v3139 = vmul.f32 1.0, %v3138
      %v3140 = vadd.f32 %v2987, %v3071
      %v3141 = vadd.f32 %v2991, %v3075
      %v3143 = vlaneseq
      %v3144 = vshrl.u32 %v3143, 7
      %v3145 = vsub.s32 0, %v3144
      %v3146 = vrot.slane %v563, %v3145
      %v3148 = vadd.f32 %v3140, %v3146
      %v3149 = vadd.f32 %v3141, %v3146
      %v3150 = vxor.u32 %v3148, 2147483648
      %v3151 = vxor.u32 %v3149, 2147483648
      %v3152 = vmul.f32 %v3150, 1.442695
      %v3153 = vpow.pop %v3152
      %v3154 = vmul.f32 %v3151, 1.442695
      %v3155 = vpow.pop %v3154
      %v3156 = vadd.f32 %v3153, 1.0
      %v3157 = vadd.f32 %v3155, 1.0
      %v3158 = vrcp.pop %v3156
      %v3159 = vmul.f32 1.0, %v3158
      %v3160 = vrcp.pop %v3157
      %v3161 = vmul.f32 1.0, %v3160
      %v3163 = vlaneseq
      %v3164 = vshrl.u32 %v3163, 7
      %v3165 = vsub.s32 0, %v3164
      %v3166 = vrot.slane %v564, %v3165
      %v3168 = vadd.f32 %v3028, %v3166
      %v3169 = vadd.f32 %v3031, %v3166
      %v3171 = vlaneseq
      %v3172 = vshrl.u32 %v3171, 7
      %v3173 = vsub.s32 0, %v3172
      %v3174 = vrot.slane %v565, %v3173
      %v3176 = vadd.f32 %v3112, %v3174
      %v3177 = vadd.f32 %v3115, %v3174
      %v3178 = vmul.f32 %v3137, %v3176
      %v3179 = vmul.f32 %v3139, %v3177
      %v3180 = vadd.f32 %v3168, %v3178
      %v3181 = vadd.f32 %v3169, %v3179
      %v3182 = vtanh.pop %v3180
      %v3183 = vtanh.pop %v3181
      %v3184 = vsub.f32 1.0, %v3159
      %v3185 = vsub.f32 1.0, %v3161
      %v3186 = vmul.f32 %v3184, %v3182
      %v3187 = vmul.f32 %v3185, %v3183
      %v3188 = vmul.f32 %v3159, %v744
      %v3189 = vmul.f32 %v3161, %v745
      %v3190 = vadd.f32 %v3186, %v3188
      %v3191 = vadd.f32 %v3187, %v3189
    $region126: #{tpu_custom_call.1} parent=1 // loop_footer
      %s743 = sadd.s32 1, %s739
    $region127: #{tpu_custom_call.1} parent=1 // loop_footer_branch
      %738 = sbr.rel target = $region123
    $region128: #{tpu_custom_call.1} parent=1 // loop_exit
      _
    %3192 = vst [vmem:[#allocation17] sm:$0xff] %v744
    %3193 = vst [vmem:[#allocation17 + $0x8] sm:$0xff] %v745
    %v3194 = vpack.c.bf16 %v745, %v744
    %v3197 = vunpack.c.l.b16 %v195
    %v3198 = vunpack.c.l.b16 %v196
    %v3199 = vpack.c.b16 %v3198, %v3197
    %v3201 = vsel %vm628, %v3199, 0
    %3203 = vmatprep.subr.bf16.mxu0 0
    %3204 = vmatpush1.bf16.msra.mxu0 %v3194
    %3205 = vmatprep.subr.bf16.mxu0 0
    %3206 = vmatpush1.bf16.msra.mxu0 0
    %3207 = vmatprep.subr.bf16.mxu0 0
    %3208 = vmatpush1.bf16.msra.mxu0 0
    %3209 = vmatprep.subr.bf16.mxu0 0
    %3210 = vmatpush1.bf16.msra.mxu0 0
    %3211 = vmatprep.subr.bf16.mxu0 0
    %3212 = vmatpush1.bf16.msra.mxu0 0
    %3213 = vmatprep.subr.bf16.mxu0 0
    %3214 = vmatpush1.bf16.msra.mxu0 0
    %3215 = vmatprep.subr.bf16.mxu0 0
    %3216 = vmatpush1.bf16.msra.mxu0 0
    %3217 = vmatprep.subr.bf16.mxu0 0
    %3218 = vmatpush1.bf16.msra.mxu0 0
    %3219 = vmatprep.subr.bf16.mxu0 0
    %3220 = vmatpush1.bf16.msra.mxu0 0
    %3221 = vmatprep.subr.bf16.mxu0 0
    %3222 = vmatpush1.bf16.msra.mxu0 0
    %3223 = vmatprep.subr.bf16.mxu0 0
    %3224 = vmatpush1.bf16.msra.mxu0 0
    %3225 = vmatprep.subr.bf16.mxu0 0
    %3226 = vmatpush1.bf16.msra.mxu0 0
    %3227 = vmatprep.subr.bf16.mxu0 0
    %3228 = vmatpush1.bf16.msra.mxu0 0
    %3229 = vmatprep.subr.bf16.mxu0 0
    %3230 = vmatpush1.bf16.msra.mxu0 0
    %3231 = vmatprep.subr.bf16.mxu0 0
    %3232 = vmatpush1.bf16.msra.mxu0 0
    %3233 = vmatprep.subr.bf16.mxu0 0
    %3234 = vmatpush1.bf16.msra.mxu0 0
    %3235 = vmatprep.mubr.bf16.mxu0 0
    %3236 = vmatmul.mubr.bf16.gmra.mrb[0].mxu0 %v3201
    %v3237 = vpop.f32.mrb[0].mxu0
    %v3238 = vadd.f32 0.0, %v3237
    %v3239 = vpop.f32.mrb[0].mxu0
    %v3240 = vpop.f32.mrb[0].mxu0
    %v3241 = vadd.f32 0.0, %v3240
    %v3242 = vpop.f32.mrb[0].mxu0
    %3243 = vdwg.mxu0
    %v3246 = vunpack.c.l.b16 %v197
    %v3247 = vunpack.c.l.b16 %v198
    %v3248 = vpack.c.b16 %v3247, %v3246
    %v3250 = vsel %vm628, %v3248, 0
    %3252 = vmatprep.subr.bf16.mxu0 0
    %3253 = vmatpush1.bf16.msra.mxu0 %v3194
    %3254 = vmatprep.subr.bf16.mxu0 0
    %3255 = vmatpush1.bf16.msra.mxu0 0
    %3256 = vmatprep.subr.bf16.mxu0 0
    %3257 = vmatpush1.bf16.msra.mxu0 0
    %3258 = vmatprep.subr.bf16.mxu0 0
    %3259 = vmatpush1.bf16.msra.mxu0 0
    %3260 = vmatprep.subr.bf16.mxu0 0
    %3261 = vmatpush1.bf16.msra.mxu0 0
    %3262 = vmatprep.subr.bf16.mxu0 0
    %3263 = vmatpush1.bf16.msra.mxu0 0
    %3264 = vmatprep.subr.bf16.mxu0 0
    %3265 = vmatpush1.bf16.msra.mxu0 0
    %3266 = vmatprep.subr.bf16.mxu0 0
    %3267 = vmatpush1.bf16.msra.mxu0 0
    %3268 = vmatprep.subr.bf16.mxu0 0
    %3269 = vmatpush1.bf16.msra.mxu0 0
    %3270 = vmatprep.subr.bf16.mxu0 0
    %3271 = vmatpush1.bf16.msra.mxu0 0
    %3272 = vmatprep.subr.bf16.mxu0 0
    %3273 = vmatpush1.bf16.msra.mxu0 0
    %3274 = vmatprep.subr.bf16.mxu0 0
    %3275 = vmatpush1.bf16.msra.mxu0 0
    %3276 = vmatprep.subr.bf16.mxu0 0
    %3277 = vmatpush1.bf16.msra.mxu0 0
    %3278 = vmatprep.subr.bf16.mxu0 0
    %3279 = vmatpush1.bf16.msra.mxu0 0
    %3280 = vmatprep.subr.bf16.mxu0 0
    %3281 = vmatpush1.bf16.msra.mxu0 0
    %3282 = vmatprep.subr.bf16.mxu0 0
    %3283 = vmatpush1.bf16.msra.mxu0 0
    %3284 = vmatprep.mubr.bf16.mxu0 0
    %3285 = vmatmul.mubr.bf16.gmra.mrb[0].mxu0 %v3250
    %v3286 = vpop.f32.mrb[0].mxu0
    %v3287 = vadd.f32 0.0, %v3286
    %v3288 = vpop.f32.mrb[0].mxu0
    %v3289 = vpop.f32.mrb[0].mxu0
    %v3290 = vadd.f32 0.0, %v3289
    %v3291 = vpop.f32.mrb[0].mxu0
    %3292 = vdwg.mxu0
    %v3293 = vpack.c.bf16 %v3241, %v3238
    %v3294 = vpack.c.bf16 %v3290, %v3287
    %3295 = vmatprep.subr.bf16.mxu0 0
    %3296 = vmatpush1.bf16.msra.mxu0 %v606
    %3297 = vmatprep.subr.bf16.mxu0 0
    %3298 = vmatpush1.bf16.msra.mxu0 %v607
    %3299 = vmatprep.subr.bf16.mxu0 0
    %3300 = vmatpush1.bf16.msra.mxu0 %v608
    %3301 = vmatprep.subr.bf16.mxu0 0
    %3302 = vmatpush1.bf16.msra.mxu0 %v609
    %3303 = vmatprep.subr.bf16.mxu0 0
    %3304 = vmatpush1.bf16.msra.mxu0 %v610
    %3305 = vmatprep.subr.bf16.mxu0 0
    %3306 = vmatpush1.bf16.msra.mxu0 %v611
    %3307 = vmatprep.subr.bf16.mxu0 0
    %3308 = vmatpush1.bf16.msra.mxu0 %v612
    %3309 = vmatprep.subr.bf16.mxu0 0
    %3310 = vmatpush1.bf16.msra.mxu0 %v613
    %3311 = vmatprep.subr.bf16.mxu0 0
    %3312 = vmatpush1.bf16.msra.mxu0 0
    %3313 = vmatprep.subr.bf16.mxu0 0
    %3314 = vmatpush1.bf16.msra.mxu0 0
    %3315 = vmatprep.subr.bf16.mxu0 0
    %3316 = vmatpush1.bf16.msra.mxu0 0
    %3317 = vmatprep.subr.bf16.mxu0 0
    %3318 = vmatpush1.bf16.msra.mxu0 0
    %3319 = vmatprep.subr.bf16.mxu0 0
    %3320 = vmatpush1.bf16.msra.mxu0 0
    %3321 = vmatprep.subr.bf16.mxu0 0
    %3322 = vmatpush1.bf16.msra.mxu0 0
    %3323 = vmatprep.subr.bf16.mxu0 0
    %3324 = vmatpush1.bf16.msra.mxu0 0
    %3325 = vmatprep.subr.bf16.mxu0 0
    %3326 = vmatpush1.bf16.msra.mxu0 0
    %3327 = vmatprep.mubr.bf16.mxu0 0
    %3328 = vmatmul.mubr.bf16.gmra.mrb[0].mxu0 %v3294
    %v3329 = vpop.f32.mrb[0].mxu0
    %v3330 = vadd.f32 0.0, %v3329
    %v3331 = vpop.f32.mrb[0].mxu0
    %v3332 = vpop.f32.mrb[0].mxu0
    %v3333 = vadd.f32 0.0, %v3332
    %v3334 = vpop.f32.mrb[0].mxu0
    %3335 = vdwg.mxu0
    %3336 = vmatprep.subr.bf16.mxu0 0
    %3337 = vmatpush1.bf16.msra.mxu0 %v582
    %3338 = vmatprep.subr.bf16.mxu0 0
    %3339 = vmatpush1.bf16.msra.mxu0 %v583
    %3340 = vmatprep.subr.bf16.mxu0 0
    %3341 = vmatpush1.bf16.msra.mxu0 %v584
    %3342 = vmatprep.subr.bf16.mxu0 0
    %3343 = vmatpush1.bf16.msra.mxu0 %v585
    %3344 = vmatprep.subr.bf16.mxu0 0
    %3345 = vmatpush1.bf16.msra.mxu0 %v586
    %3346 = vmatprep.subr.bf16.mxu0 0
    %3347 = vmatpush1.bf16.msra.mxu0 %v587
    %3348 = vmatprep.subr.bf16.mxu0 0
    %3349 = vmatpush1.bf16.msra.mxu0 %v588
    %3350 = vmatprep.subr.bf16.mxu0 0
    %3351 = vmatpush1.bf16.msra.mxu0 %v589
    %3352 = vmatprep.subr.bf16.mxu0 0
    %3353 = vmatpush1.bf16.msra.mxu0 0
    %3354 = vmatprep.subr.bf16.mxu0 0
    %3355 = vmatpush1.bf16.msra.mxu0 0
    %3356 = vmatprep.subr.bf16.mxu0 0
    %3357 = vmatpush1.bf16.msra.mxu0 0
    %3358 = vmatprep.subr.bf16.mxu0 0
    %3359 = vmatpush1.bf16.msra.mxu0 0
    %3360 = vmatprep.subr.bf16.mxu0 0
    %3361 = vmatpush1.bf16.msra.mxu0 0
    %3362 = vmatprep.subr.bf16.mxu0 0
    %3363 = vmatpush1.bf16.msra.mxu0 0
    %3364 = vmatprep.subr.bf16.mxu0 0
    %3365 = vmatpush1.bf16.msra.mxu0 0
    %3366 = vmatprep.subr.bf16.mxu0 0
    %3367 = vmatpush1.bf16.msra.mxu0 0
    %3368 = vmatprep.mubr.bf16.mxu0 0
    %3369 = vmatmul.mubr.bf16.gmra.mrb[0].mxu0 %v3293
    %v3370 = vpop.f32.mrb[0].mxu0
    %v3371 = vadd.f32 %v3330, %v3370
    %v3372 = vpop.f32.mrb[0].mxu0
    %v3373 = vpop.f32.mrb[0].mxu0
    %v3374 = vadd.f32 %v3333, %v3373
    %v3375 = vpop.f32.mrb[0].mxu0
    %3376 = vdwg.mxu0
    %v3378 = vlaneseq
    %v3379 = vshrl.u32 %v3378, 7
    %v3380 = vsub.s32 0, %v3379
    %v3381 = vrot.slane %v614, %v3380
    %v3383 = vadd.f32 %v3371, %v3381
    %v3384 = vadd.f32 %v3374, %v3381
    %3385 = vst [vmem:[#allocation18] sm:$0xff] %v3383
    %3386 = vst [vmem:[#allocation18 + $0x8] sm:$0xff] %v3384
    // Predicated region
    $region129: #{tpu_custom_call.1} parent=1 // pred_check
      _
    $region130: #{tpu_custom_call.1} parent=1 // pred_check_branch
      %3388 = sbr.rel (0) target = $region132
    $region131: #{tpu_custom_call.1} parent=1 // pred_region
      %s3390 = ssub.s32 256, 256
      %3391 = vsyncadd [#allocation4], %s3390
      %s3392 = sshll.u32 [#allocation17], 4
      %s3393 = int_to_ptr.vmem [resolvable:$true] %s3392
      %3398 = dma.vmem_to_hbm [thread:$0]  %s3393, 256, %s21, [#allocation4], 128, 128, 8
    $region132: #{tpu_custom_call.1} parent=1 // pred_fallthru
      _
    // Predicated region
    $region133: #{tpu_custom_call.1} parent=1 // pred_check
      _
    $region134: #{tpu_custom_call.1} parent=1 // pred_check_branch
      %3400 = sbr.rel (0) target = $region136
    $region135: #{tpu_custom_call.1} parent=1 // pred_region
      %s3402 = ssub.s32 256, 256
      %3403 = vsyncadd [#allocation19], %s3402
      %s3404 = sshll.u32 [#allocation18], 4
      %s3405 = int_to_ptr.vmem [resolvable:$true] %s3404
      %3410 = dma.vmem_to_hbm [thread:$0]  %s3405, 256, %s22, [#allocation19], 128, 128, 8
    $region136: #{tpu_custom_call.1} parent=1 // pred_fallthru
      _
    // Predicated region
    $region137: #{tpu_custom_call.1} parent=1 // pred_check
      _
    $region138: #{tpu_custom_call.1} parent=1 // pred_check_branch
      %3412 = sbr.rel (0) target = $region140
    $region139: #{tpu_custom_call.1} parent=1 // pred_region
      %3413 = dma.done [#allocation4], 256
    $region140: #{tpu_custom_call.1} parent=1 // pred_fallthru
      _
    // Predicated region
    $region141: #{tpu_custom_call.1} parent=1 // pred_check
      _
    $region142: #{tpu_custom_call.1} parent=1 // pred_check_branch
      %3415 = sbr.rel (0) target = $region144
    $region143: #{tpu_custom_call.1} parent=1 // pred_region
      %3416 = dma.done [#allocation19], 256
    $region144: #{tpu_custom_call.1} parent=1 // pred_fallthru
      _
    %3417 = vsyncpa [#allocation3], 1
    %3418 = vsyncpa [#allocation6], 1
    %3419 = vsyncpa [#allocation9], 1
    %3420 = vsyncpa [#allocation12], 1
    %3421 = vsyncpa [#allocation15], 1
    %3422 = vsyncpa [#allocation4], 1
    %3423 = vsyncpa [#allocation19], 1

</llo_original>
